<compile_context>
chip_gen: v5e
topology: v5e:2x2
jax: 0.10.0
libtpu: 0.0.40
codegen_flags: <defaults>
</compile_context>

<pallas_src>
import functools
import numpy as np
import jax
import jax.numpy as jnp
from jax import lax
from jax.experimental import pallas as pl
from jax.experimental.pallas import tpu as pltpu

_BN_EPS = 1e-5  # nn.BatchNorm2d default


def _round_up(n, m):
    return ((n + m - 1) // m) * m


def _silu(v):
    # exp and approx-reciprocal both ride the EUP slot; avoids an exact f32 divide on VPU.
    return v * pl.reciprocal(1.0 + jnp.exp(-v), approx=True)


def _bottleneck_kernel(x_ref, w1_ref, b1_ref, w2_ref, b2_ref, o_ref, ypad_ref,
                       *, H, W, pad, add):
    # x_ref : (1, HW, C1p)  f32   NHWC-flattened, channel-padded input (this batch elem)
    # w1_ref: (C1p, Ch)     bf16  1x1 conv weight with BN1 scale folded in
    # b1_ref: (1, Ch)       f32   folded BN1 bias
    # w2_ref: (9, Ch, C2p)  bf16  3x3 conv weight, tap-major, BN2 scale folded in
    # b2_ref: (1, C2p)      f32   folded BN2 bias
    # o_ref : (1, HW, C2p)  f32
    # ypad  : (HW + 2*pad, Ch) f32 scratch; taps are static sublane-offset slices
    HW = H * W
    Ch = ypad_ref.shape[1]

    # Clear only the top/bottom halo margins (2*pad rows, not the whole scratch); the
    # interior [pad:pad+HW] is fully overwritten below.  Unconditional so it remains
    # correct when the batch grid axis is split across TensorCores (megacore).
    margin = jnp.zeros((pad, Ch), ypad_ref.dtype)
    ypad_ref[0:pad, :] = margin
    ypad_ref[pad + HW:pad + HW + pad, :] = margin

    x = x_ref[0]                                                     # (HW, C1p) f32

    # ---- cv1: 1x1 conv (bf16 MXU matmul, f32 acc) + folded-BN bias + SiLU ----
    y = jnp.dot(x.astype(jnp.bfloat16), w1_ref[...],
                preferred_element_type=jnp.float32)                  # (HW, Ch) f32
    y = _silu(y + b1_ref[...])

    # Stage y in the zero-margined flat (row-major HW) scratch for the 3x3 taps.
    ypad_ref[pad:pad + HW, :] = y
    y_bf = y.astype(jnp.bfloat16)                                    # centre tap (in vregs)

    # Hoisted column-validity masks (kill left/right row-wrap leakage), computed once.
    col = lax.broadcasted_iota(jnp.int32, (HW, 1), 0) % W
    mask_l = col >= 1
    mask_r = col < (W - 1)

    # ---- cv2: 3x3 conv (pad=1) as 9 shifted bf16 matmuls + folded-BN bias + SiLU ----
    c2p = o_ref.shape[2]
    acc = jnp.zeros((HW, c2p), jnp.float32)
    for ky in range(3):
        for kx in range(3):
            dy, dx = ky - 1, kx - 1
            if dy == 0 and dx == 0:
                tap = y_bf                                           # reuse registers
            else:
                s = dy * W + dx                                      # flat spatial shift
                tap_f = ypad_ref[pad + s:pad + s + HW, :]            # (HW, Ch) f32
                if dx == -1:
                    tap_f = jnp.where(mask_l, tap_f, 0.0)
                elif dx == 1:
                    tap_f = jnp.where(mask_r, tap_f, 0.0)
                tap = tap_f.astype(jnp.bfloat16)
            acc = acc + jnp.dot(tap, w2_ref[3 * ky + kx],
                                preferred_element_type=jnp.float32)

    z = _silu(acc + b2_ref[...])
    if add:
        z = z + x                                                    # residual (C1p == C2p)
    o_ref[0] = z.astype(o_ref.dtype)


@functools.partial(jax.jit, static_argnames=("shortcut",))
def bottleneck_forward(x, w1, g1, beta1, m1, v1, w2, g2, beta2, m2, v2, *,
                       shortcut=True):
    """x: (B, C1, H, W) NCHW float32. Weights in PyTorch layouts. Returns NCHW f32."""
    B, C1, H, W = x.shape
    Ch = w1.shape[0]          # c_
    C2 = w2.shape[0]
    HW = H * W
    add = bool(shortcut) and (C1 == C2)

    # Lane-dense channel padding (unmasked output vst; aligned input loads).
    C1p = _round_up(C1, 128)
    C2p = _round_up(C2, 128)

    # Fold eval-mode BatchNorm into per-channel scale/bias; fold the scale into the
    # conv weights so the kernel only needs a bias add.
    sc1 = g1 * lax.rsqrt(v1 + _BN_EPS)
    bi1 = beta1 - m1 * sc1
    sc2 = g2 * lax.rsqrt(v2 + _BN_EPS)
    bi2 = beta2 - m2 * sc2

    w1m = w1.reshape(Ch, C1).T * sc1[None, :]                        # (C1, Ch)
    w1p = jnp.pad(w1m, ((0, C1p - C1), (0, 0))).astype(jnp.bfloat16)

    w2t = jnp.transpose(w2, (2, 3, 1, 0)).reshape(9, Ch, C2) * sc2[None, None, :]
    w2p = jnp.pad(w2t, ((0, 0), (0, 0), (0, C2p - C2))).astype(jnp.bfloat16)

    b1 = bi1.reshape(1, Ch).astype(jnp.float32)
    b2 = jnp.pad(bi2, (0, C2p - C2)).reshape(1, C2p).astype(jnp.float32)

    # NCHW -> NHWC-flattened, channel-padded (layout glue, done once in XLA).
    x_flat = jnp.pad(jnp.transpose(x, (0, 2, 3, 1)).reshape(B, HW, C1),
                     ((0, 0), (0, 0), (0, C1p - C1)))

    pad = max(8, _round_up(W + 1, 8))                                # >= W+1, sublane-aligned
    kernel = functools.partial(_bottleneck_kernel, H=H, W=W, pad=pad, add=add)

    out_flat = pl.pallas_call(
        kernel,
        out_shape=jax.ShapeDtypeStruct((B, HW, C2p), jnp.float32),
        grid=(B,),
        in_specs=[
            pl.BlockSpec((1, HW, C1p), lambda b: (b, 0, 0)),
            pl.BlockSpec((C1p, Ch), lambda b: (0, 0)),
            pl.BlockSpec((1, Ch), lambda b: (0, 0)),
            pl.BlockSpec((9, Ch, C2p), lambda b: (0, 0, 0)),
            pl.BlockSpec((1, C2p), lambda b: (0, 0)),
        ],
        out_specs=pl.BlockSpec((1, HW, C2p), lambda b: (b, 0, 0)),
        scratch_shapes=[pltpu.VMEM((HW + 2 * pad, Ch), jnp.float32)],
        compiler_params=pltpu.CompilerParams(dimension_semantics=("parallel",)),
    )(x_flat, w1p, b1, w2p, b2)

    # Strip channel padding, NHWC-flattened -> NCHW.
    return jnp.transpose(out_flat[:, :, :C2].reshape(B, H, W, C2), (0, 3, 1, 2))


class Bottleneck:
    """JAX/Pallas equivalent of models.common.Bottleneck (inference mode)."""

    def __init__(self, c1, c2, shortcut=True, g=1, e=0.5, *, key):
        assert g == 1  # TODO(synk): grouped conv (g > 1) not implemented.
        c_ = int(c2 * e)
        k_w1, k_w2, k_bn1, k_bn2 = jax.random.split(key, 4)

        def bn_params(k, c):
            k1, k2, k3, k4 = jax.random.split(k, 4)
            gamma = jax.random.uniform(k1, (c,), jnp.float32, 0.5, 1.5)
            beta = 0.1 * jax.random.normal(k2, (c,), jnp.float32)
            mean = 0.1 * jax.random.normal(k3, (c,), jnp.float32)
            var = jax.random.uniform(k4, (c,), jnp.float32, 0.5, 1.5)
            return gamma, beta, mean, var

        self.w1 = jax.random.normal(k_w1, (c_, c1, 1, 1), jnp.float32) / np.sqrt(c1)
        self.w2 = jax.random.normal(k_w2, (c2, c_, 3, 3), jnp.float32) / np.sqrt(c_ * 9)
        self.bn1 = bn_params(k_bn1, c_)
        self.bn2 = bn_params(k_bn2, c2)
        self.shortcut = bool(shortcut)

    @property
    def params(self):
        return (self.w1, *self.bn1, self.w2, *self.bn2)

    def __call__(self, x):
        return bottleneck_forward(x, *self.params, shortcut=self.shortcut)


def _reference(x, w1, g1, beta1, m1, v1, w2, g2, beta2, m2, v2, shortcut=True):
    """Pure-JAX/XLA reference (lax.conv + folded BN + SiLU) for validation."""
    def conv_bn_silu(inp, w, g, b, m, v, p):
        y = lax.conv_general_dilated(
            inp, w, window_strides=(1, 1), padding=[(p, p), (p, p)],
            dimension_numbers=("NCHW", "OIHW", "NCHW"))
        s = g * lax.rsqrt(v + _BN_EPS)
        bias = b - m * s
        y = y * s[None, :, None, None] + bias[None, :, None, None]
        return y * jax.nn.sigmoid(y)

    y = conv_bn_silu(x, w1, g1, beta1, m1, v1, 0)
    z = conv_bn_silu(y, w2, g2, beta2, m2, v2, 1)
    add = shortcut and (x.shape[1] == w2.shape[0])
    return x + z if add else z


if __name__ == "__main__":
    B, C1, C2, H, W = 2, 32, 32, 16, 16
    key = jax.random.PRNGKey(0)
    k_param, k_x = jax.random.split(key, 2)

    block = Bottleneck(C1, C2, shortcut=True, g=1, e=0.5, key=k_param)
    x = jax.random.normal(k_x, (B, C1, H, W), jnp.float32)

    out = block(x)
    out = jax.block_until_ready(out)

    assert out.shape == (B, C2, H, W)
    ref = _reference(x, *block.params, shortcut=True)
    np.testing.assert_allclose(np.asarray(out), np.asarray(ref), rtol=5e-2, atol=5e-2)
    print("KERNEL_OK")
</pallas_src>

<mosaic_0001>
module attributes {stable_mosaic.version = 11 : i64} {
  func.func @_bottleneck_kernel(%arg0: i32, %arg1: memref<1x256x128xf32, #tpu.memory_space<vmem>>, %arg2: memref<128x16xbf16, #tpu.memory_space<vmem>>, %arg3: memref<1x16xf32, #tpu.memory_space<vmem>>, %arg4: memref<9x16x128xbf16, #tpu.memory_space<vmem>>, %arg5: memref<1x128xf32, #tpu.memory_space<vmem>>, %arg6: memref<1x256x128xf32, #tpu.memory_space<vmem>>, %arg7: memref<304x16xf32, #tpu.memory_space<vmem>>) attributes {dimension_semantics = [#tpu.dimension_semantics<parallel>], iteration_bounds = array<i64: 2>, scalar_prefetch = 0 : i64, scratch_operands = 1 : i64, tpu.core_type = #tpu.core_type<tc>, window_params = [{transform_indices = @transform_0, window_bounds = array<i64: 1, 256, 128>}, {pipeline_mode = #tpu.pipeline_mode<synchronous>, transform_indices = @transform_1, window_bounds = array<i64: 128, 16>}, {pipeline_mode = #tpu.pipeline_mode<synchronous>, transform_indices = @transform_2, window_bounds = array<i64: 1, 16>}, {pipeline_mode = #tpu.pipeline_mode<synchronous>, transform_indices = @transform_3, window_bounds = array<i64: 9, 16, 128>}, {pipeline_mode = #tpu.pipeline_mode<synchronous>, transform_indices = @transform_4, window_bounds = array<i64: 1, 128>}, {transform_indices = @transform_5, window_bounds = array<i64: 1, 256, 128>}]} {
    %cst = arith.constant 0.000000e+00 : f32
    %0 = vector.broadcast %cst : f32 to vector<24x16xf32>
    %c0 = arith.constant 0 : index
    %c0_0 = arith.constant 0 : index
    %1 = vector.load %arg7[%c0, %c0_0] : memref<304x16xf32, #tpu.memory_space<vmem>>, vector<24x16xf32>
    tpu.vector_store %arg7[%c0, %c0_0], %0 {strides = array<i32>} : memref<304x16xf32, #tpu.memory_space<vmem>>, vector<24x16xf32>,
    %c280 = arith.constant 280 : index
    %c0_1 = arith.constant 0 : index
    %2 = vector.load %arg7[%c280, %c0_1] : memref<304x16xf32, #tpu.memory_space<vmem>>, vector<24x16xf32>
    tpu.vector_store %arg7[%c280, %c0_1], %0 {strides = array<i32>} : memref<304x16xf32, #tpu.memory_space<vmem>>, vector<24x16xf32>,
    %c0_2 = arith.constant 0 : index
    %c0_3 = arith.constant 0 : index
    %c0_4 = arith.constant 0 : index
    %3 = vector.load %arg1[%c0_2, %c0_3, %c0_4] : memref<1x256x128xf32, #tpu.memory_space<vmem>>, vector<1x256x128xf32>
    %4 = vector.shape_cast %3 : vector<1x256x128xf32> to vector<256x128xf32>
    %5 = arith.truncf %4 : vector<256x128xf32> to vector<256x128xbf16>
    %c0_5 = arith.constant 0 : index
    %c0_6 = arith.constant 0 : index
    %6 = vector.load %arg2[%c0_5, %c0_6] : memref<128x16xbf16, #tpu.memory_space<vmem>>, vector<128x16xbf16>
    %cst_7 = arith.constant dense<0.000000e+00> : vector<256x16xf32>
    %7 = tpu.matmul %5, %6, %cst_7 {dimension_numbers = #tpu.dot_dimension_numbers<[1], [0], [0], [1], [0, 0, 1, 1], [], []>} : vector<256x128xbf16>, vector<128x16xbf16>, vector<256x16xf32> -> vector<256x16xf32>
    %c0_8 = arith.constant 0 : index
    %c0_9 = arith.constant 0 : index
    %8 = vector.load %arg3[%c0_8, %c0_9] : memref<1x16xf32, #tpu.memory_space<vmem>>, vector<1x16xf32>
    %9 = vector.broadcast %8 : vector<1x16xf32> to vector<256x16xf32>
    %10 = arith.addf %7, %9 : vector<256x16xf32>
    %cst_10 = arith.constant 0.000000e+00 : f32
    %11 = vector.broadcast %cst_10 : f32 to vector<256x16xf32>
    %12 = arith.subf %11, %10 : vector<256x16xf32>
    %13 = math.exp %12 : vector<256x16xf32>
    %cst_11 = arith.constant 1.000000e+00 : f32
    %14 = vector.broadcast %cst_11 : f32 to vector<256x16xf32>
    %15 = arith.addf %14, %13 : vector<256x16xf32>
    %16 = tpu.reciprocal %15 {approx = true} : vector<256x16xf32> -> vector<256x16xf32>
    %17 = arith.mulf %10, %16 : vector<256x16xf32>
    %c24 = arith.constant 24 : index
    %c0_12 = arith.constant 0 : index
    %18 = vector.load %arg7[%c24, %c0_12] : memref<304x16xf32, #tpu.memory_space<vmem>>, vector<256x16xf32>
    tpu.vector_store %arg7[%c24, %c0_12], %17 {strides = array<i32>} : memref<304x16xf32, #tpu.memory_space<vmem>>, vector<256x16xf32>,
    %19 = arith.truncf %17 : vector<256x16xf32> to vector<256x16xbf16>
    %20 = tpu.iota {dimensions = array<i32: 0>} : vector<256x1xi32>
    %c16_i32 = arith.constant 16 : i32
    %c0_i32 = arith.constant 0 : i32
    %21 = arith.cmpi eq, %c16_i32, %c0_i32 : i32
    %c1_i32 = arith.constant 1 : i32
    %22 = arith.select %21, %c1_i32, %c16_i32 : i32
    %23 = vector.broadcast %22 : i32 to vector<256x1xi32>
    %24 = arith.remsi %20, %23 : vector<256x1xi32>
    %c0_i32_13 = arith.constant 0 : i32
    %25 = vector.broadcast %c0_i32_13 : i32 to vector<256x1xi32>
    %26 = arith.cmpi ne, %24, %25 : vector<256x1xi32>
    %c0_i32_14 = arith.constant 0 : i32
    %27 = vector.broadcast %c0_i32_14 : i32 to vector<256x1xi32>
    %28 = arith.cmpi slt, %24, %27 : vector<256x1xi32>
    %c0_i32_15 = arith.constant 0 : i32
    %29 = arith.cmpi slt, %22, %c0_i32_15 : i32
    %30 = vector.broadcast %29 : i1 to vector<256x1xi1>
    %31 = vector.broadcast %30 : vector<256x1xi1> to vector<256x1xi1>
    %32 = arith.xori %28, %31 : vector<256x1xi1>
    %33 = arith.andi %32, %26 : vector<256x1xi1>
    %34 = vector.broadcast %22 : i32 to vector<256x1xi32>
    %35 = arith.addi %24, %34 : vector<256x1xi32>
    %36 = arith.select %33, %35, %24 : vector<256x1xi1>, vector<256x1xi32>
    %c1_i32_16 = arith.constant 1 : i32
    %37 = vector.broadcast %c1_i32_16 : i32 to vector<256x1xi32>
    %38 = arith.cmpi sge, %36, %37 : vector<256x1xi32>
    %c15_i32 = arith.constant 15 : i32
    %39 = vector.broadcast %c15_i32 : i32 to vector<256x1xi32>
    %40 = arith.cmpi slt, %36, %39 : vector<256x1xi32>
    %cst_17 = arith.constant 0.000000e+00 : f32
    %41 = vector.broadcast %cst_17 : f32 to vector<256x128xf32>
    %c7 = arith.constant 7 : index
    %c0_18 = arith.constant 0 : index
    %42 = vector.load %arg7[%c7, %c0_18] : memref<304x16xf32, #tpu.memory_space<vmem>>, vector<256x16xf32>
    %cst_19 = arith.constant 0.000000e+00 : f32
    %43 = vector.shape_cast %38 : vector<256x1xi1> to vector<256x1xi1>
    %44 = vector.broadcast %43 : vector<256x1xi1> to vector<256x16xi1>
    %45 = vector.broadcast %cst_19 : f32 to vector<256x16xf32>
    %46 = arith.select %44, %42, %45 : vector<256x16xi1>, vector<256x16xf32>
    %47 = arith.truncf %46 : vector<256x16xf32> to vector<256x16xbf16>
    %c0_20 = arith.constant 0 : index
    %c0_21 = arith.constant 0 : index
    %c0_22 = arith.constant 0 : index
    %48 = vector.load %arg4[%c0_20, %c0_21, %c0_22] : memref<9x16x128xbf16, #tpu.memory_space<vmem>>, vector<1x16x128xbf16>
    %49 = vector.shape_cast %48 : vector<1x16x128xbf16> to vector<16x128xbf16>
    %cst_23 = arith.constant dense<0.000000e+00> : vector<256x128xf32>
    %50 = tpu.matmul %47, %49, %cst_23 {dimension_numbers = #tpu.dot_dimension_numbers<[1], [0], [0], [1], [0, 0, 1, 1], [], []>} : vector<256x16xbf16>, vector<16x128xbf16>, vector<256x128xf32> -> vector<256x128xf32>
    %51 = arith.addf %41, %50 : vector<256x128xf32>
    %c8 = arith.constant 8 : index
    %c0_24 = arith.constant 0 : index
    %52 = vector.load %arg7[%c8, %c0_24] : memref<304x16xf32, #tpu.memory_space<vmem>>, vector<256x16xf32>
    %53 = arith.truncf %52 : vector<256x16xf32> to vector<256x16xbf16>
    %c1 = arith.constant 1 : index
    %c0_25 = arith.constant 0 : index
    %c0_26 = arith.constant 0 : index
    %54 = vector.load %arg4[%c1, %c0_25, %c0_26] : memref<9x16x128xbf16, #tpu.memory_space<vmem>>, vector<1x16x128xbf16>
    %55 = vector.shape_cast %54 : vector<1x16x128xbf16> to vector<16x128xbf16>
    %cst_27 = arith.constant dense<0.000000e+00> : vector<256x128xf32>
    %56 = tpu.matmul %53, %55, %cst_27 {dimension_numbers = #tpu.dot_dimension_numbers<[1], [0], [0], [1], [0, 0, 1, 1], [], []>} : vector<256x16xbf16>, vector<16x128xbf16>, vector<256x128xf32> -> vector<256x128xf32>
    %57 = arith.addf %51, %56 : vector<256x128xf32>
    %c9 = arith.constant 9 : index
    %c0_28 = arith.constant 0 : index
    %58 = vector.load %arg7[%c9, %c0_28] : memref<304x16xf32, #tpu.memory_space<vmem>>, vector<256x16xf32>
    %cst_29 = arith.constant 0.000000e+00 : f32
    %59 = vector.shape_cast %40 : vector<256x1xi1> to vector<256x1xi1>
    %60 = vector.broadcast %59 : vector<256x1xi1> to vector<256x16xi1>
    %61 = vector.broadcast %cst_29 : f32 to vector<256x16xf32>
    %62 = arith.select %60, %58, %61 : vector<256x16xi1>, vector<256x16xf32>
    %63 = arith.truncf %62 : vector<256x16xf32> to vector<256x16xbf16>
    %c2 = arith.constant 2 : index
    %c0_30 = arith.constant 0 : index
    %c0_31 = arith.constant 0 : index
    %64 = vector.load %arg4[%c2, %c0_30, %c0_31] : memref<9x16x128xbf16, #tpu.memory_space<vmem>>, vector<1x16x128xbf16>
    %65 = vector.shape_cast %64 : vector<1x16x128xbf16> to vector<16x128xbf16>
    %cst_32 = arith.constant dense<0.000000e+00> : vector<256x128xf32>
    %66 = tpu.matmul %63, %65, %cst_32 {dimension_numbers = #tpu.dot_dimension_numbers<[1], [0], [0], [1], [0, 0, 1, 1], [], []>} : vector<256x16xbf16>, vector<16x128xbf16>, vector<256x128xf32> -> vector<256x128xf32>
    %67 = arith.addf %57, %66 : vector<256x128xf32>
    %c23 = arith.constant 23 : index
    %c0_33 = arith.constant 0 : index
    %68 = vector.load %arg7[%c23, %c0_33] : memref<304x16xf32, #tpu.memory_space<vmem>>, vector<256x16xf32>
    %cst_34 = arith.constant 0.000000e+00 : f32
    %69 = vector.shape_cast %38 : vector<256x1xi1> to vector<256x1xi1>
    %70 = vector.broadcast %69 : vector<256x1xi1> to vector<256x16xi1>
    %71 = vector.broadcast %cst_34 : f32 to vector<256x16xf32>
    %72 = arith.select %70, %68, %71 : vector<256x16xi1>, vector<256x16xf32>
    %73 = arith.truncf %72 : vector<256x16xf32> to vector<256x16xbf16>
    %c3 = arith.constant 3 : index
    %c0_35 = arith.constant 0 : index
    %c0_36 = arith.constant 0 : index
    %74 = vector.load %arg4[%c3, %c0_35, %c0_36] : memref<9x16x128xbf16, #tpu.memory_space<vmem>>, vector<1x16x128xbf16>
    %75 = vector.shape_cast %74 : vector<1x16x128xbf16> to vector<16x128xbf16>
    %cst_37 = arith.constant dense<0.000000e+00> : vector<256x128xf32>
    %76 = tpu.matmul %73, %75, %cst_37 {dimension_numbers = #tpu.dot_dimension_numbers<[1], [0], [0], [1], [0, 0, 1, 1], [], []>} : vector<256x16xbf16>, vector<16x128xbf16>, vector<256x128xf32> -> vector<256x128xf32>
    %77 = arith.addf %67, %76 : vector<256x128xf32>
    %c4 = arith.constant 4 : index
    %c0_38 = arith.constant 0 : index
    %c0_39 = arith.constant 0 : index
    %78 = vector.load %arg4[%c4, %c0_38, %c0_39] : memref<9x16x128xbf16, #tpu.memory_space<vmem>>, vector<1x16x128xbf16>
    %79 = vector.shape_cast %78 : vector<1x16x128xbf16> to vector<16x128xbf16>
    %cst_40 = arith.constant dense<0.000000e+00> : vector<256x128xf32>
    %80 = tpu.matmul %19, %79, %cst_40 {dimension_numbers = #tpu.dot_dimension_numbers<[1], [0], [0], [1], [0, 0, 1, 1], [], []>} : vector<256x16xbf16>, vector<16x128xbf16>, vector<256x128xf32> -> vector<256x128xf32>
    %81 = arith.addf %77, %80 : vector<256x128xf32>
    %c25 = arith.constant 25 : index
    %c0_41 = arith.constant 0 : index
    %82 = vector.load %arg7[%c25, %c0_41] : memref<304x16xf32, #tpu.memory_space<vmem>>, vector<256x16xf32>
    %cst_42 = arith.constant 0.000000e+00 : f32
    %83 = vector.shape_cast %40 : vector<256x1xi1> to vector<256x1xi1>
    %84 = vector.broadcast %83 : vector<256x1xi1> to vector<256x16xi1>
    %85 = vector.broadcast %cst_42 : f32 to vector<256x16xf32>
    %86 = arith.select %84, %82, %85 : vector<256x16xi1>, vector<256x16xf32>
    %87 = arith.truncf %86 : vector<256x16xf32> to vector<256x16xbf16>
    %c5 = arith.constant 5 : index
    %c0_43 = arith.constant 0 : index
    %c0_44 = arith.constant 0 : index
    %88 = vector.load %arg4[%c5, %c0_43, %c0_44] : memref<9x16x128xbf16, #tpu.memory_space<vmem>>, vector<1x16x128xbf16>
    %89 = vector.shape_cast %88 : vector<1x16x128xbf16> to vector<16x128xbf16>
    %cst_45 = arith.constant dense<0.000000e+00> : vector<256x128xf32>
    %90 = tpu.matmul %87, %89, %cst_45 {dimension_numbers = #tpu.dot_dimension_numbers<[1], [0], [0], [1], [0, 0, 1, 1], [], []>} : vector<256x16xbf16>, vector<16x128xbf16>, vector<256x128xf32> -> vector<256x128xf32>
    %91 = arith.addf %81, %90 : vector<256x128xf32>
    %c39 = arith.constant 39 : index
    %c0_46 = arith.constant 0 : index
    %92 = vector.load %arg7[%c39, %c0_46] : memref<304x16xf32, #tpu.memory_space<vmem>>, vector<256x16xf32>
    %cst_47 = arith.constant 0.000000e+00 : f32
    %93 = vector.shape_cast %38 : vector<256x1xi1> to vector<256x1xi1>
    %94 = vector.broadcast %93 : vector<256x1xi1> to vector<256x16xi1>
    %95 = vector.broadcast %cst_47 : f32 to vector<256x16xf32>
    %96 = arith.select %94, %92, %95 : vector<256x16xi1>, vector<256x16xf32>
    %97 = arith.truncf %96 : vector<256x16xf32> to vector<256x16xbf16>
    %c6 = arith.constant 6 : index
    %c0_48 = arith.constant 0 : index
    %c0_49 = arith.constant 0 : index
    %98 = vector.load %arg4[%c6, %c0_48, %c0_49] : memref<9x16x128xbf16, #tpu.memory_space<vmem>>, vector<1x16x128xbf16>
    %99 = vector.shape_cast %98 : vector<1x16x128xbf16> to vector<16x128xbf16>
    %cst_50 = arith.constant dense<0.000000e+00> : vector<256x128xf32>
    %100 = tpu.matmul %97, %99, %cst_50 {dimension_numbers = #tpu.dot_dimension_numbers<[1], [0], [0], [1], [0, 0, 1, 1], [], []>} : vector<256x16xbf16>, vector<16x128xbf16>, vector<256x128xf32> -> vector<256x128xf32>
    %101 = arith.addf %91, %100 : vector<256x128xf32>
    %c40 = arith.constant 40 : index
    %c0_51 = arith.constant 0 : index
    %102 = vector.load %arg7[%c40, %c0_51] : memref<304x16xf32, #tpu.memory_space<vmem>>, vector<256x16xf32>
    %103 = arith.truncf %102 : vector<256x16xf32> to vector<256x16xbf16>
    %c7_52 = arith.constant 7 : index
    %c0_53 = arith.constant 0 : index
    %c0_54 = arith.constant 0 : index
    %104 = vector.load %arg4[%c7_52, %c0_53, %c0_54] : memref<9x16x128xbf16, #tpu.memory_space<vmem>>, vector<1x16x128xbf16>
    %105 = vector.shape_cast %104 : vector<1x16x128xbf16> to vector<16x128xbf16>
    %cst_55 = arith.constant dense<0.000000e+00> : vector<256x128xf32>
    %106 = tpu.matmul %103, %105, %cst_55 {dimension_numbers = #tpu.dot_dimension_numbers<[1], [0], [0], [1], [0, 0, 1, 1], [], []>} : vector<256x16xbf16>, vector<16x128xbf16>, vector<256x128xf32> -> vector<256x128xf32>
    %107 = arith.addf %101, %106 : vector<256x128xf32>
    %c41 = arith.constant 41 : index
    %c0_56 = arith.constant 0 : index
    %108 = vector.load %arg7[%c41, %c0_56] : memref<304x16xf32, #tpu.memory_space<vmem>>, vector<256x16xf32>
    %cst_57 = arith.constant 0.000000e+00 : f32
    %109 = vector.shape_cast %40 : vector<256x1xi1> to vector<256x1xi1>
    %110 = vector.broadcast %109 : vector<256x1xi1> to vector<256x16xi1>
    %111 = vector.broadcast %cst_57 : f32 to vector<256x16xf32>
    %112 = arith.select %110, %108, %111 : vector<256x16xi1>, vector<256x16xf32>
    %113 = arith.truncf %112 : vector<256x16xf32> to vector<256x16xbf16>
    %c8_58 = arith.constant 8 : index
    %c0_59 = arith.constant 0 : index
    %c0_60 = arith.constant 0 : index
    %114 = vector.load %arg4[%c8_58, %c0_59, %c0_60] : memref<9x16x128xbf16, #tpu.memory_space<vmem>>, vector<1x16x128xbf16>
    %115 = vector.shape_cast %114 : vector<1x16x128xbf16> to vector<16x128xbf16>
    %cst_61 = arith.constant dense<0.000000e+00> : vector<256x128xf32>
    %116 = tpu.matmul %113, %115, %cst_61 {dimension_numbers = #tpu.dot_dimension_numbers<[1], [0], [0], [1], [0, 0, 1, 1], [], []>} : vector<256x16xbf16>, vector<16x128xbf16>, vector<256x128xf32> -> vector<256x128xf32>
    %117 = arith.addf %107, %116 : vector<256x128xf32>
    %c0_62 = arith.constant 0 : index
    %c0_63 = arith.constant 0 : index
    %118 = vector.load %arg5[%c0_62, %c0_63] : memref<1x128xf32, #tpu.memory_space<vmem>>, vector<1x128xf32>
    %119 = vector.broadcast %118 : vector<1x128xf32> to vector<256x128xf32>
    %120 = arith.addf %117, %119 : vector<256x128xf32>
    %cst_64 = arith.constant 0.000000e+00 : f32
    %121 = vector.broadcast %cst_64 : f32 to vector<256x128xf32>
    %122 = arith.subf %121, %120 : vector<256x128xf32>
    %123 = math.exp %122 : vector<256x128xf32>
    %cst_65 = arith.constant 1.000000e+00 : f32
    %124 = vector.broadcast %cst_65 : f32 to vector<256x128xf32>
    %125 = arith.addf %124, %123 : vector<256x128xf32>
    %126 = tpu.reciprocal %125 {approx = true} : vector<256x128xf32> -> vector<256x128xf32>
    %127 = arith.mulf %120, %126 : vector<256x128xf32>
    %128 = arith.addf %127, %4 : vector<256x128xf32>
    %c0_66 = arith.constant 0 : index
    %c0_67 = arith.constant 0 : index
    %c0_68 = arith.constant 0 : index
    %129 = vector.load %arg6[%c0_66, %c0_67, %c0_68] : memref<1x256x128xf32, #tpu.memory_space<vmem>>, vector<1x256x128xf32>
    %130 = vector.shape_cast %129 : vector<1x256x128xf32> to vector<256x128xf32>
    %131 = vector.shape_cast %128 : vector<256x128xf32> to vector<1x256x128xf32>
    tpu.vector_store %arg6[%c0_66, %c0_67, %c0_68], %131 {strides = array<i32>} : memref<1x256x128xf32, #tpu.memory_space<vmem>>, vector<1x256x128xf32>,
    return
  }
  func.func @transform_0(%arg0: i32) -> (i32, i32, i32) {
    %c0_i32 = arith.constant 0 : i32
    %c0_i32_0 = arith.constant 0 : i32
    %c0_i32_1 = arith.constant 0 : i32
    return %arg0, %c0_i32, %c0_i32_0 : i32, i32, i32
  }
  func.func @transform_1(%arg0: i32) -> (i32, i32) {
    %c0_i32 = arith.constant 0 : i32
    %c0_i32_0 = arith.constant 0 : i32
    %c0_i32_1 = arith.constant 0 : i32
    return %c0_i32, %c0_i32_0 : i32, i32
  }
  func.func @transform_2(%arg0: i32) -> (i32, i32) {
    %c0_i32 = arith.constant 0 : i32
    %c0_i32_0 = arith.constant 0 : i32
    %c0_i32_1 = arith.constant 0 : i32
    return %c0_i32, %c0_i32_0 : i32, i32
  }
  func.func @transform_3(%arg0: i32) -> (i32, i32, i32) {
    %c0_i32 = arith.constant 0 : i32
    %c0_i32_0 = arith.constant 0 : i32
    %c0_i32_1 = arith.constant 0 : i32
    %c0_i32_2 = arith.constant 0 : i32
    return %c0_i32, %c0_i32_0, %c0_i32_1 : i32, i32, i32
  }
  func.func @transform_4(%arg0: i32) -> (i32, i32) {
    %c0_i32 = arith.constant 0 : i32
    %c0_i32_0 = arith.constant 0 : i32
    %c0_i32_1 = arith.constant 0 : i32
    return %c0_i32, %c0_i32_0 : i32, i32
  }
  func.func @transform_5(%arg0: i32) -> (i32, i32, i32) {
    %c0_i32 = arith.constant 0 : i32
    %c0_i32_0 = arith.constant 0 : i32
    %c0_i32_1 = arith.constant 0 : i32
    return %arg0, %c0_i32, %c0_i32_0 : i32, i32, i32
  }
}

</mosaic_0001>

<llo_original>
// kernel: bottleneck_forward.1
$region0: #{bottleneck_forward.1}
  #allocation0 [shape = 'u32[]', space=smem, size = 0x4, offset = 0x4, fixed_abs, tag = 'smem constant byte address 0x4 - core index']
  #allocation1 [shape = 'u32[72,128]{1,0:T(1,128)}', space=vmem, size = 0x9000, scoped, tag = 'internal scratch']
  #allocation2 [shape = 'f32[304,16]{1,0:T(8,128)}', space=vmem, size = 0x26000, scoped, tag = 'scratch operand']
  %s0 = inlined_call_operand.vmem [shape: f32[2,256,128], index: 0, kind: input, shape index: {}]
  %s1 = inlined_call_operand.vmem [shape: bf16[128,16], index: 1, kind: input, shape index: {}]
  %s2 = inlined_call_operand.vmem [shape: f32[1,16], index: 2, kind: input, shape index: {}]
  %s3 = inlined_call_operand.vmem [shape: bf16[9,16,128], index: 3, kind: input, shape index: {}]
  %s4 = inlined_call_operand.vmem [shape: f32[1,128], index: 4, kind: input, shape index: {}]
  %s5 = inlined_call_operand.hbm [shape: f32[2,256,128], index: 5, kind: output, shape index: {}]
  %s6 = sld [smem:[#allocation0]]
  $region53: #{bottleneck_forward.1} parent=0
    _
  %s8 = ssub.s32 1, %s6
  %s9 = scalar_select 0, %s8, %s6
  $region1: #{bottleneck_forward.1} parent=0
    #allocation3 [shape = 'u8[262144]{0}', space=vmem, size = 0x40000, scoped, tag = 'output window, operand 0']
    #allocation4 [shape = 's32[2]{0}', space=sflag, size = 0x8, scoped, tag = 'scoped memory for bottleneck_forward.1']
    %10 = vsyncpa [#allocation4], 0
    %s11 = scalar_lea.sflag [#allocation4], 1
    %12 = vsyncpa %s11, 0
    loop: start=0, step=1, limit=4
    $region2: #{bottleneck_forward.1} parent=1 // loop_pre_header
      _
    $region3: #{bottleneck_forward.1} parent=1 // loop_header
      %s14 = sphi 0, %s18
      %p15 = scmp.ge.s32.totalorder %s14, 4
      %s24 = sphi 0, %s26
      %s27 = sphi 0, %s24
      %s28 = sphi 0, %s27
      %s44 = sphi 0, %s28
      %s48 = sphi 0, %s48
      %s50 = sphi 0, %s48
      %s51 = sphi 0, %s50
      %s65 = sphi 0, %s51
      %s69 = sphi 0, %s69
      %s71 = sphi 0, %s69
      %s72 = sphi 0, %s71
      %s86 = sphi 0, %s72
      %s90 = sphi 0, %s90
      %s92 = sphi 0, %s90
      %s93 = sphi 0, %s92
      %s107 = sphi 0, %s93
      %s111 = sphi 0, %s111
      %s113 = sphi 0, %s111
      %s114 = sphi 0, %s113
      %s128 = sphi 0, %s114
      %s134 = sphi 0, %s136
      %s137 = sphi 0, %s134
      %s138 = sphi 0, %s137
      %s154 = sphi 0, %s138
    $region4: #{bottleneck_forward.1} parent=1 // loop_header_branch
      %17 = sbr.rel (%p15) target = $region8
    $region5: #{bottleneck_forward.1} parent=1 // loop_body
      %s19 = ssub.s32 %s14, 1
      %s20 = ssub.s32 %s14, 2
      %s21 = sadd.s32 %s14, 1
      %s22 = ssub.s32 %s14, %s21
      %p23 = scmp.eq.s32.totalorder %s22, 0
      %s25 = sadd.s32 %s24, 1
      %s26 = scalar_select %p23, %s24, %s25
      %p29 = pneg %p23
      %p30 = scmp.eq.s32.totalorder %s14, 1
      %p31 = por %p29, %p30
      %p32 = scmp.ne.s32.totalorder %s24, %s27
      %p33 = scmp.eq.s32.totalorder %s14, 0
      %p34 = por %p32, %p33
      %p35 = scmp.ne.s32.totalorder %s24, %s27
      %p36 = scmp.eq.s32.totalorder %s19, 1
      %p37 = por %p35, %p36
      %p38 = scmp.ne.s32.totalorder %s27, %s28
      %p39 = scmp.eq.s32.totalorder %s19, 0
      %p40 = por %p38, %p39
      %p41 = scmp.ne.s32.totalorder %s27, %s28
      %p42 = scmp.eq.s32.totalorder %s20, 1
      %p43 = por %p41, %p42
      %p45 = scmp.ne.s32.totalorder %s28, %s44
      %p46 = scmp.eq.s32.totalorder %s20, 0
      %p47 = por %p45, %p46
      %s49 = sadd.s32 %s48, 1
      %p52 = scmp.eq.s32.totalorder %s14, 1
      %p53 = scmp.ne.s32.totalorder %s48, %s50
      %p54 = scmp.eq.s32.totalorder %s14, 0
      %p55 = por %p53, %p54
      %p56 = scmp.ne.s32.totalorder %s48, %s50
      %p57 = scmp.eq.s32.totalorder %s19, 1
      %p58 = por %p56, %p57
      %p59 = scmp.ne.s32.totalorder %s50, %s51
      %p60 = scmp.eq.s32.totalorder %s19, 0
      %p61 = por %p59, %p60
      %p62 = scmp.ne.s32.totalorder %s50, %s51
      %p63 = scmp.eq.s32.totalorder %s20, 1
      %p64 = por %p62, %p63
      %p66 = scmp.ne.s32.totalorder %s51, %s65
      %p67 = scmp.eq.s32.totalorder %s20, 0
      %p68 = por %p66, %p67
      %s70 = sadd.s32 %s69, 1
      %p73 = scmp.eq.s32.totalorder %s14, 1
      %p74 = scmp.ne.s32.totalorder %s69, %s71
      %p75 = scmp.eq.s32.totalorder %s14, 0
      %p76 = por %p74, %p75
      %p77 = scmp.ne.s32.totalorder %s69, %s71
      %p78 = scmp.eq.s32.totalorder %s19, 1
      %p79 = por %p77, %p78
      %p80 = scmp.ne.s32.totalorder %s71, %s72
      %p81 = scmp.eq.s32.totalorder %s19, 0
      %p82 = por %p80, %p81
      %p83 = scmp.ne.s32.totalorder %s71, %s72
      %p84 = scmp.eq.s32.totalorder %s20, 1
      %p85 = por %p83, %p84
      %p87 = scmp.ne.s32.totalorder %s72, %s86
      %p88 = scmp.eq.s32.totalorder %s20, 0
      %p89 = por %p87, %p88
      %s91 = sadd.s32 %s90, 1
      %p94 = scmp.eq.s32.totalorder %s14, 1
      %p95 = scmp.ne.s32.totalorder %s90, %s92
      %p96 = scmp.eq.s32.totalorder %s14, 0
      %p97 = por %p95, %p96
      %p98 = scmp.ne.s32.totalorder %s90, %s92
      %p99 = scmp.eq.s32.totalorder %s19, 1
      %p100 = por %p98, %p99
      %p101 = scmp.ne.s32.totalorder %s92, %s93
      %p102 = scmp.eq.s32.totalorder %s19, 0
      %p103 = por %p101, %p102
      %p104 = scmp.ne.s32.totalorder %s92, %s93
      %p105 = scmp.eq.s32.totalorder %s20, 1
      %p106 = por %p104, %p105
      %p108 = scmp.ne.s32.totalorder %s93, %s107
      %p109 = scmp.eq.s32.totalorder %s20, 0
      %p110 = por %p108, %p109
      %s112 = sadd.s32 %s111, 1
      %p115 = scmp.eq.s32.totalorder %s14, 1
      %p116 = scmp.ne.s32.totalorder %s111, %s113
      %p117 = scmp.eq.s32.totalorder %s14, 0
      %p118 = por %p116, %p117
      %p119 = scmp.ne.s32.totalorder %s111, %s113
      %p120 = scmp.eq.s32.totalorder %s19, 1
      %p121 = por %p119, %p120
      %p122 = scmp.ne.s32.totalorder %s113, %s114
      %p123 = scmp.eq.s32.totalorder %s19, 0
      %p124 = por %p122, %p123
      %p125 = scmp.ne.s32.totalorder %s113, %s114
      %p126 = scmp.eq.s32.totalorder %s20, 1
      %p127 = por %p125, %p126
      %p129 = scmp.ne.s32.totalorder %s114, %s128
      %p130 = scmp.eq.s32.totalorder %s20, 0
      %p131 = por %p129, %p130
      %s132 = ssub.s32 %s14, %s21
      %p133 = scmp.eq.s32.totalorder %s132, 0
      %s135 = sadd.s32 %s134, 1
      %s136 = scalar_select %p133, %s134, %s135
      %p139 = pneg %p133
      %p140 = scmp.eq.s32.totalorder %s14, 1
      %p141 = por %p139, %p140
      %p142 = scmp.ne.s32.totalorder %s134, %s137
      %p143 = scmp.eq.s32.totalorder %s14, 0
      %p144 = por %p142, %p143
      %p145 = scmp.ne.s32.totalorder %s134, %s137
      %p146 = scmp.eq.s32.totalorder %s19, 1
      %p147 = por %p145, %p146
      %p148 = scmp.ne.s32.totalorder %s137, %s138
      %p149 = scmp.eq.s32.totalorder %s19, 0
      %p150 = por %p148, %p149
      %p151 = scmp.ne.s32.totalorder %s137, %s138
      %p152 = scmp.eq.s32.totalorder %s20, 1
      %p153 = por %p151, %p152
      %p155 = scmp.ne.s32.totalorder %s138, %s154
      %p156 = scmp.eq.s32.totalorder %s20, 0
      %p157 = por %p155, %p156
      %p158 = scmp.le.s32.totalorder 1, %s14
      %p159 = scmp.lt.s32.totalorder %s14, 3
      %p160 = pnand %p158, %p159
      %p161 = pneg %p160
      // Predicated region
      $region9: #{bottleneck_forward.1} parent=5 // pred_check
        _
      $region10: #{bottleneck_forward.1} parent=5 // pred_check_branch
        %163 = sbr.rel (%p160) target = $region12
      $region11: #{bottleneck_forward.1} parent=5 // pred_region
        %s164 = ssub.s32 %s14, 1
        // Predicated region
        $region13: #{bottleneck_forward.1} parent=11 // pred_check
          %p165 = pneg %p61
        $region14: #{bottleneck_forward.1} parent=11 // pred_check_branch
          %167 = sbr.rel (%p165) target = $region16
        $region15: #{bottleneck_forward.1} parent=11 // pred_region
          _
        $region16: #{bottleneck_forward.1} parent=11 // pred_fallthru
          _
        // Predicated region
        $region17: #{bottleneck_forward.1} parent=11 // pred_check
          %p168 = pneg %p82
        $region18: #{bottleneck_forward.1} parent=11 // pred_check_branch
          %170 = sbr.rel (%p168) target = $region20
        $region19: #{bottleneck_forward.1} parent=11 // pred_region
          _
        $region20: #{bottleneck_forward.1} parent=11 // pred_fallthru
          _
        // Predicated region
        $region21: #{bottleneck_forward.1} parent=11 // pred_check
          %p171 = pneg %p103
        $region22: #{bottleneck_forward.1} parent=11 // pred_check_branch
          %173 = sbr.rel (%p171) target = $region24
        $region23: #{bottleneck_forward.1} parent=11 // pred_region
          _
        $region24: #{bottleneck_forward.1} parent=11 // pred_fallthru
          _
        // Predicated region
        $region25: #{bottleneck_forward.1} parent=11 // pred_check
          %p174 = pneg %p124
        $region26: #{bottleneck_forward.1} parent=11 // pred_check_branch
          %176 = sbr.rel (%p174) target = $region28
        $region27: #{bottleneck_forward.1} parent=11 // pred_region
          _
        $region28: #{bottleneck_forward.1} parent=11 // pred_fallthru
          _
      $region12: #{bottleneck_forward.1} parent=5 // pred_fallthru
        _
      %p177 = scmp.lt.s32.totalorder %s14, 2
      // Predicated region
      $region29: #{bottleneck_forward.1} parent=5 // pred_check
        %p178 = pneg %p177
      $region30: #{bottleneck_forward.1} parent=5 // pred_check_branch
        %180 = sbr.rel (%p178) target = $region32
      $region31: #{bottleneck_forward.1} parent=5 // pred_region
        // Predicated region
        $region33: #{bottleneck_forward.1} parent=31 // pred_check
          %p181 = pneg %p34
        $region34: #{bottleneck_forward.1} parent=31 // pred_check_branch
          %183 = sbr.rel (%p181) target = $region36
        $region35: #{bottleneck_forward.1} parent=31 // pred_region
          %p184 = scmp.lt.s32.totalorder %s14, 1
          %s185 = scalar_select %p184, %s14, 1
          %s186 = smul.addr %s185, 32
          %s187 = smul.addr %s186, 8
          %s188 = scalar_lea.vmem %s0, %s187
        $region36: #{bottleneck_forward.1} parent=31 // pred_fallthru
          _
      $region32: #{bottleneck_forward.1} parent=5 // pred_fallthru
        _
      %p189 = scmp.le.s32.totalorder 1, %s14
      %p190 = scmp.lt.s32.totalorder %s14, 3
      %p191 = pnand %p189, %p190
      %p192 = pneg %p191
      // Predicated region
      $region37: #{bottleneck_forward.1} parent=5 // pred_check
        _
      $region38: #{bottleneck_forward.1} parent=5 // pred_check_branch
        %194 = sbr.rel (%p191) target = $region40
      $region39: #{bottleneck_forward.1} parent=5 // pred_region
        %s195 = ssub.s32 %s14, 1
        %p196 = scmp.lt.s32.totalorder %s19, 1
        %s197 = scalar_select %p196, %s19, 1
        %s198 = smul.addr %s197, 32
        %s199 = smul.addr %s198, 8
        %s200 = scalar_lea.vmem %s0, %s199
        %p201 = pneg %p40
        %p202 = pneg %p37
        %p203 = pneg %p61
        %p204 = pneg %p58
        %p205 = pneg %p82
        %p206 = pneg %p79
        %p207 = pneg %p103
        %p208 = pneg %p100
        %p209 = pneg %p124
        %p210 = pneg %p121
        %p211 = pneg %p150
        %p212 = pneg %p147
        %s213 = sand.u32 %s137, 1
        %s214 = scalar_lea.sflag [#allocation4], %s213
        %s215 = sand.u32 %s137, 1
        %s216 = smul.addr %s215, 256
        %s217 = scalar_lea.vmem [#allocation3], %s216
        %p218 = scmp.lt.s32.totalorder %s19, 1
        %s219 = scalar_select %p218, %s19, 1
        %s220 = smul.addr %s219, 32
        %s221 = smul.addr %s220, 8
        %s222 = scalar_lea.vmem %s0, %s221
        %vm224 = vcmask 130048
        %225 = vst.msk [vmem:[#allocation2] sm:$0xff] %vm224, 0.0
        %226 = vst.msk [vmem:[#allocation2 + $0x8] sm:$0xff] %vm224, 0.0
        %227 = vst.msk [vmem:[#allocation2 + $0x10] sm:$0xff] %vm224, 0.0
        %228 = vst.msk [vmem:[#allocation2 + $0x118] sm:$0xff] %vm224, 0.0
        %229 = vst.msk [vmem:[#allocation2 + $0x120] sm:$0xff] %vm224, 0.0
        %230 = vst.msk [vmem:[#allocation2 + $0x128] sm:$0xff] %vm224, 0.0
        %v231 = vld [vmem:[%s222] sm:$0xff]
        %v232 = vld [vmem:[%s222 + $0x8] sm:$0xff]
        %v233 = vld [vmem:[%s222 + $0x10] sm:$0xff]
        %v234 = vld [vmem:[%s222 + $0x18] sm:$0xff]
        %v235 = vld [vmem:[%s222 + $0x20] sm:$0xff]
        %v236 = vld [vmem:[%s222 + $0x28] sm:$0xff]
        %v237 = vld [vmem:[%s222 + $0x30] sm:$0xff]
        %v238 = vld [vmem:[%s222 + $0x38] sm:$0xff]
        %v239 = vld [vmem:[%s222 + $0x40] sm:$0xff]
        %v240 = vld [vmem:[%s222 + $0x48] sm:$0xff]
        %v241 = vld [vmem:[%s222 + $0x50] sm:$0xff]
        %v242 = vld [vmem:[%s222 + $0x58] sm:$0xff]
        %v243 = vld [vmem:[%s222 + $0x60] sm:$0xff]
        %v244 = vld [vmem:[%s222 + $0x68] sm:$0xff]
        %v245 = vld [vmem:[%s222 + $0x70] sm:$0xff]
        %v246 = vld [vmem:[%s222 + $0x78] sm:$0xff]
        %v247 = vld [vmem:[%s222 + $0x80] sm:$0xff]
        %v248 = vld [vmem:[%s222 + $0x88] sm:$0xff]
        %v249 = vld [vmem:[%s222 + $0x90] sm:$0xff]
        %v250 = vld [vmem:[%s222 + $0x98] sm:$0xff]
        %v251 = vld [vmem:[%s222 + $0xa0] sm:$0xff]
        %v252 = vld [vmem:[%s222 + $0xa8] sm:$0xff]
        %v253 = vld [vmem:[%s222 + $0xb0] sm:$0xff]
        %v254 = vld [vmem:[%s222 + $0xb8] sm:$0xff]
        %v255 = vld [vmem:[%s222 + $0xc0] sm:$0xff]
        %v256 = vld [vmem:[%s222 + $0xc8] sm:$0xff]
        %v257 = vld [vmem:[%s222 + $0xd0] sm:$0xff]
        %v258 = vld [vmem:[%s222 + $0xd8] sm:$0xff]
        %v259 = vld [vmem:[%s222 + $0xe0] sm:$0xff]
        %v260 = vld [vmem:[%s222 + $0xe8] sm:$0xff]
        %v261 = vld [vmem:[%s222 + $0xf0] sm:$0xff]
        %v262 = vld [vmem:[%s222 + $0xf8] sm:$0xff]
        %v263 = vpack.c.bf16 %v232, %v231
        %v264 = vpack.c.bf16 %v234, %v233
        %v265 = vpack.c.bf16 %v236, %v235
        %v266 = vpack.c.bf16 %v238, %v237
        %v267 = vpack.c.bf16 %v240, %v239
        %v268 = vpack.c.bf16 %v242, %v241
        %v269 = vpack.c.bf16 %v244, %v243
        %v270 = vpack.c.bf16 %v246, %v245
        %v271 = vpack.c.bf16 %v248, %v247
        %v272 = vpack.c.bf16 %v250, %v249
        %v273 = vpack.c.bf16 %v252, %v251
        %v274 = vpack.c.bf16 %v254, %v253
        %v275 = vpack.c.bf16 %v256, %v255
        %v276 = vpack.c.bf16 %v258, %v257
        %v277 = vpack.c.bf16 %v260, %v259
        %v278 = vpack.c.bf16 %v262, %v261
        %v279 = vld [vmem:[%s1] sm:$0xf]
        %v280 = vld [vmem:[%s1 + $0x4] sm:$0xf]
        %v281 = vld [vmem:[%s1 + $0x8] sm:$0xf]
        %v282 = vld [vmem:[%s1 + $0xc] sm:$0xf]
        %v283 = vld [vmem:[%s1 + $0x10] sm:$0xf]
        %v284 = vld [vmem:[%s1 + $0x14] sm:$0xf]
        %v285 = vld [vmem:[%s1 + $0x18] sm:$0xf]
        %v286 = vld [vmem:[%s1 + $0x1c] sm:$0xf]
        %v287 = vld [vmem:[%s1 + $0x20] sm:$0xf]
        %v288 = vld [vmem:[%s1 + $0x24] sm:$0xf]
        %v289 = vld [vmem:[%s1 + $0x28] sm:$0xf]
        %v290 = vld [vmem:[%s1 + $0x2c] sm:$0xf]
        %v291 = vld [vmem:[%s1 + $0x30] sm:$0xf]
        %v292 = vld [vmem:[%s1 + $0x34] sm:$0xf]
        %v293 = vld [vmem:[%s1 + $0x38] sm:$0xf]
        %v294 = vld [vmem:[%s1 + $0x3c] sm:$0xf]
        %v295 = vld [vmem:[%s2] sm:$0x1]
        %v297 = vperm.slane %v295, 0
        %v315 = vunpack.c.l.b16 %v279
        %v316 = vunpack.c.l.b16 %v280
        %v317 = vunpack.c.l.b16 %v281
        %v318 = vunpack.c.l.b16 %v282
        %v319 = vunpack.c.l.b16 %v283
        %v320 = vunpack.c.l.b16 %v284
        %v321 = vunpack.c.l.b16 %v285
        %v322 = vunpack.c.l.b16 %v286
        %v323 = vunpack.c.l.b16 %v287
        %v324 = vunpack.c.l.b16 %v288
        %v325 = vunpack.c.l.b16 %v289
        %v326 = vunpack.c.l.b16 %v290
        %v327 = vunpack.c.l.b16 %v291
        %v328 = vunpack.c.l.b16 %v292
        %v329 = vunpack.c.l.b16 %v293
        %v330 = vunpack.c.l.b16 %v294
        %v331 = vpack.c.b16 %v316, %v315
        %v332 = vpack.c.b16 %v318, %v317
        %v333 = vpack.c.b16 %v320, %v319
        %v334 = vpack.c.b16 %v322, %v321
        %v335 = vpack.c.b16 %v324, %v323
        %v336 = vpack.c.b16 %v326, %v325
        %v337 = vpack.c.b16 %v328, %v327
        %v338 = vpack.c.b16 %v330, %v329
        %347 = vmatpush.bf16.msra.mxu0 %v338
        %348 = vmatpush.bf16.msra.mxu0 %v337
        %349 = vmatpush.bf16.msra.mxu0 %v336
        %350 = vmatpush.bf16.msra.mxu0 %v335
        %351 = vmatpush.bf16.msra.mxu0 %v334
        %352 = vmatpush.bf16.msra.mxu0 %v333
        %353 = vmatpush.bf16.msra.mxu0 %v332
        %354 = vmatpush.bf16.msra.mxu0 %v331
        %355 = vmatmul.bf16.gmra.mxu0 %v263
        %v356 = vpop.f32.mrf.mxu0
        %v357 = vadd.f32 %v297, %v356
        %v358 = vpop.f32.mrf.mxu0
        %v359 = vadd.f32 %v297, %v358
        %360 = vmatmul.bf16.gmra.mxu0 %v264
        %v361 = vpop.f32.mrf.mxu0
        %v362 = vadd.f32 %v297, %v361
        %v363 = vpop.f32.mrf.mxu0
        %v364 = vadd.f32 %v297, %v363
        %365 = vmatmul.bf16.gmra.mxu0 %v265
        %v366 = vpop.f32.mrf.mxu0
        %v367 = vadd.f32 %v297, %v366
        %v368 = vpop.f32.mrf.mxu0
        %v369 = vadd.f32 %v297, %v368
        %370 = vmatmul.bf16.gmra.mxu0 %v266
        %v371 = vpop.f32.mrf.mxu0
        %v372 = vadd.f32 %v297, %v371
        %v373 = vpop.f32.mrf.mxu0
        %v374 = vadd.f32 %v297, %v373
        %375 = vmatmul.bf16.gmra.mxu0 %v267
        %v376 = vpop.f32.mrf.mxu0
        %v377 = vadd.f32 %v297, %v376
        %v378 = vpop.f32.mrf.mxu0
        %v379 = vadd.f32 %v297, %v378
        %380 = vmatmul.bf16.gmra.mxu0 %v268
        %v381 = vpop.f32.mrf.mxu0
        %v382 = vadd.f32 %v297, %v381
        %v383 = vpop.f32.mrf.mxu0
        %v384 = vadd.f32 %v297, %v383
        %385 = vmatmul.bf16.gmra.mxu0 %v269
        %v386 = vpop.f32.mrf.mxu0
        %v387 = vadd.f32 %v297, %v386
        %v388 = vpop.f32.mrf.mxu0
        %v389 = vadd.f32 %v297, %v388
        %390 = vmatmul.bf16.gmra.mxu0 %v270
        %v391 = vpop.f32.mrf.mxu0
        %v392 = vadd.f32 %v297, %v391
        %v393 = vpop.f32.mrf.mxu0
        %v394 = vadd.f32 %v297, %v393
        %395 = vmatmul.bf16.gmra.mxu0 %v271
        %v396 = vpop.f32.mrf.mxu0
        %v397 = vadd.f32 %v297, %v396
        %v398 = vpop.f32.mrf.mxu0
        %v399 = vadd.f32 %v297, %v398
        %400 = vmatmul.bf16.gmra.mxu0 %v272
        %v401 = vpop.f32.mrf.mxu0
        %v402 = vadd.f32 %v297, %v401
        %v403 = vpop.f32.mrf.mxu0
        %v404 = vadd.f32 %v297, %v403
        %405 = vmatmul.bf16.gmra.mxu0 %v273
        %v406 = vpop.f32.mrf.mxu0
        %v407 = vadd.f32 %v297, %v406
        %v408 = vpop.f32.mrf.mxu0
        %v409 = vadd.f32 %v297, %v408
        %410 = vmatmul.bf16.gmra.mxu0 %v274
        %v411 = vpop.f32.mrf.mxu0
        %v412 = vadd.f32 %v297, %v411
        %v413 = vpop.f32.mrf.mxu0
        %v414 = vadd.f32 %v297, %v413
        %415 = vmatmul.bf16.gmra.mxu0 %v275
        %v416 = vpop.f32.mrf.mxu0
        %v417 = vadd.f32 %v297, %v416
        %v418 = vpop.f32.mrf.mxu0
        %v419 = vadd.f32 %v297, %v418
        %420 = vmatmul.bf16.gmra.mxu0 %v276
        %v421 = vpop.f32.mrf.mxu0
        %v422 = vadd.f32 %v297, %v421
        %v423 = vpop.f32.mrf.mxu0
        %v424 = vadd.f32 %v297, %v423
        %425 = vmatmul.bf16.gmra.mxu0 %v277
        %v426 = vpop.f32.mrf.mxu0
        %v427 = vadd.f32 %v297, %v426
        %v428 = vpop.f32.mrf.mxu0
        %v429 = vadd.f32 %v297, %v428
        %430 = vmatmul.bf16.gmra.mxu0 %v278
        %v431 = vpop.f32.mrf.mxu0
        %v432 = vadd.f32 %v297, %v431
        %v433 = vpop.f32.mrf.mxu0
        %v434 = vadd.f32 %v297, %v433
        %435 = vdwg.mxu0
        %v436 = vsub.f32 0.0, %v357
        %v437 = vsub.f32 0.0, %v359
        %v438 = vsub.f32 0.0, %v362
        %v439 = vsub.f32 0.0, %v364
        %v440 = vsub.f32 0.0, %v367
        %v441 = vsub.f32 0.0, %v369
        %v442 = vsub.f32 0.0, %v372
        %v443 = vsub.f32 0.0, %v374
        %v444 = vsub.f32 0.0, %v377
        %v445 = vsub.f32 0.0, %v379
        %v446 = vsub.f32 0.0, %v382
        %v447 = vsub.f32 0.0, %v384
        %v448 = vsub.f32 0.0, %v387
        %v449 = vsub.f32 0.0, %v389
        %v450 = vsub.f32 0.0, %v392
        %v451 = vsub.f32 0.0, %v394
        %v452 = vsub.f32 0.0, %v397
        %v453 = vsub.f32 0.0, %v399
        %v454 = vsub.f32 0.0, %v402
        %v455 = vsub.f32 0.0, %v404
        %v456 = vsub.f32 0.0, %v407
        %v457 = vsub.f32 0.0, %v409
        %v458 = vsub.f32 0.0, %v412
        %v459 = vsub.f32 0.0, %v414
        %v460 = vsub.f32 0.0, %v417
        %v461 = vsub.f32 0.0, %v419
        %v462 = vsub.f32 0.0, %v422
        %v463 = vsub.f32 0.0, %v424
        %v464 = vsub.f32 0.0, %v427
        %v465 = vsub.f32 0.0, %v429
        %v466 = vsub.f32 0.0, %v432
        %v467 = vsub.f32 0.0, %v434
        %v468 = vmul.f32 %v436, 1.442695
        %v469 = vpow.pop %v468
        %v470 = vmul.f32 %v437, 1.442695
        %v471 = vpow.pop %v470
        %v472 = vmul.f32 %v438, 1.442695
        %v473 = vpow.pop %v472
        %v474 = vmul.f32 %v439, 1.442695
        %v475 = vpow.pop %v474
        %v476 = vmul.f32 %v440, 1.442695
        %v477 = vpow.pop %v476
        %v478 = vmul.f32 %v441, 1.442695
        %v479 = vpow.pop %v478
        %v480 = vmul.f32 %v442, 1.442695
        %v481 = vpow.pop %v480
        %v482 = vmul.f32 %v443, 1.442695
        %v483 = vpow.pop %v482
        %v484 = vmul.f32 %v444, 1.442695
        %v485 = vpow.pop %v484
        %v486 = vmul.f32 %v445, 1.442695
        %v487 = vpow.pop %v486
        %v488 = vmul.f32 %v446, 1.442695
        %v489 = vpow.pop %v488
        %v490 = vmul.f32 %v447, 1.442695
        %v491 = vpow.pop %v490
        %v492 = vmul.f32 %v448, 1.442695
        %v493 = vpow.pop %v492
        %v494 = vmul.f32 %v449, 1.442695
        %v495 = vpow.pop %v494
        %v496 = vmul.f32 %v450, 1.442695
        %v497 = vpow.pop %v496
        %v498 = vmul.f32 %v451, 1.442695
        %v499 = vpow.pop %v498
        %v500 = vmul.f32 %v452, 1.442695
        %v501 = vpow.pop %v500
        %v502 = vmul.f32 %v453, 1.442695
        %v503 = vpow.pop %v502
        %v504 = vmul.f32 %v454, 1.442695
        %v505 = vpow.pop %v504
        %v506 = vmul.f32 %v455, 1.442695
        %v507 = vpow.pop %v506
        %v508 = vmul.f32 %v456, 1.442695
        %v509 = vpow.pop %v508
        %v510 = vmul.f32 %v457, 1.442695
        %v511 = vpow.pop %v510
        %v512 = vmul.f32 %v458, 1.442695
        %v513 = vpow.pop %v512
        %v514 = vmul.f32 %v459, 1.442695
        %v515 = vpow.pop %v514
        %v516 = vmul.f32 %v460, 1.442695
        %v517 = vpow.pop %v516
        %v518 = vmul.f32 %v461, 1.442695
        %v519 = vpow.pop %v518
        %v520 = vmul.f32 %v462, 1.442695
        %v521 = vpow.pop %v520
        %v522 = vmul.f32 %v463, 1.442695
        %v523 = vpow.pop %v522
        %v524 = vmul.f32 %v464, 1.442695
        %v525 = vpow.pop %v524
        %v526 = vmul.f32 %v465, 1.442695
        %v527 = vpow.pop %v526
        %v528 = vmul.f32 %v466, 1.442695
        %v529 = vpow.pop %v528
        %v530 = vmul.f32 %v467, 1.442695
        %v531 = vpow.pop %v530
        %v532 = vadd.f32 %v469, 1.0
        %v533 = vadd.f32 %v471, 1.0
        %v534 = vadd.f32 %v473, 1.0
        %v535 = vadd.f32 %v475, 1.0
        %v536 = vadd.f32 %v477, 1.0
        %v537 = vadd.f32 %v479, 1.0
        %v538 = vadd.f32 %v481, 1.0
        %v539 = vadd.f32 %v483, 1.0
        %v540 = vadd.f32 %v485, 1.0
        %v541 = vadd.f32 %v487, 1.0
        %v542 = vadd.f32 %v489, 1.0
        %v543 = vadd.f32 %v491, 1.0
        %v544 = vadd.f32 %v493, 1.0
        %v545 = vadd.f32 %v495, 1.0
        %v546 = vadd.f32 %v497, 1.0
        %v547 = vadd.f32 %v499, 1.0
        %v548 = vadd.f32 %v501, 1.0
        %v549 = vadd.f32 %v503, 1.0
        %v550 = vadd.f32 %v505, 1.0
        %v551 = vadd.f32 %v507, 1.0
        %v552 = vadd.f32 %v509, 1.0
        %v553 = vadd.f32 %v511, 1.0
        %v554 = vadd.f32 %v513, 1.0
        %v555 = vadd.f32 %v515, 1.0
        %v556 = vadd.f32 %v517, 1.0
        %v557 = vadd.f32 %v519, 1.0
        %v558 = vadd.f32 %v521, 1.0
        %v559 = vadd.f32 %v523, 1.0
        %v560 = vadd.f32 %v525, 1.0
        %v561 = vadd.f32 %v527, 1.0
        %v562 = vadd.f32 %v529, 1.0
        %v563 = vadd.f32 %v531, 1.0
        %v564 = vrcp.pop %v532
        %v565 = vrcp.pop %v533
        %v566 = vrcp.pop %v534
        %v567 = vrcp.pop %v535
        %v568 = vrcp.pop %v536
        %v569 = vrcp.pop %v537
        %v570 = vrcp.pop %v538
        %v571 = vrcp.pop %v539
        %v572 = vrcp.pop %v540
        %v573 = vrcp.pop %v541
        %v574 = vrcp.pop %v542
        %v575 = vrcp.pop %v543
        %v576 = vrcp.pop %v544
        %v577 = vrcp.pop %v545
        %v578 = vrcp.pop %v546
        %v579 = vrcp.pop %v547
        %v580 = vrcp.pop %v548
        %v581 = vrcp.pop %v549
        %v582 = vrcp.pop %v550
        %v583 = vrcp.pop %v551
        %v584 = vrcp.pop %v552
        %v585 = vrcp.pop %v553
        %v586 = vrcp.pop %v554
        %v587 = vrcp.pop %v555
        %v588 = vrcp.pop %v556
        %v589 = vrcp.pop %v557
        %v590 = vrcp.pop %v558
        %v591 = vrcp.pop %v559
        %v592 = vrcp.pop %v560
        %v593 = vrcp.pop %v561
        %v594 = vrcp.pop %v562
        %v595 = vrcp.pop %v563
        %v596 = vmul.f32 %v357, %v564
        %v597 = vmul.f32 %v359, %v565
        %v598 = vmul.f32 %v362, %v566
        %v599 = vmul.f32 %v364, %v567
        %v600 = vmul.f32 %v367, %v568
        %v601 = vmul.f32 %v369, %v569
        %v602 = vmul.f32 %v372, %v570
        %v603 = vmul.f32 %v374, %v571
        %v604 = vmul.f32 %v377, %v572
        %v605 = vmul.f32 %v379, %v573
        %v606 = vmul.f32 %v382, %v574
        %v607 = vmul.f32 %v384, %v575
        %v608 = vmul.f32 %v387, %v576
        %v609 = vmul.f32 %v389, %v577
        %v610 = vmul.f32 %v392, %v578
        %v611 = vmul.f32 %v394, %v579
        %v612 = vmul.f32 %v397, %v580
        %v613 = vmul.f32 %v399, %v581
        %v614 = vmul.f32 %v402, %v582
        %v615 = vmul.f32 %v404, %v583
        %v616 = vmul.f32 %v407, %v584
        %v617 = vmul.f32 %v409, %v585
        %v618 = vmul.f32 %v412, %v586
        %v619 = vmul.f32 %v414, %v587
        %v620 = vmul.f32 %v417, %v588
        %v621 = vmul.f32 %v419, %v589
        %v622 = vmul.f32 %v422, %v590
        %v623 = vmul.f32 %v424, %v591
        %v624 = vmul.f32 %v427, %v592
        %v625 = vmul.f32 %v429, %v593
        %v626 = vmul.f32 %v432, %v594
        %v627 = vmul.f32 %v434, %v595
        %628 = vst.msk [vmem:[#allocation2 + $0x18] sm:$0xff] %vm224, %v596
        %629 = vst.msk [vmem:[#allocation2 + $0x20] sm:$0xff] %vm224, %v597
        %630 = vst.msk [vmem:[#allocation2 + $0x28] sm:$0xff] %vm224, %v598
        %631 = vst.msk [vmem:[#allocation2 + $0x30] sm:$0xff] %vm224, %v599
        %632 = vst.msk [vmem:[#allocation2 + $0x38] sm:$0xff] %vm224, %v600
        %633 = vst.msk [vmem:[#allocation2 + $0x40] sm:$0xff] %vm224, %v601
        %634 = vst.msk [vmem:[#allocation2 + $0x48] sm:$0xff] %vm224, %v602
        %635 = vst.msk [vmem:[#allocation2 + $0x50] sm:$0xff] %vm224, %v603
        %636 = vst.msk [vmem:[#allocation2 + $0x58] sm:$0xff] %vm224, %v604
        %637 = vst.msk [vmem:[#allocation2 + $0x60] sm:$0xff] %vm224, %v605
        %638 = vst.msk [vmem:[#allocation2 + $0x68] sm:$0xff] %vm224, %v606
        %639 = vst.msk [vmem:[#allocation2 + $0x70] sm:$0xff] %vm224, %v607
        %640 = vst.msk [vmem:[#allocation2 + $0x78] sm:$0xff] %vm224, %v608
        %641 = vst.msk [vmem:[#allocation2 + $0x80] sm:$0xff] %vm224, %v609
        %642 = vst.msk [vmem:[#allocation2 + $0x88] sm:$0xff] %vm224, %v610
        %643 = vst.msk [vmem:[#allocation2 + $0x90] sm:$0xff] %vm224, %v611
        %644 = vst.msk [vmem:[#allocation2 + $0x98] sm:$0xff] %vm224, %v612
        %645 = vst.msk [vmem:[#allocation2 + $0xa0] sm:$0xff] %vm224, %v613
        %646 = vst.msk [vmem:[#allocation2 + $0xa8] sm:$0xff] %vm224, %v614
        %647 = vst.msk [vmem:[#allocation2 + $0xb0] sm:$0xff] %vm224, %v615
        %648 = vst.msk [vmem:[#allocation2 + $0xb8] sm:$0xff] %vm224, %v616
        %649 = vst.msk [vmem:[#allocation2 + $0xc0] sm:$0xff] %vm224, %v617
        %650 = vst.msk [vmem:[#allocation2 + $0xc8] sm:$0xff] %vm224, %v618
        %651 = vst.msk [vmem:[#allocation2 + $0xd0] sm:$0xff] %vm224, %v619
        %652 = vst.msk [vmem:[#allocation2 + $0xd8] sm:$0xff] %vm224, %v620
        %653 = vst.msk [vmem:[#allocation2 + $0xe0] sm:$0xff] %vm224, %v621
        %654 = vst.msk [vmem:[#allocation2 + $0xe8] sm:$0xff] %vm224, %v622
        %655 = vst.msk [vmem:[#allocation2 + $0xf0] sm:$0xff] %vm224, %v623
        %656 = vst.msk [vmem:[#allocation2 + $0xf8] sm:$0xff] %vm224, %v624
        %657 = vst.msk [vmem:[#allocation2 + $0x100] sm:$0xff] %vm224, %v625
        %658 = vst.msk [vmem:[#allocation2 + $0x108] sm:$0xff] %vm224, %v626
        %659 = vst.msk [vmem:[#allocation2 + $0x110] sm:$0xff] %vm224, %v627
        %v660 = vpack.c.bf16 %v597, %v596
        %v661 = vpack.c.bf16 %v599, %v598
        %v662 = vpack.c.bf16 %v601, %v600
        %v663 = vpack.c.bf16 %v603, %v602
        %v664 = vpack.c.bf16 %v605, %v604
        %v665 = vpack.c.bf16 %v607, %v606
        %v666 = vpack.c.bf16 %v609, %v608
        %v667 = vpack.c.bf16 %v611, %v610
        %v668 = vpack.c.bf16 %v613, %v612
        %v669 = vpack.c.bf16 %v615, %v614
        %v670 = vpack.c.bf16 %v617, %v616
        %v671 = vpack.c.bf16 %v619, %v618
        %v672 = vpack.c.bf16 %v621, %v620
        %v673 = vpack.c.bf16 %v623, %v622
        %v674 = vpack.c.bf16 %v625, %v624
        %v675 = vpack.c.bf16 %v627, %v626
        %v676 = vlaneseq
        %v677 = vshrl.u32 %v676, 7
        %v678 = vadd.s32 %v677, 8
        %v679 = vadd.s32 %v677, 16
        %v680 = vadd.s32 %v677, 24
        %v681 = vadd.s32 %v677, 32
        %v682 = vadd.s32 %v677, 40
        %v683 = vadd.s32 %v677, 48
        %v684 = vadd.s32 %v677, 56
        %v685 = vadd.s32 %v677, 64
        %v686 = vadd.s32 %v677, 72
        %v687 = vadd.s32 %v677, 80
        %v688 = vadd.s32 %v677, 88
        %v689 = vadd.s32 %v677, 96
        %v690 = vadd.s32 %v677, 104
        %v691 = vadd.s32 %v677, 112
        %v692 = vadd.s32 %v677, 120
        %v693 = vadd.s32 %v677, 128
        %v694 = vadd.s32 %v677, 136
        %v695 = vadd.s32 %v677, 144
        %v696 = vadd.s32 %v677, 152
        %v697 = vadd.s32 %v677, 160
        %v698 = vadd.s32 %v677, 168
        %v699 = vadd.s32 %v677, 176
        %v700 = vadd.s32 %v677, 184
        %v701 = vadd.s32 %v677, 192
        %v702 = vadd.s32 %v677, 200
        %v703 = vadd.s32 %v677, 208
        %v704 = vadd.s32 %v677, 216
        %v705 = vadd.s32 %v677, 224
        %v706 = vadd.s32 %v677, 232
        %v707 = vadd.s32 %v677, 240
        %v708 = vadd.s32 %v677, 248
        %vm709 = vcmp.lt.s32.totalorder %v677, 0
        %v710 = vsub.s32 0, %v677
        %v711 = vsel %vm709, %v710, %v677
        %v712 = vshrl.u32 %v711, 4
        %v713 = vand.u32 %v711, 15
        %v714 = vsub.s32 0, %v713
        %v715 = vsel %vm709, %v714, %v713
        %vm716 = vcmp.lt.s32.totalorder %v678, 0
        %v717 = vsub.s32 0, %v678
        %v718 = vsel %vm716, %v717, %v678
        %v719 = vshrl.u32 %v718, 4
        %v720 = vand.u32 %v718, 15
        %v721 = vsub.s32 0, %v720
        %v722 = vsel %vm716, %v721, %v720
        %vm723 = vcmp.lt.s32.totalorder %v679, 0
        %v724 = vsub.s32 0, %v679
        %v725 = vsel %vm723, %v724, %v679
        %v726 = vshrl.u32 %v725, 4
        %v727 = vand.u32 %v725, 15
        %v728 = vsub.s32 0, %v727
        %v729 = vsel %vm723, %v728, %v727
        %vm730 = vcmp.lt.s32.totalorder %v680, 0
        %v731 = vsub.s32 0, %v680
        %v732 = vsel %vm730, %v731, %v680
        %v733 = vshrl.u32 %v732, 4
        %v734 = vand.u32 %v732, 15
        %v735 = vsub.s32 0, %v734
        %v736 = vsel %vm730, %v735, %v734
        %vm737 = vcmp.lt.s32.totalorder %v681, 0
        %v738 = vsub.s32 0, %v681
        %v739 = vsel %vm737, %v738, %v681
        %v740 = vshrl.u32 %v739, 4
        %v741 = vand.u32 %v739, 15
        %v742 = vsub.s32 0, %v741
        %v743 = vsel %vm737, %v742, %v741
        %vm744 = vcmp.lt.s32.totalorder %v682, 0
        %v745 = vsub.s32 0, %v682
        %v746 = vsel %vm744, %v745, %v682
        %v747 = vshrl.u32 %v746, 4
        %v748 = vand.u32 %v746, 15
        %v749 = vsub.s32 0, %v748
        %v750 = vsel %vm744, %v749, %v748
        %vm751 = vcmp.lt.s32.totalorder %v683, 0
        %v752 = vsub.s32 0, %v683
        %v753 = vsel %vm751, %v752, %v683
        %v754 = vshrl.u32 %v753, 4
        %v755 = vand.u32 %v753, 15
        %v756 = vsub.s32 0, %v755
        %v757 = vsel %vm751, %v756, %v755
        %vm758 = vcmp.lt.s32.totalorder %v684, 0
        %v759 = vsub.s32 0, %v684
        %v760 = vsel %vm758, %v759, %v684
        %v761 = vshrl.u32 %v760, 4
        %v762 = vand.u32 %v760, 15
        %v763 = vsub.s32 0, %v762
        %v764 = vsel %vm758, %v763, %v762
        %vm765 = vcmp.lt.s32.totalorder %v685, 0
        %v766 = vsub.s32 0, %v685
        %v767 = vsel %vm765, %v766, %v685
        %v768 = vshrl.u32 %v767, 4
        %v769 = vand.u32 %v767, 15
        %v770 = vsub.s32 0, %v769
        %v771 = vsel %vm765, %v770, %v769
        %vm772 = vcmp.lt.s32.totalorder %v686, 0
        %v773 = vsub.s32 0, %v686
        %v774 = vsel %vm772, %v773, %v686
        %v775 = vshrl.u32 %v774, 4
        %v776 = vand.u32 %v774, 15
        %v777 = vsub.s32 0, %v776
        %v778 = vsel %vm772, %v777, %v776
        %vm779 = vcmp.lt.s32.totalorder %v687, 0
        %v780 = vsub.s32 0, %v687
        %v781 = vsel %vm779, %v780, %v687
        %v782 = vshrl.u32 %v781, 4
        %v783 = vand.u32 %v781, 15
        %v784 = vsub.s32 0, %v783
        %v785 = vsel %vm779, %v784, %v783
        %vm786 = vcmp.lt.s32.totalorder %v688, 0
        %v787 = vsub.s32 0, %v688
        %v788 = vsel %vm786, %v787, %v688
        %v789 = vshrl.u32 %v788, 4
        %v790 = vand.u32 %v788, 15
        %v791 = vsub.s32 0, %v790
        %v792 = vsel %vm786, %v791, %v790
        %vm793 = vcmp.lt.s32.totalorder %v689, 0
        %v794 = vsub.s32 0, %v689
        %v795 = vsel %vm793, %v794, %v689
        %v796 = vshrl.u32 %v795, 4
        %v797 = vand.u32 %v795, 15
        %v798 = vsub.s32 0, %v797
        %v799 = vsel %vm793, %v798, %v797
        %vm800 = vcmp.lt.s32.totalorder %v690, 0
        %v801 = vsub.s32 0, %v690
        %v802 = vsel %vm800, %v801, %v690
        %v803 = vshrl.u32 %v802, 4
        %v804 = vand.u32 %v802, 15
        %v805 = vsub.s32 0, %v804
        %v806 = vsel %vm800, %v805, %v804
        %vm807 = vcmp.lt.s32.totalorder %v691, 0
        %v808 = vsub.s32 0, %v691
        %v809 = vsel %vm807, %v808, %v691
        %v810 = vshrl.u32 %v809, 4
        %v811 = vand.u32 %v809, 15
        %v812 = vsub.s32 0, %v811
        %v813 = vsel %vm807, %v812, %v811
        %vm814 = vcmp.lt.s32.totalorder %v692, 0
        %v815 = vsub.s32 0, %v692
        %v816 = vsel %vm814, %v815, %v692
        %v817 = vshrl.u32 %v816, 4
        %v818 = vand.u32 %v816, 15
        %v819 = vsub.s32 0, %v818
        %v820 = vsel %vm814, %v819, %v818
        %vm821 = vcmp.lt.s32.totalorder %v693, 0
        %v822 = vsub.s32 0, %v693
        %v823 = vsel %vm821, %v822, %v693
        %v824 = vshrl.u32 %v823, 4
        %v825 = vand.u32 %v823, 15
        %v826 = vsub.s32 0, %v825
        %v827 = vsel %vm821, %v826, %v825
        %vm828 = vcmp.lt.s32.totalorder %v694, 0
        %v829 = vsub.s32 0, %v694
        %v830 = vsel %vm828, %v829, %v694
        %v831 = vshrl.u32 %v830, 4
        %v832 = vand.u32 %v830, 15
        %v833 = vsub.s32 0, %v832
        %v834 = vsel %vm828, %v833, %v832
        %vm835 = vcmp.lt.s32.totalorder %v695, 0
        %v836 = vsub.s32 0, %v695
        %v837 = vsel %vm835, %v836, %v695
        %v838 = vshrl.u32 %v837, 4
        %v839 = vand.u32 %v837, 15
        %v840 = vsub.s32 0, %v839
        %v841 = vsel %vm835, %v840, %v839
        %vm842 = vcmp.lt.s32.totalorder %v696, 0
        %v843 = vsub.s32 0, %v696
        %v844 = vsel %vm842, %v843, %v696
        %v845 = vshrl.u32 %v844, 4
        %v846 = vand.u32 %v844, 15
        %v847 = vsub.s32 0, %v846
        %v848 = vsel %vm842, %v847, %v846
        %vm849 = vcmp.lt.s32.totalorder %v697, 0
        %v850 = vsub.s32 0, %v697
        %v851 = vsel %vm849, %v850, %v697
        %v852 = vshrl.u32 %v851, 4
        %v853 = vand.u32 %v851, 15
        %v854 = vsub.s32 0, %v853
        %v855 = vsel %vm849, %v854, %v853
        %vm856 = vcmp.lt.s32.totalorder %v698, 0
        %v857 = vsub.s32 0, %v698
        %v858 = vsel %vm856, %v857, %v698
        %v859 = vshrl.u32 %v858, 4
        %v860 = vand.u32 %v858, 15
        %v861 = vsub.s32 0, %v860
        %v862 = vsel %vm856, %v861, %v860
        %vm863 = vcmp.lt.s32.totalorder %v699, 0
        %v864 = vsub.s32 0, %v699
        %v865 = vsel %vm863, %v864, %v699
        %v866 = vshrl.u32 %v865, 4
        %v867 = vand.u32 %v865, 15
        %v868 = vsub.s32 0, %v867
        %v869 = vsel %vm863, %v868, %v867
        %vm870 = vcmp.lt.s32.totalorder %v700, 0
        %v871 = vsub.s32 0, %v700
        %v872 = vsel %vm870, %v871, %v700
        %v873 = vshrl.u32 %v872, 4
        %v874 = vand.u32 %v872, 15
        %v875 = vsub.s32 0, %v874
        %v876 = vsel %vm870, %v875, %v874
        %vm877 = vcmp.lt.s32.totalorder %v701, 0
        %v878 = vsub.s32 0, %v701
        %v879 = vsel %vm877, %v878, %v701
        %v880 = vshrl.u32 %v879, 4
        %v881 = vand.u32 %v879, 15
        %v882 = vsub.s32 0, %v881
        %v883 = vsel %vm877, %v882, %v881
        %vm884 = vcmp.lt.s32.totalorder %v702, 0
        %v885 = vsub.s32 0, %v702
        %v886 = vsel %vm884, %v885, %v702
        %v887 = vshrl.u32 %v886, 4
        %v888 = vand.u32 %v886, 15
        %v889 = vsub.s32 0, %v888
        %v890 = vsel %vm884, %v889, %v888
        %vm891 = vcmp.lt.s32.totalorder %v703, 0
        %v892 = vsub.s32 0, %v703
        %v893 = vsel %vm891, %v892, %v703
        %v894 = vshrl.u32 %v893, 4
        %v895 = vand.u32 %v893, 15
        %v896 = vsub.s32 0, %v895
        %v897 = vsel %vm891, %v896, %v895
        %vm898 = vcmp.lt.s32.totalorder %v704, 0
        %v899 = vsub.s32 0, %v704
        %v900 = vsel %vm898, %v899, %v704
        %v901 = vshrl.u32 %v900, 4
        %v902 = vand.u32 %v900, 15
        %v903 = vsub.s32 0, %v902
        %v904 = vsel %vm898, %v903, %v902
        %vm905 = vcmp.lt.s32.totalorder %v705, 0
        %v906 = vsub.s32 0, %v705
        %v907 = vsel %vm905, %v906, %v705
        %v908 = vshrl.u32 %v907, 4
        %v909 = vand.u32 %v907, 15
        %v910 = vsub.s32 0, %v909
        %v911 = vsel %vm905, %v910, %v909
        %vm912 = vcmp.lt.s32.totalorder %v706, 0
        %v913 = vsub.s32 0, %v706
        %v914 = vsel %vm912, %v913, %v706
        %v915 = vshrl.u32 %v914, 4
        %v916 = vand.u32 %v914, 15
        %v917 = vsub.s32 0, %v916
        %v918 = vsel %vm912, %v917, %v916
        %vm919 = vcmp.lt.s32.totalorder %v707, 0
        %v920 = vsub.s32 0, %v707
        %v921 = vsel %vm919, %v920, %v707
        %v922 = vshrl.u32 %v921, 4
        %v923 = vand.u32 %v921, 15
        %v924 = vsub.s32 0, %v923
        %v925 = vsel %vm919, %v924, %v923
        %vm926 = vcmp.lt.s32.totalorder %v708, 0
        %v927 = vsub.s32 0, %v708
        %v928 = vsel %vm926, %v927, %v708
        %v929 = vshrl.u32 %v928, 4
        %v930 = vand.u32 %v928, 15
        %v931 = vsub.s32 0, %v930
        %v932 = vsel %vm926, %v931, %v930
        %vm933 = vcmp.ne.s32.totalorder %v715, 0
        %vm934 = vcmp.ne.s32.totalorder %v722, 0
        %vm935 = vcmp.ne.s32.totalorder %v729, 0
        %vm936 = vcmp.ne.s32.totalorder %v736, 0
        %vm937 = vcmp.ne.s32.totalorder %v743, 0
        %vm938 = vcmp.ne.s32.totalorder %v750, 0
        %vm939 = vcmp.ne.s32.totalorder %v757, 0
        %vm940 = vcmp.ne.s32.totalorder %v764, 0
        %vm941 = vcmp.ne.s32.totalorder %v771, 0
        %vm942 = vcmp.ne.s32.totalorder %v778, 0
        %vm943 = vcmp.ne.s32.totalorder %v785, 0
        %vm944 = vcmp.ne.s32.totalorder %v792, 0
        %vm945 = vcmp.ne.s32.totalorder %v799, 0
        %vm946 = vcmp.ne.s32.totalorder %v806, 0
        %vm947 = vcmp.ne.s32.totalorder %v813, 0
        %vm948 = vcmp.ne.s32.totalorder %v820, 0
        %vm949 = vcmp.ne.s32.totalorder %v827, 0
        %vm950 = vcmp.ne.s32.totalorder %v834, 0
        %vm951 = vcmp.ne.s32.totalorder %v841, 0
        %vm952 = vcmp.ne.s32.totalorder %v848, 0
        %vm953 = vcmp.ne.s32.totalorder %v855, 0
        %vm954 = vcmp.ne.s32.totalorder %v862, 0
        %vm955 = vcmp.ne.s32.totalorder %v869, 0
        %vm956 = vcmp.ne.s32.totalorder %v876, 0
        %vm957 = vcmp.ne.s32.totalorder %v883, 0
        %vm958 = vcmp.ne.s32.totalorder %v890, 0
        %vm959 = vcmp.ne.s32.totalorder %v897, 0
        %vm960 = vcmp.ne.s32.totalorder %v904, 0
        %vm961 = vcmp.ne.s32.totalorder %v911, 0
        %vm962 = vcmp.ne.s32.totalorder %v918, 0
        %vm963 = vcmp.ne.s32.totalorder %v925, 0
        %vm964 = vcmp.ne.s32.totalorder %v932, 0
        %vm965 = vcmp.lt.s32.totalorder %v715, 0
        %vm966 = vcmp.lt.s32.totalorder %v722, 0
        %vm967 = vcmp.lt.s32.totalorder %v729, 0
        %vm968 = vcmp.lt.s32.totalorder %v736, 0
        %vm969 = vcmp.lt.s32.totalorder %v743, 0
        %vm970 = vcmp.lt.s32.totalorder %v750, 0
        %vm971 = vcmp.lt.s32.totalorder %v757, 0
        %vm972 = vcmp.lt.s32.totalorder %v764, 0
        %vm973 = vcmp.lt.s32.totalorder %v771, 0
        %vm974 = vcmp.lt.s32.totalorder %v778, 0
        %vm975 = vcmp.lt.s32.totalorder %v785, 0
        %vm976 = vcmp.lt.s32.totalorder %v792, 0
        %vm977 = vcmp.lt.s32.totalorder %v799, 0
        %vm978 = vcmp.lt.s32.totalorder %v806, 0
        %vm979 = vcmp.lt.s32.totalorder %v813, 0
        %vm980 = vcmp.lt.s32.totalorder %v820, 0
        %vm981 = vcmp.lt.s32.totalorder %v827, 0
        %vm982 = vcmp.lt.s32.totalorder %v834, 0
        %vm983 = vcmp.lt.s32.totalorder %v841, 0
        %vm984 = vcmp.lt.s32.totalorder %v848, 0
        %vm985 = vcmp.lt.s32.totalorder %v855, 0
        %vm986 = vcmp.lt.s32.totalorder %v862, 0
        %vm987 = vcmp.lt.s32.totalorder %v869, 0
        %vm988 = vcmp.lt.s32.totalorder %v876, 0
        %vm989 = vcmp.lt.s32.totalorder %v883, 0
        %vm990 = vcmp.lt.s32.totalorder %v890, 0
        %vm991 = vcmp.lt.s32.totalorder %v897, 0
        %vm992 = vcmp.lt.s32.totalorder %v904, 0
        %vm993 = vcmp.lt.s32.totalorder %v911, 0
        %vm994 = vcmp.lt.s32.totalorder %v918, 0
        %vm995 = vcmp.lt.s32.totalorder %v925, 0
        %vm996 = vcmp.lt.s32.totalorder %v932, 0
        %vm997 = vmand %vm965, %vm933
        %vm998 = vmand %vm966, %vm934
        %vm999 = vmand %vm967, %vm935
        %vm1000 = vmand %vm968, %vm936
        %vm1001 = vmand %vm969, %vm937
        %vm1002 = vmand %vm970, %vm938
        %vm1003 = vmand %vm971, %vm939
        %vm1004 = vmand %vm972, %vm940
        %vm1005 = vmand %vm973, %vm941
        %vm1006 = vmand %vm974, %vm942
        %vm1007 = vmand %vm975, %vm943
        %vm1008 = vmand %vm976, %vm944
        %vm1009 = vmand %vm977, %vm945
        %vm1010 = vmand %vm978, %vm946
        %vm1011 = vmand %vm979, %vm947
        %vm1012 = vmand %vm980, %vm948
        %vm1013 = vmand %vm981, %vm949
        %vm1014 = vmand %vm982, %vm950
        %vm1015 = vmand %vm983, %vm951
        %vm1016 = vmand %vm984, %vm952
        %vm1017 = vmand %vm985, %vm953
        %vm1018 = vmand %vm986, %vm954
        %vm1019 = vmand %vm987, %vm955
        %vm1020 = vmand %vm988, %vm956
        %vm1021 = vmand %vm989, %vm957
        %vm1022 = vmand %vm990, %vm958
        %vm1023 = vmand %vm991, %vm959
        %vm1024 = vmand %vm992, %vm960
        %vm1025 = vmand %vm993, %vm961
        %vm1026 = vmand %vm994, %vm962
        %vm1027 = vmand %vm995, %vm963
        %vm1028 = vmand %vm996, %vm964
        %v1029 = vadd.s32 %v715, 16
        %v1030 = vadd.s32 %v722, 16
        %v1031 = vadd.s32 %v729, 16
        %v1032 = vadd.s32 %v736, 16
        %v1033 = vadd.s32 %v743, 16
        %v1034 = vadd.s32 %v750, 16
        %v1035 = vadd.s32 %v757, 16
        %v1036 = vadd.s32 %v764, 16
        %v1037 = vadd.s32 %v771, 16
        %v1038 = vadd.s32 %v778, 16
        %v1039 = vadd.s32 %v785, 16
        %v1040 = vadd.s32 %v792, 16
        %v1041 = vadd.s32 %v799, 16
        %v1042 = vadd.s32 %v806, 16
        %v1043 = vadd.s32 %v813, 16
        %v1044 = vadd.s32 %v820, 16
        %v1045 = vadd.s32 %v827, 16
        %v1046 = vadd.s32 %v834, 16
        %v1047 = vadd.s32 %v841, 16
        %v1048 = vadd.s32 %v848, 16
        %v1049 = vadd.s32 %v855, 16
        %v1050 = vadd.s32 %v862, 16
        %v1051 = vadd.s32 %v869, 16
        %v1052 = vadd.s32 %v876, 16
        %v1053 = vadd.s32 %v883, 16
        %v1054 = vadd.s32 %v890, 16
        %v1055 = vadd.s32 %v897, 16
        %v1056 = vadd.s32 %v904, 16
        %v1057 = vadd.s32 %v911, 16
        %v1058 = vadd.s32 %v918, 16
        %v1059 = vadd.s32 %v925, 16
        %v1060 = vadd.s32 %v932, 16
        %v1061 = vsel %vm997, %v1029, %v715
        %v1062 = vsel %vm998, %v1030, %v722
        %v1063 = vsel %vm999, %v1031, %v729
        %v1064 = vsel %vm1000, %v1032, %v736
        %v1065 = vsel %vm1001, %v1033, %v743
        %v1066 = vsel %vm1002, %v1034, %v750
        %v1067 = vsel %vm1003, %v1035, %v757
        %v1068 = vsel %vm1004, %v1036, %v764
        %v1069 = vsel %vm1005, %v1037, %v771
        %v1070 = vsel %vm1006, %v1038, %v778
        %v1071 = vsel %vm1007, %v1039, %v785
        %v1072 = vsel %vm1008, %v1040, %v792
        %v1073 = vsel %vm1009, %v1041, %v799
        %v1074 = vsel %vm1010, %v1042, %v806
        %v1075 = vsel %vm1011, %v1043, %v813
        %v1076 = vsel %vm1012, %v1044, %v820
        %v1077 = vsel %vm1013, %v1045, %v827
        %v1078 = vsel %vm1014, %v1046, %v834
        %v1079 = vsel %vm1015, %v1047, %v841
        %v1080 = vsel %vm1016, %v1048, %v848
        %v1081 = vsel %vm1017, %v1049, %v855
        %v1082 = vsel %vm1018, %v1050, %v862
        %v1083 = vsel %vm1019, %v1051, %v869
        %v1084 = vsel %vm1020, %v1052, %v876
        %v1085 = vsel %vm1021, %v1053, %v883
        %v1086 = vsel %vm1022, %v1054, %v890
        %v1087 = vsel %vm1023, %v1055, %v897
        %v1088 = vsel %vm1024, %v1056, %v904
        %v1089 = vsel %vm1025, %v1057, %v911
        %v1090 = vsel %vm1026, %v1058, %v918
        %v1091 = vsel %vm1027, %v1059, %v925
        %v1092 = vsel %vm1028, %v1060, %v932
        %vm1093 = vcmp.ge.s32.totalorder %v1061, 1
        %vm1094 = vcmp.ge.s32.totalorder %v1062, 1
        %vm1095 = vcmp.ge.s32.totalorder %v1063, 1
        %vm1096 = vcmp.ge.s32.totalorder %v1064, 1
        %vm1097 = vcmp.ge.s32.totalorder %v1065, 1
        %vm1098 = vcmp.ge.s32.totalorder %v1066, 1
        %vm1099 = vcmp.ge.s32.totalorder %v1067, 1
        %vm1100 = vcmp.ge.s32.totalorder %v1068, 1
        %vm1101 = vcmp.ge.s32.totalorder %v1069, 1
        %vm1102 = vcmp.ge.s32.totalorder %v1070, 1
        %vm1103 = vcmp.ge.s32.totalorder %v1071, 1
        %vm1104 = vcmp.ge.s32.totalorder %v1072, 1
        %vm1105 = vcmp.ge.s32.totalorder %v1073, 1
        %vm1106 = vcmp.ge.s32.totalorder %v1074, 1
        %vm1107 = vcmp.ge.s32.totalorder %v1075, 1
        %vm1108 = vcmp.ge.s32.totalorder %v1076, 1
        %vm1109 = vcmp.ge.s32.totalorder %v1077, 1
        %vm1110 = vcmp.ge.s32.totalorder %v1078, 1
        %vm1111 = vcmp.ge.s32.totalorder %v1079, 1
        %vm1112 = vcmp.ge.s32.totalorder %v1080, 1
        %vm1113 = vcmp.ge.s32.totalorder %v1081, 1
        %vm1114 = vcmp.ge.s32.totalorder %v1082, 1
        %vm1115 = vcmp.ge.s32.totalorder %v1083, 1
        %vm1116 = vcmp.ge.s32.totalorder %v1084, 1
        %vm1117 = vcmp.ge.s32.totalorder %v1085, 1
        %vm1118 = vcmp.ge.s32.totalorder %v1086, 1
        %vm1119 = vcmp.ge.s32.totalorder %v1087, 1
        %vm1120 = vcmp.ge.s32.totalorder %v1088, 1
        %vm1121 = vcmp.ge.s32.totalorder %v1089, 1
        %vm1122 = vcmp.ge.s32.totalorder %v1090, 1
        %vm1123 = vcmp.ge.s32.totalorder %v1091, 1
        %vm1124 = vcmp.ge.s32.totalorder %v1092, 1
        %vm1125 = vcmp.lt.s32.totalorder %v1061, 15
        %vm1126 = vcmp.lt.s32.totalorder %v1062, 15
        %vm1127 = vcmp.lt.s32.totalorder %v1063, 15
        %vm1128 = vcmp.lt.s32.totalorder %v1064, 15
        %vm1129 = vcmp.lt.s32.totalorder %v1065, 15
        %vm1130 = vcmp.lt.s32.totalorder %v1066, 15
        %vm1131 = vcmp.lt.s32.totalorder %v1067, 15
        %vm1132 = vcmp.lt.s32.totalorder %v1068, 15
        %vm1133 = vcmp.lt.s32.totalorder %v1069, 15
        %vm1134 = vcmp.lt.s32.totalorder %v1070, 15
        %vm1135 = vcmp.lt.s32.totalorder %v1071, 15
        %vm1136 = vcmp.lt.s32.totalorder %v1072, 15
        %vm1137 = vcmp.lt.s32.totalorder %v1073, 15
        %vm1138 = vcmp.lt.s32.totalorder %v1074, 15
        %vm1139 = vcmp.lt.s32.totalorder %v1075, 15
        %vm1140 = vcmp.lt.s32.totalorder %v1076, 15
        %vm1141 = vcmp.lt.s32.totalorder %v1077, 15
        %vm1142 = vcmp.lt.s32.totalorder %v1078, 15
        %vm1143 = vcmp.lt.s32.totalorder %v1079, 15
        %vm1144 = vcmp.lt.s32.totalorder %v1080, 15
        %vm1145 = vcmp.lt.s32.totalorder %v1081, 15
        %vm1146 = vcmp.lt.s32.totalorder %v1082, 15
        %vm1147 = vcmp.lt.s32.totalorder %v1083, 15
        %vm1148 = vcmp.lt.s32.totalorder %v1084, 15
        %vm1149 = vcmp.lt.s32.totalorder %v1085, 15
        %vm1150 = vcmp.lt.s32.totalorder %v1086, 15
        %vm1151 = vcmp.lt.s32.totalorder %v1087, 15
        %vm1152 = vcmp.lt.s32.totalorder %v1088, 15
        %vm1153 = vcmp.lt.s32.totalorder %v1089, 15
        %vm1154 = vcmp.lt.s32.totalorder %v1090, 15
        %vm1155 = vcmp.lt.s32.totalorder %v1091, 15
        %vm1156 = vcmp.lt.s32.totalorder %v1092, 15
        %v1157 = vld [vmem:[#allocation2 + $0x7] sm:$0xff]
        %v1158 = vld [vmem:[#allocation2 + $0xf] sm:$0xff]
        %v1159 = vld [vmem:[#allocation2 + $0x17] sm:$0xff]
        %v1160 = vld [vmem:[#allocation2 + $0x1f] sm:$0xff]
        %v1161 = vld [vmem:[#allocation2 + $0x27] sm:$0xff]
        %v1162 = vld [vmem:[#allocation2 + $0x2f] sm:$0xff]
        %v1163 = vld [vmem:[#allocation2 + $0x37] sm:$0xff]
        %v1164 = vld [vmem:[#allocation2 + $0x3f] sm:$0xff]
        %v1165 = vld [vmem:[#allocation2 + $0x47] sm:$0xff]
        %v1166 = vld [vmem:[#allocation2 + $0x4f] sm:$0xff]
        %v1167 = vld [vmem:[#allocation2 + $0x57] sm:$0xff]
        %v1168 = vld [vmem:[#allocation2 + $0x5f] sm:$0xff]
        %v1169 = vld [vmem:[#allocation2 + $0x67] sm:$0xff]
        %v1170 = vld [vmem:[#allocation2 + $0x6f] sm:$0xff]
        %v1171 = vld [vmem:[#allocation2 + $0x77] sm:$0xff]
        %v1172 = vld [vmem:[#allocation2 + $0x7f] sm:$0xff]
        %v1173 = vld [vmem:[#allocation2 + $0x87] sm:$0xff]
        %v1174 = vld [vmem:[#allocation2 + $0x8f] sm:$0xff]
        %v1175 = vld [vmem:[#allocation2 + $0x97] sm:$0xff]
        %v1176 = vld [vmem:[#allocation2 + $0x9f] sm:$0xff]
        %v1177 = vld [vmem:[#allocation2 + $0xa7] sm:$0xff]
        %v1178 = vld [vmem:[#allocation2 + $0xaf] sm:$0xff]
        %v1179 = vld [vmem:[#allocation2 + $0xb7] sm:$0xff]
        %v1180 = vld [vmem:[#allocation2 + $0xbf] sm:$0xff]
        %v1181 = vld [vmem:[#allocation2 + $0xc7] sm:$0xff]
        %v1182 = vld [vmem:[#allocation2 + $0xcf] sm:$0xff]
        %v1183 = vld [vmem:[#allocation2 + $0xd7] sm:$0xff]
        %v1184 = vld [vmem:[#allocation2 + $0xdf] sm:$0xff]
        %v1185 = vld [vmem:[#allocation2 + $0xe7] sm:$0xff]
        %v1186 = vld [vmem:[#allocation2 + $0xef] sm:$0xff]
        %v1187 = vld [vmem:[#allocation2 + $0xf7] sm:$0xff]
        %v1188 = vld [vmem:[#allocation2 + $0xff] sm:$0xff]
        %v1189 = vsel %vm1093, 1, 0
        %v1190 = vsel %vm1094, 1, 0
        %v1191 = vsel %vm1095, 1, 0
        %v1192 = vsel %vm1096, 1, 0
        %v1193 = vsel %vm1097, 1, 0
        %v1194 = vsel %vm1098, 1, 0
        %v1195 = vsel %vm1099, 1, 0
        %v1196 = vsel %vm1100, 1, 0
        %v1197 = vsel %vm1101, 1, 0
        %v1198 = vsel %vm1102, 1, 0
        %v1199 = vsel %vm1103, 1, 0
        %v1200 = vsel %vm1104, 1, 0
        %v1201 = vsel %vm1105, 1, 0
        %v1202 = vsel %vm1106, 1, 0
        %v1203 = vsel %vm1107, 1, 0
        %v1204 = vsel %vm1108, 1, 0
        %v1205 = vsel %vm1109, 1, 0
        %v1206 = vsel %vm1110, 1, 0
        %v1207 = vsel %vm1111, 1, 0
        %v1208 = vsel %vm1112, 1, 0
        %v1209 = vsel %vm1113, 1, 0
        %v1210 = vsel %vm1114, 1, 0
        %v1211 = vsel %vm1115, 1, 0
        %v1212 = vsel %vm1116, 1, 0
        %v1213 = vsel %vm1117, 1, 0
        %v1214 = vsel %vm1118, 1, 0
        %v1215 = vsel %vm1119, 1, 0
        %v1216 = vsel %vm1120, 1, 0
        %v1217 = vsel %vm1121, 1, 0
        %v1218 = vsel %vm1122, 1, 0
        %v1219 = vsel %vm1123, 1, 0
        %v1220 = vsel %vm1124, 1, 0
        %vm1221 = vcmp.eq.s32.totalorder %v1189, 1
        %vm1222 = vcmp.eq.s32.totalorder %v1190, 1
        %vm1223 = vcmp.eq.s32.totalorder %v1191, 1
        %vm1224 = vcmp.eq.s32.totalorder %v1192, 1
        %vm1225 = vcmp.eq.s32.totalorder %v1193, 1
        %vm1226 = vcmp.eq.s32.totalorder %v1194, 1
        %vm1227 = vcmp.eq.s32.totalorder %v1195, 1
        %vm1228 = vcmp.eq.s32.totalorder %v1196, 1
        %vm1229 = vcmp.eq.s32.totalorder %v1197, 1
        %vm1230 = vcmp.eq.s32.totalorder %v1198, 1
        %vm1231 = vcmp.eq.s32.totalorder %v1199, 1
        %vm1232 = vcmp.eq.s32.totalorder %v1200, 1
        %vm1233 = vcmp.eq.s32.totalorder %v1201, 1
        %vm1234 = vcmp.eq.s32.totalorder %v1202, 1
        %vm1235 = vcmp.eq.s32.totalorder %v1203, 1
        %vm1236 = vcmp.eq.s32.totalorder %v1204, 1
        %vm1237 = vcmp.eq.s32.totalorder %v1205, 1
        %vm1238 = vcmp.eq.s32.totalorder %v1206, 1
        %vm1239 = vcmp.eq.s32.totalorder %v1207, 1
        %vm1240 = vcmp.eq.s32.totalorder %v1208, 1
        %vm1241 = vcmp.eq.s32.totalorder %v1209, 1
        %vm1242 = vcmp.eq.s32.totalorder %v1210, 1
        %vm1243 = vcmp.eq.s32.totalorder %v1211, 1
        %vm1244 = vcmp.eq.s32.totalorder %v1212, 1
        %vm1245 = vcmp.eq.s32.totalorder %v1213, 1
        %vm1246 = vcmp.eq.s32.totalorder %v1214, 1
        %vm1247 = vcmp.eq.s32.totalorder %v1215, 1
        %vm1248 = vcmp.eq.s32.totalorder %v1216, 1
        %vm1249 = vcmp.eq.s32.totalorder %v1217, 1
        %vm1250 = vcmp.eq.s32.totalorder %v1218, 1
        %vm1251 = vcmp.eq.s32.totalorder %v1219, 1
        %vm1252 = vcmp.eq.s32.totalorder %v1220, 1
        %v1253 = vsel %vm1221, %v1157, 0.0
        %v1254 = vsel %vm1222, %v1158, 0.0
        %v1255 = vsel %vm1223, %v1159, 0.0
        %v1256 = vsel %vm1224, %v1160, 0.0
        %v1257 = vsel %vm1225, %v1161, 0.0
        %v1258 = vsel %vm1226, %v1162, 0.0
        %v1259 = vsel %vm1227, %v1163, 0.0
        %v1260 = vsel %vm1228, %v1164, 0.0
        %v1261 = vsel %vm1229, %v1165, 0.0
        %v1262 = vsel %vm1230, %v1166, 0.0
        %v1263 = vsel %vm1231, %v1167, 0.0
        %v1264 = vsel %vm1232, %v1168, 0.0
        %v1265 = vsel %vm1233, %v1169, 0.0
        %v1266 = vsel %vm1234, %v1170, 0.0
        %v1267 = vsel %vm1235, %v1171, 0.0
        %v1268 = vsel %vm1236, %v1172, 0.0
        %v1269 = vsel %vm1237, %v1173, 0.0
        %v1270 = vsel %vm1238, %v1174, 0.0
        %v1271 = vsel %vm1239, %v1175, 0.0
        %v1272 = vsel %vm1240, %v1176, 0.0
        %v1273 = vsel %vm1241, %v1177, 0.0
        %v1274 = vsel %vm1242, %v1178, 0.0
        %v1275 = vsel %vm1243, %v1179, 0.0
        %v1276 = vsel %vm1244, %v1180, 0.0
        %v1277 = vsel %vm1245, %v1181, 0.0
        %v1278 = vsel %vm1246, %v1182, 0.0
        %v1279 = vsel %vm1247, %v1183, 0.0
        %v1280 = vsel %vm1248, %v1184, 0.0
        %v1281 = vsel %vm1249, %v1185, 0.0
        %v1282 = vsel %vm1250, %v1186, 0.0
        %v1283 = vsel %vm1251, %v1187, 0.0
        %v1284 = vsel %vm1252, %v1188, 0.0
        %v1285 = vpack.c.bf16 %v1254, %v1253
        %v1286 = vpack.c.bf16 %v1256, %v1255
        %v1287 = vpack.c.bf16 %v1258, %v1257
        %v1288 = vpack.c.bf16 %v1260, %v1259
        %v1289 = vpack.c.bf16 %v1262, %v1261
        %v1290 = vpack.c.bf16 %v1264, %v1263
        %v1291 = vpack.c.bf16 %v1266, %v1265
        %v1292 = vpack.c.bf16 %v1268, %v1267
        %v1293 = vpack.c.bf16 %v1270, %v1269
        %v1294 = vpack.c.bf16 %v1272, %v1271
        %v1295 = vpack.c.bf16 %v1274, %v1273
        %v1296 = vpack.c.bf16 %v1276, %v1275
        %v1297 = vpack.c.bf16 %v1278, %v1277
        %v1298 = vpack.c.bf16 %v1280, %v1279
        %v1299 = vpack.c.bf16 %v1282, %v1281
        %v1300 = vpack.c.bf16 %v1284, %v1283
        %v1301 = vld [vmem:[%s3] sm:$0xf]
        %v1302 = vld [vmem:[%s3 + $0x4] sm:$0xf]
        %v1303 = vld [vmem:[#allocation2 + $0x8] sm:$0xff]
        %v1304 = vld [vmem:[#allocation2 + $0x10] sm:$0xff]
        %v1305 = vld [vmem:[#allocation2 + $0x18] sm:$0xff]
        %v1306 = vld [vmem:[#allocation2 + $0x20] sm:$0xff]
        %v1307 = vld [vmem:[#allocation2 + $0x28] sm:$0xff]
        %v1308 = vld [vmem:[#allocation2 + $0x30] sm:$0xff]
        %v1309 = vld [vmem:[#allocation2 + $0x38] sm:$0xff]
        %v1310 = vld [vmem:[#allocation2 + $0x40] sm:$0xff]
        %v1311 = vld [vmem:[#allocation2 + $0x48] sm:$0xff]
        %v1312 = vld [vmem:[#allocation2 + $0x50] sm:$0xff]
        %v1313 = vld [vmem:[#allocation2 + $0x58] sm:$0xff]
        %v1314 = vld [vmem:[#allocation2 + $0x60] sm:$0xff]
        %v1315 = vld [vmem:[#allocation2 + $0x68] sm:$0xff]
        %v1316 = vld [vmem:[#allocation2 + $0x70] sm:$0xff]
        %v1317 = vld [vmem:[#allocation2 + $0x78] sm:$0xff]
        %v1318 = vld [vmem:[#allocation2 + $0x80] sm:$0xff]
        %v1319 = vld [vmem:[#allocation2 + $0x88] sm:$0xff]
        %v1320 = vld [vmem:[#allocation2 + $0x90] sm:$0xff]
        %v1321 = vld [vmem:[#allocation2 + $0x98] sm:$0xff]
        %v1322 = vld [vmem:[#allocation2 + $0xa0] sm:$0xff]
        %v1323 = vld [vmem:[#allocation2 + $0xa8] sm:$0xff]
        %v1324 = vld [vmem:[#allocation2 + $0xb0] sm:$0xff]
        %v1325 = vld [vmem:[#allocation2 + $0xb8] sm:$0xff]
        %v1326 = vld [vmem:[#allocation2 + $0xc0] sm:$0xff]
        %v1327 = vld [vmem:[#allocation2 + $0xc8] sm:$0xff]
        %v1328 = vld [vmem:[#allocation2 + $0xd0] sm:$0xff]
        %v1329 = vld [vmem:[#allocation2 + $0xd8] sm:$0xff]
        %v1330 = vld [vmem:[#allocation2 + $0xe0] sm:$0xff]
        %v1331 = vld [vmem:[#allocation2 + $0xe8] sm:$0xff]
        %v1332 = vld [vmem:[#allocation2 + $0xf0] sm:$0xff]
        %v1333 = vld [vmem:[#allocation2 + $0xf8] sm:$0xff]
        %v1334 = vld [vmem:[#allocation2 + $0x100] sm:$0xff]
        %v1335 = vpack.c.bf16 %v1304, %v1303
        %v1336 = vpack.c.bf16 %v1306, %v1305
        %v1337 = vpack.c.bf16 %v1308, %v1307
        %v1338 = vpack.c.bf16 %v1310, %v1309
        %v1339 = vpack.c.bf16 %v1312, %v1311
        %v1340 = vpack.c.bf16 %v1314, %v1313
        %v1341 = vpack.c.bf16 %v1316, %v1315
        %v1342 = vpack.c.bf16 %v1318, %v1317
        %v1343 = vpack.c.bf16 %v1320, %v1319
        %v1344 = vpack.c.bf16 %v1322, %v1321
        %v1345 = vpack.c.bf16 %v1324, %v1323
        %v1346 = vpack.c.bf16 %v1326, %v1325
        %v1347 = vpack.c.bf16 %v1328, %v1327
        %v1348 = vpack.c.bf16 %v1330, %v1329
        %v1349 = vpack.c.bf16 %v1332, %v1331
        %v1350 = vpack.c.bf16 %v1334, %v1333
        %s1351 = scalar_lea.vmem %s3, 8
        %v1352 = vld [vmem:[%s1351] sm:$0xf]
        %v1353 = vld [vmem:[%s1351 + $0x4] sm:$0xf]
        %v1356 = vunpack.c.l.b16 %v1352
        %v1357 = vunpack.c.l.b16 %v1353
        %v1358 = vpack.c.b16 %v1357, %v1356
        %v1361 = vsel %vm224, %v1335, 0
        %v1364 = vsel %vm224, %v1336, 0
        %v1367 = vsel %vm224, %v1337, 0
        %v1370 = vsel %vm224, %v1338, 0
        %v1373 = vsel %vm224, %v1339, 0
        %v1376 = vsel %vm224, %v1340, 0
        %v1379 = vsel %vm224, %v1341, 0
        %v1382 = vsel %vm224, %v1342, 0
        %v1385 = vsel %vm224, %v1343, 0
        %v1388 = vsel %vm224, %v1344, 0
        %v1391 = vsel %vm224, %v1345, 0
        %v1394 = vsel %vm224, %v1346, 0
        %v1397 = vsel %vm224, %v1347, 0
        %v1400 = vsel %vm224, %v1348, 0
        %v1403 = vsel %vm224, %v1349, 0
        %v1406 = vsel %vm224, %v1350, 0
        %1408 = vmatpush.bf16.msra.mxu0 0
        %1409 = vmatpush.bf16.msra.mxu0 0
        %1410 = vmatpush.bf16.msra.mxu0 0
        %1411 = vmatpush.bf16.msra.mxu0 0
        %1412 = vmatpush.bf16.msra.mxu0 0
        %1413 = vmatpush.bf16.msra.mxu0 0
        %1414 = vmatpush.bf16.msra.mxu0 0
        %1415 = vmatpush.bf16.msra.mxu0 %v1358
        %1416 = vmatmul.bf16.gmra.mxu0 %v1361
        %v1417 = vpop.f32.mrf.mxu0
        %v1418 = vadd.f32 0.0, %v1417
        %v1419 = vpop.f32.mrf.mxu0
        %v1420 = vadd.f32 0.0, %v1419
        %1421 = vmatmul.bf16.gmra.mxu0 %v1364
        %v1422 = vpop.f32.mrf.mxu0
        %v1423 = vadd.f32 0.0, %v1422
        %v1424 = vpop.f32.mrf.mxu0
        %v1425 = vadd.f32 0.0, %v1424
        %1426 = vmatmul.bf16.gmra.mxu0 %v1367
        %v1427 = vpop.f32.mrf.mxu0
        %v1428 = vadd.f32 0.0, %v1427
        %v1429 = vpop.f32.mrf.mxu0
        %v1430 = vadd.f32 0.0, %v1429
        %1431 = vmatmul.bf16.gmra.mxu0 %v1370
        %v1432 = vpop.f32.mrf.mxu0
        %v1433 = vadd.f32 0.0, %v1432
        %v1434 = vpop.f32.mrf.mxu0
        %v1435 = vadd.f32 0.0, %v1434
        %1436 = vmatmul.bf16.gmra.mxu0 %v1373
        %v1437 = vpop.f32.mrf.mxu0
        %v1438 = vadd.f32 0.0, %v1437
        %v1439 = vpop.f32.mrf.mxu0
        %v1440 = vadd.f32 0.0, %v1439
        %1441 = vmatmul.bf16.gmra.mxu0 %v1376
        %v1442 = vpop.f32.mrf.mxu0
        %v1443 = vadd.f32 0.0, %v1442
        %v1444 = vpop.f32.mrf.mxu0
        %v1445 = vadd.f32 0.0, %v1444
        %1446 = vmatmul.bf16.gmra.mxu0 %v1379
        %v1447 = vpop.f32.mrf.mxu0
        %v1448 = vadd.f32 0.0, %v1447
        %v1449 = vpop.f32.mrf.mxu0
        %v1450 = vadd.f32 0.0, %v1449
        %1451 = vmatmul.bf16.gmra.mxu0 %v1382
        %v1452 = vpop.f32.mrf.mxu0
        %v1453 = vadd.f32 0.0, %v1452
        %v1454 = vpop.f32.mrf.mxu0
        %v1455 = vadd.f32 0.0, %v1454
        %1456 = vmatmul.bf16.gmra.mxu0 %v1385
        %v1457 = vpop.f32.mrf.mxu0
        %v1458 = vadd.f32 0.0, %v1457
        %v1459 = vpop.f32.mrf.mxu0
        %v1460 = vadd.f32 0.0, %v1459
        %1461 = vmatmul.bf16.gmra.mxu0 %v1388
        %v1462 = vpop.f32.mrf.mxu0
        %v1463 = vadd.f32 0.0, %v1462
        %v1464 = vpop.f32.mrf.mxu0
        %v1465 = vadd.f32 0.0, %v1464
        %1466 = vmatmul.bf16.gmra.mxu0 %v1391
        %v1467 = vpop.f32.mrf.mxu0
        %v1468 = vadd.f32 0.0, %v1467
        %v1469 = vpop.f32.mrf.mxu0
        %v1470 = vadd.f32 0.0, %v1469
        %1471 = vmatmul.bf16.gmra.mxu0 %v1394
        %v1472 = vpop.f32.mrf.mxu0
        %v1473 = vadd.f32 0.0, %v1472
        %v1474 = vpop.f32.mrf.mxu0
        %v1475 = vadd.f32 0.0, %v1474
        %1476 = vmatmul.bf16.gmra.mxu0 %v1397
        %v1477 = vpop.f32.mrf.mxu0
        %v1478 = vadd.f32 0.0, %v1477
        %v1479 = vpop.f32.mrf.mxu0
        %v1480 = vadd.f32 0.0, %v1479
        %1481 = vmatmul.bf16.gmra.mxu0 %v1400
        %v1482 = vpop.f32.mrf.mxu0
        %v1483 = vadd.f32 0.0, %v1482
        %v1484 = vpop.f32.mrf.mxu0
        %v1485 = vadd.f32 0.0, %v1484
        %1486 = vmatmul.bf16.gmra.mxu0 %v1403
        %v1487 = vpop.f32.mrf.mxu0
        %v1488 = vadd.f32 0.0, %v1487
        %v1489 = vpop.f32.mrf.mxu0
        %v1490 = vadd.f32 0.0, %v1489
        %1491 = vmatmul.bf16.gmra.mxu0 %v1406
        %v1492 = vpop.f32.mrf.mxu0
        %v1493 = vadd.f32 0.0, %v1492
        %v1494 = vpop.f32.mrf.mxu0
        %v1495 = vadd.f32 0.0, %v1494
        %1496 = vdwg.mxu0
        %v1499 = vunpack.c.l.b16 %v1301
        %v1500 = vunpack.c.l.b16 %v1302
        %v1501 = vpack.c.b16 %v1500, %v1499
        %v1504 = vsel %vm224, %v1285, 0
        %v1507 = vsel %vm224, %v1286, 0
        %v1510 = vsel %vm224, %v1287, 0
        %v1513 = vsel %vm224, %v1288, 0
        %v1516 = vsel %vm224, %v1289, 0
        %v1519 = vsel %vm224, %v1290, 0
        %v1522 = vsel %vm224, %v1291, 0
        %v1525 = vsel %vm224, %v1292, 0
        %v1528 = vsel %vm224, %v1293, 0
        %v1531 = vsel %vm224, %v1294, 0
        %v1534 = vsel %vm224, %v1295, 0
        %v1537 = vsel %vm224, %v1296, 0
        %v1540 = vsel %vm224, %v1297, 0
        %v1543 = vsel %vm224, %v1298, 0
        %v1546 = vsel %vm224, %v1299, 0
        %v1549 = vsel %vm224, %v1300, 0
        %1551 = vmatpush.bf16.msra.mxu0 0
        %1552 = vmatpush.bf16.msra.mxu0 0
        %1553 = vmatpush.bf16.msra.mxu0 0
        %1554 = vmatpush.bf16.msra.mxu0 0
        %1555 = vmatpush.bf16.msra.mxu0 0
        %1556 = vmatpush.bf16.msra.mxu0 0
        %1557 = vmatpush.bf16.msra.mxu0 0
        %1558 = vmatpush.bf16.msra.mxu0 %v1501
        %1559 = vmatmul.bf16.gmra.mxu0 %v1504
        %v1560 = vpop.f32.mrf.mxu0
        %v1561 = vadd.f32 %v1418, %v1560
        %v1562 = vpop.f32.mrf.mxu0
        %v1563 = vadd.f32 %v1420, %v1562
        %1564 = vmatmul.bf16.gmra.mxu0 %v1507
        %v1565 = vpop.f32.mrf.mxu0
        %v1566 = vadd.f32 %v1423, %v1565
        %v1567 = vpop.f32.mrf.mxu0
        %v1568 = vadd.f32 %v1425, %v1567
        %1569 = vmatmul.bf16.gmra.mxu0 %v1510
        %v1570 = vpop.f32.mrf.mxu0
        %v1571 = vadd.f32 %v1428, %v1570
        %v1572 = vpop.f32.mrf.mxu0
        %v1573 = vadd.f32 %v1430, %v1572
        %1574 = vmatmul.bf16.gmra.mxu0 %v1513
        %v1575 = vpop.f32.mrf.mxu0
        %v1576 = vadd.f32 %v1433, %v1575
        %v1577 = vpop.f32.mrf.mxu0
        %v1578 = vadd.f32 %v1435, %v1577
        %1579 = vmatmul.bf16.gmra.mxu0 %v1516
        %v1580 = vpop.f32.mrf.mxu0
        %v1581 = vadd.f32 %v1438, %v1580
        %v1582 = vpop.f32.mrf.mxu0
        %v1583 = vadd.f32 %v1440, %v1582
        %1584 = vmatmul.bf16.gmra.mxu0 %v1519
        %v1585 = vpop.f32.mrf.mxu0
        %v1586 = vadd.f32 %v1443, %v1585
        %v1587 = vpop.f32.mrf.mxu0
        %v1588 = vadd.f32 %v1445, %v1587
        %1589 = vmatmul.bf16.gmra.mxu0 %v1522
        %v1590 = vpop.f32.mrf.mxu0
        %v1591 = vadd.f32 %v1448, %v1590
        %v1592 = vpop.f32.mrf.mxu0
        %v1593 = vadd.f32 %v1450, %v1592
        %1594 = vmatmul.bf16.gmra.mxu0 %v1525
        %v1595 = vpop.f32.mrf.mxu0
        %v1596 = vadd.f32 %v1453, %v1595
        %v1597 = vpop.f32.mrf.mxu0
        %v1598 = vadd.f32 %v1455, %v1597
        %1599 = vmatmul.bf16.gmra.mxu0 %v1528
        %v1600 = vpop.f32.mrf.mxu0
        %v1601 = vadd.f32 %v1458, %v1600
        %v1602 = vpop.f32.mrf.mxu0
        %v1603 = vadd.f32 %v1460, %v1602
        %1604 = vmatmul.bf16.gmra.mxu0 %v1531
        %v1605 = vpop.f32.mrf.mxu0
        %v1606 = vadd.f32 %v1463, %v1605
        %v1607 = vpop.f32.mrf.mxu0
        %v1608 = vadd.f32 %v1465, %v1607
        %1609 = vmatmul.bf16.gmra.mxu0 %v1534
        %v1610 = vpop.f32.mrf.mxu0
        %v1611 = vadd.f32 %v1468, %v1610
        %v1612 = vpop.f32.mrf.mxu0
        %v1613 = vadd.f32 %v1470, %v1612
        %1614 = vmatmul.bf16.gmra.mxu0 %v1537
        %v1615 = vpop.f32.mrf.mxu0
        %v1616 = vadd.f32 %v1473, %v1615
        %v1617 = vpop.f32.mrf.mxu0
        %v1618 = vadd.f32 %v1475, %v1617
        %1619 = vmatmul.bf16.gmra.mxu0 %v1540
        %v1620 = vpop.f32.mrf.mxu0
        %v1621 = vadd.f32 %v1478, %v1620
        %v1622 = vpop.f32.mrf.mxu0
        %v1623 = vadd.f32 %v1480, %v1622
        %1624 = vmatmul.bf16.gmra.mxu0 %v1543
        %v1625 = vpop.f32.mrf.mxu0
        %v1626 = vadd.f32 %v1483, %v1625
        %v1627 = vpop.f32.mrf.mxu0
        %v1628 = vadd.f32 %v1485, %v1627
        %1629 = vmatmul.bf16.gmra.mxu0 %v1546
        %v1630 = vpop.f32.mrf.mxu0
        %v1631 = vadd.f32 %v1488, %v1630
        %v1632 = vpop.f32.mrf.mxu0
        %v1633 = vadd.f32 %v1490, %v1632
        %1634 = vmatmul.bf16.gmra.mxu0 %v1549
        %v1635 = vpop.f32.mrf.mxu0
        %v1636 = vadd.f32 %v1493, %v1635
        %v1637 = vpop.f32.mrf.mxu0
        %v1638 = vadd.f32 %v1495, %v1637
        %1639 = vdwg.mxu0
        %v1640 = vld [vmem:[#allocation2 + $0x9] sm:$0xff]
        %v1641 = vld [vmem:[#allocation2 + $0x11] sm:$0xff]
        %v1642 = vld [vmem:[#allocation2 + $0x19] sm:$0xff]
        %v1643 = vld [vmem:[#allocation2 + $0x21] sm:$0xff]
        %v1644 = vld [vmem:[#allocation2 + $0x29] sm:$0xff]
        %v1645 = vld [vmem:[#allocation2 + $0x31] sm:$0xff]
        %v1646 = vld [vmem:[#allocation2 + $0x39] sm:$0xff]
        %v1647 = vld [vmem:[#allocation2 + $0x41] sm:$0xff]
        %v1648 = vld [vmem:[#allocation2 + $0x49] sm:$0xff]
        %v1649 = vld [vmem:[#allocation2 + $0x51] sm:$0xff]
        %v1650 = vld [vmem:[#allocation2 + $0x59] sm:$0xff]
        %v1651 = vld [vmem:[#allocation2 + $0x61] sm:$0xff]
        %v1652 = vld [vmem:[#allocation2 + $0x69] sm:$0xff]
        %v1653 = vld [vmem:[#allocation2 + $0x71] sm:$0xff]
        %v1654 = vld [vmem:[#allocation2 + $0x79] sm:$0xff]
        %v1655 = vld [vmem:[#allocation2 + $0x81] sm:$0xff]
        %v1656 = vld [vmem:[#allocation2 + $0x89] sm:$0xff]
        %v1657 = vld [vmem:[#allocation2 + $0x91] sm:$0xff]
        %v1658 = vld [vmem:[#allocation2 + $0x99] sm:$0xff]
        %v1659 = vld [vmem:[#allocation2 + $0xa1] sm:$0xff]
        %v1660 = vld [vmem:[#allocation2 + $0xa9] sm:$0xff]
        %v1661 = vld [vmem:[#allocation2 + $0xb1] sm:$0xff]
        %v1662 = vld [vmem:[#allocation2 + $0xb9] sm:$0xff]
        %v1663 = vld [vmem:[#allocation2 + $0xc1] sm:$0xff]
        %v1664 = vld [vmem:[#allocation2 + $0xc9] sm:$0xff]
        %v1665 = vld [vmem:[#allocation2 + $0xd1] sm:$0xff]
        %v1666 = vld [vmem:[#allocation2 + $0xd9] sm:$0xff]
        %v1667 = vld [vmem:[#allocation2 + $0xe1] sm:$0xff]
        %v1668 = vld [vmem:[#allocation2 + $0xe9] sm:$0xff]
        %v1669 = vld [vmem:[#allocation2 + $0xf1] sm:$0xff]
        %v1670 = vld [vmem:[#allocation2 + $0xf9] sm:$0xff]
        %v1671 = vld [vmem:[#allocation2 + $0x101] sm:$0xff]
        %v1672 = vsel %vm1125, 1, 0
        %v1673 = vsel %vm1126, 1, 0
        %v1674 = vsel %vm1127, 1, 0
        %v1675 = vsel %vm1128, 1, 0
        %v1676 = vsel %vm1129, 1, 0
        %v1677 = vsel %vm1130, 1, 0
        %v1678 = vsel %vm1131, 1, 0
        %v1679 = vsel %vm1132, 1, 0
        %v1680 = vsel %vm1133, 1, 0
        %v1681 = vsel %vm1134, 1, 0
        %v1682 = vsel %vm1135, 1, 0
        %v1683 = vsel %vm1136, 1, 0
        %v1684 = vsel %vm1137, 1, 0
        %v1685 = vsel %vm1138, 1, 0
        %v1686 = vsel %vm1139, 1, 0
        %v1687 = vsel %vm1140, 1, 0
        %v1688 = vsel %vm1141, 1, 0
        %v1689 = vsel %vm1142, 1, 0
        %v1690 = vsel %vm1143, 1, 0
        %v1691 = vsel %vm1144, 1, 0
        %v1692 = vsel %vm1145, 1, 0
        %v1693 = vsel %vm1146, 1, 0
        %v1694 = vsel %vm1147, 1, 0
        %v1695 = vsel %vm1148, 1, 0
        %v1696 = vsel %vm1149, 1, 0
        %v1697 = vsel %vm1150, 1, 0
        %v1698 = vsel %vm1151, 1, 0
        %v1699 = vsel %vm1152, 1, 0
        %v1700 = vsel %vm1153, 1, 0
        %v1701 = vsel %vm1154, 1, 0
        %v1702 = vsel %vm1155, 1, 0
        %v1703 = vsel %vm1156, 1, 0
        %vm1704 = vcmp.eq.s32.totalorder %v1672, 1
        %vm1705 = vcmp.eq.s32.totalorder %v1673, 1
        %vm1706 = vcmp.eq.s32.totalorder %v1674, 1
        %vm1707 = vcmp.eq.s32.totalorder %v1675, 1
        %vm1708 = vcmp.eq.s32.totalorder %v1676, 1
        %vm1709 = vcmp.eq.s32.totalorder %v1677, 1
        %vm1710 = vcmp.eq.s32.totalorder %v1678, 1
        %vm1711 = vcmp.eq.s32.totalorder %v1679, 1
        %vm1712 = vcmp.eq.s32.totalorder %v1680, 1
        %vm1713 = vcmp.eq.s32.totalorder %v1681, 1
        %vm1714 = vcmp.eq.s32.totalorder %v1682, 1
        %vm1715 = vcmp.eq.s32.totalorder %v1683, 1
        %vm1716 = vcmp.eq.s32.totalorder %v1684, 1
        %vm1717 = vcmp.eq.s32.totalorder %v1685, 1
        %vm1718 = vcmp.eq.s32.totalorder %v1686, 1
        %vm1719 = vcmp.eq.s32.totalorder %v1687, 1
        %vm1720 = vcmp.eq.s32.totalorder %v1688, 1
        %vm1721 = vcmp.eq.s32.totalorder %v1689, 1
        %vm1722 = vcmp.eq.s32.totalorder %v1690, 1
        %vm1723 = vcmp.eq.s32.totalorder %v1691, 1
        %vm1724 = vcmp.eq.s32.totalorder %v1692, 1
        %vm1725 = vcmp.eq.s32.totalorder %v1693, 1
        %vm1726 = vcmp.eq.s32.totalorder %v1694, 1
        %vm1727 = vcmp.eq.s32.totalorder %v1695, 1
        %vm1728 = vcmp.eq.s32.totalorder %v1696, 1
        %vm1729 = vcmp.eq.s32.totalorder %v1697, 1
        %vm1730 = vcmp.eq.s32.totalorder %v1698, 1
        %vm1731 = vcmp.eq.s32.totalorder %v1699, 1
        %vm1732 = vcmp.eq.s32.totalorder %v1700, 1
        %vm1733 = vcmp.eq.s32.totalorder %v1701, 1
        %vm1734 = vcmp.eq.s32.totalorder %v1702, 1
        %vm1735 = vcmp.eq.s32.totalorder %v1703, 1
        %v1736 = vsel %vm1704, %v1640, 0.0
        %v1737 = vsel %vm1705, %v1641, 0.0
        %v1738 = vsel %vm1706, %v1642, 0.0
        %v1739 = vsel %vm1707, %v1643, 0.0
        %v1740 = vsel %vm1708, %v1644, 0.0
        %v1741 = vsel %vm1709, %v1645, 0.0
        %v1742 = vsel %vm1710, %v1646, 0.0
        %v1743 = vsel %vm1711, %v1647, 0.0
        %v1744 = vsel %vm1712, %v1648, 0.0
        %v1745 = vsel %vm1713, %v1649, 0.0
        %v1746 = vsel %vm1714, %v1650, 0.0
        %v1747 = vsel %vm1715, %v1651, 0.0
        %v1748 = vsel %vm1716, %v1652, 0.0
        %v1749 = vsel %vm1717, %v1653, 0.0
        %v1750 = vsel %vm1718, %v1654, 0.0
        %v1751 = vsel %vm1719, %v1655, 0.0
        %v1752 = vsel %vm1720, %v1656, 0.0
        %v1753 = vsel %vm1721, %v1657, 0.0
        %v1754 = vsel %vm1722, %v1658, 0.0
        %v1755 = vsel %vm1723, %v1659, 0.0
        %v1756 = vsel %vm1724, %v1660, 0.0
        %v1757 = vsel %vm1725, %v1661, 0.0
        %v1758 = vsel %vm1726, %v1662, 0.0
        %v1759 = vsel %vm1727, %v1663, 0.0
        %v1760 = vsel %vm1728, %v1664, 0.0
        %v1761 = vsel %vm1729, %v1665, 0.0
        %v1762 = vsel %vm1730, %v1666, 0.0
        %v1763 = vsel %vm1731, %v1667, 0.0
        %v1764 = vsel %vm1732, %v1668, 0.0
        %v1765 = vsel %vm1733, %v1669, 0.0
        %v1766 = vsel %vm1734, %v1670, 0.0
        %v1767 = vsel %vm1735, %v1671, 0.0
        %v1768 = vpack.c.bf16 %v1737, %v1736
        %v1769 = vpack.c.bf16 %v1739, %v1738
        %v1770 = vpack.c.bf16 %v1741, %v1740
        %v1771 = vpack.c.bf16 %v1743, %v1742
        %v1772 = vpack.c.bf16 %v1745, %v1744
        %v1773 = vpack.c.bf16 %v1747, %v1746
        %v1774 = vpack.c.bf16 %v1749, %v1748
        %v1775 = vpack.c.bf16 %v1751, %v1750
        %v1776 = vpack.c.bf16 %v1753, %v1752
        %v1777 = vpack.c.bf16 %v1755, %v1754
        %v1778 = vpack.c.bf16 %v1757, %v1756
        %v1779 = vpack.c.bf16 %v1759, %v1758
        %v1780 = vpack.c.bf16 %v1761, %v1760
        %v1781 = vpack.c.bf16 %v1763, %v1762
        %v1782 = vpack.c.bf16 %v1765, %v1764
        %v1783 = vpack.c.bf16 %v1767, %v1766
        %s1784 = scalar_lea.vmem %s3, 16
        %v1785 = vld [vmem:[%s1784] sm:$0xf]
        %v1786 = vld [vmem:[%s1784 + $0x4] sm:$0xf]
        %v1789 = vunpack.c.l.b16 %v1785
        %v1790 = vunpack.c.l.b16 %v1786
        %v1791 = vpack.c.b16 %v1790, %v1789
        %v1794 = vsel %vm224, %v1768, 0
        %v1797 = vsel %vm224, %v1769, 0
        %v1800 = vsel %vm224, %v1770, 0
        %v1803 = vsel %vm224, %v1771, 0
        %v1806 = vsel %vm224, %v1772, 0
        %v1809 = vsel %vm224, %v1773, 0
        %v1812 = vsel %vm224, %v1774, 0
        %v1815 = vsel %vm224, %v1775, 0
        %v1818 = vsel %vm224, %v1776, 0
        %v1821 = vsel %vm224, %v1777, 0
        %v1824 = vsel %vm224, %v1778, 0
        %v1827 = vsel %vm224, %v1779, 0
        %v1830 = vsel %vm224, %v1780, 0
        %v1833 = vsel %vm224, %v1781, 0
        %v1836 = vsel %vm224, %v1782, 0
        %v1839 = vsel %vm224, %v1783, 0
        %1841 = vmatpush.bf16.msra.mxu0 0
        %1842 = vmatpush.bf16.msra.mxu0 0
        %1843 = vmatpush.bf16.msra.mxu0 0
        %1844 = vmatpush.bf16.msra.mxu0 0
        %1845 = vmatpush.bf16.msra.mxu0 0
        %1846 = vmatpush.bf16.msra.mxu0 0
        %1847 = vmatpush.bf16.msra.mxu0 0
        %1848 = vmatpush.bf16.msra.mxu0 %v1791
        %1849 = vmatmul.bf16.gmra.mxu0 %v1794
        %v1850 = vpop.f32.mrf.mxu0
        %v1851 = vadd.f32 0.0, %v1850
        %v1852 = vpop.f32.mrf.mxu0
        %v1853 = vadd.f32 0.0, %v1852
        %1854 = vmatmul.bf16.gmra.mxu0 %v1797
        %v1855 = vpop.f32.mrf.mxu0
        %v1856 = vadd.f32 0.0, %v1855
        %v1857 = vpop.f32.mrf.mxu0
        %v1858 = vadd.f32 0.0, %v1857
        %1859 = vmatmul.bf16.gmra.mxu0 %v1800
        %v1860 = vpop.f32.mrf.mxu0
        %v1861 = vadd.f32 0.0, %v1860
        %v1862 = vpop.f32.mrf.mxu0
        %v1863 = vadd.f32 0.0, %v1862
        %1864 = vmatmul.bf16.gmra.mxu0 %v1803
        %v1865 = vpop.f32.mrf.mxu0
        %v1866 = vadd.f32 0.0, %v1865
        %v1867 = vpop.f32.mrf.mxu0
        %v1868 = vadd.f32 0.0, %v1867
        %1869 = vmatmul.bf16.gmra.mxu0 %v1806
        %v1870 = vpop.f32.mrf.mxu0
        %v1871 = vadd.f32 0.0, %v1870
        %v1872 = vpop.f32.mrf.mxu0
        %v1873 = vadd.f32 0.0, %v1872
        %1874 = vmatmul.bf16.gmra.mxu0 %v1809
        %v1875 = vpop.f32.mrf.mxu0
        %v1876 = vadd.f32 0.0, %v1875
        %v1877 = vpop.f32.mrf.mxu0
        %v1878 = vadd.f32 0.0, %v1877
        %1879 = vmatmul.bf16.gmra.mxu0 %v1812
        %v1880 = vpop.f32.mrf.mxu0
        %v1881 = vadd.f32 0.0, %v1880
        %v1882 = vpop.f32.mrf.mxu0
        %v1883 = vadd.f32 0.0, %v1882
        %1884 = vmatmul.bf16.gmra.mxu0 %v1815
        %v1885 = vpop.f32.mrf.mxu0
        %v1886 = vadd.f32 0.0, %v1885
        %v1887 = vpop.f32.mrf.mxu0
        %v1888 = vadd.f32 0.0, %v1887
        %1889 = vmatmul.bf16.gmra.mxu0 %v1818
        %v1890 = vpop.f32.mrf.mxu0
        %v1891 = vadd.f32 0.0, %v1890
        %v1892 = vpop.f32.mrf.mxu0
        %v1893 = vadd.f32 0.0, %v1892
        %1894 = vmatmul.bf16.gmra.mxu0 %v1821
        %v1895 = vpop.f32.mrf.mxu0
        %v1896 = vadd.f32 0.0, %v1895
        %v1897 = vpop.f32.mrf.mxu0
        %v1898 = vadd.f32 0.0, %v1897
        %1899 = vmatmul.bf16.gmra.mxu0 %v1824
        %v1900 = vpop.f32.mrf.mxu0
        %v1901 = vadd.f32 0.0, %v1900
        %v1902 = vpop.f32.mrf.mxu0
        %v1903 = vadd.f32 0.0, %v1902
        %1904 = vmatmul.bf16.gmra.mxu0 %v1827
        %v1905 = vpop.f32.mrf.mxu0
        %v1906 = vadd.f32 0.0, %v1905
        %v1907 = vpop.f32.mrf.mxu0
        %v1908 = vadd.f32 0.0, %v1907
        %1909 = vmatmul.bf16.gmra.mxu0 %v1830
        %v1910 = vpop.f32.mrf.mxu0
        %v1911 = vadd.f32 0.0, %v1910
        %v1912 = vpop.f32.mrf.mxu0
        %v1913 = vadd.f32 0.0, %v1912
        %1914 = vmatmul.bf16.gmra.mxu0 %v1833
        %v1915 = vpop.f32.mrf.mxu0
        %v1916 = vadd.f32 0.0, %v1915
        %v1917 = vpop.f32.mrf.mxu0
        %v1918 = vadd.f32 0.0, %v1917
        %1919 = vmatmul.bf16.gmra.mxu0 %v1836
        %v1920 = vpop.f32.mrf.mxu0
        %v1921 = vadd.f32 0.0, %v1920
        %v1922 = vpop.f32.mrf.mxu0
        %v1923 = vadd.f32 0.0, %v1922
        %1924 = vmatmul.bf16.gmra.mxu0 %v1839
        %v1925 = vpop.f32.mrf.mxu0
        %v1926 = vadd.f32 0.0, %v1925
        %v1927 = vpop.f32.mrf.mxu0
        %v1928 = vadd.f32 0.0, %v1927
        %1929 = vdwg.mxu0
        %v1930 = vadd.f32 %v1561, %v1851
        %v1931 = vadd.f32 %v1563, %v1853
        %v1932 = vadd.f32 %v1566, %v1856
        %v1933 = vadd.f32 %v1568, %v1858
        %v1934 = vadd.f32 %v1571, %v1861
        %v1935 = vadd.f32 %v1573, %v1863
        %v1936 = vadd.f32 %v1576, %v1866
        %v1937 = vadd.f32 %v1578, %v1868
        %v1938 = vadd.f32 %v1581, %v1871
        %v1939 = vadd.f32 %v1583, %v1873
        %v1940 = vadd.f32 %v1586, %v1876
        %v1941 = vadd.f32 %v1588, %v1878
        %v1942 = vadd.f32 %v1591, %v1881
        %v1943 = vadd.f32 %v1593, %v1883
        %v1944 = vadd.f32 %v1596, %v1886
        %v1945 = vadd.f32 %v1598, %v1888
        %v1946 = vadd.f32 %v1601, %v1891
        %v1947 = vadd.f32 %v1603, %v1893
        %v1948 = vadd.f32 %v1606, %v1896
        %v1949 = vadd.f32 %v1608, %v1898
        %v1950 = vadd.f32 %v1611, %v1901
        %v1951 = vadd.f32 %v1613, %v1903
        %v1952 = vadd.f32 %v1616, %v1906
        %v1953 = vadd.f32 %v1618, %v1908
        %v1954 = vadd.f32 %v1621, %v1911
        %v1955 = vadd.f32 %v1623, %v1913
        %v1956 = vadd.f32 %v1626, %v1916
        %v1957 = vadd.f32 %v1628, %v1918
        %v1958 = vadd.f32 %v1631, %v1921
        %v1959 = vadd.f32 %v1633, %v1923
        %v1960 = vadd.f32 %v1636, %v1926
        %v1961 = vadd.f32 %v1638, %v1928
        %v1962 = vld [vmem:[#allocation2 + $0x17] sm:$0xff]
        %v1963 = vld [vmem:[#allocation2 + $0x1f] sm:$0xff]
        %v1964 = vld [vmem:[#allocation2 + $0x27] sm:$0xff]
        %v1965 = vld [vmem:[#allocation2 + $0x2f] sm:$0xff]
        %v1966 = vld [vmem:[#allocation2 + $0x37] sm:$0xff]
        %v1967 = vld [vmem:[#allocation2 + $0x3f] sm:$0xff]
        %v1968 = vld [vmem:[#allocation2 + $0x47] sm:$0xff]
        %v1969 = vld [vmem:[#allocation2 + $0x4f] sm:$0xff]
        %v1970 = vld [vmem:[#allocation2 + $0x57] sm:$0xff]
        %v1971 = vld [vmem:[#allocation2 + $0x5f] sm:$0xff]
        %v1972 = vld [vmem:[#allocation2 + $0x67] sm:$0xff]
        %v1973 = vld [vmem:[#allocation2 + $0x6f] sm:$0xff]
        %v1974 = vld [vmem:[#allocation2 + $0x77] sm:$0xff]
        %v1975 = vld [vmem:[#allocation2 + $0x7f] sm:$0xff]
        %v1976 = vld [vmem:[#allocation2 + $0x87] sm:$0xff]
        %v1977 = vld [vmem:[#allocation2 + $0x8f] sm:$0xff]
        %v1978 = vld [vmem:[#allocation2 + $0x97] sm:$0xff]
        %v1979 = vld [vmem:[#allocation2 + $0x9f] sm:$0xff]
        %v1980 = vld [vmem:[#allocation2 + $0xa7] sm:$0xff]
        %v1981 = vld [vmem:[#allocation2 + $0xaf] sm:$0xff]
        %v1982 = vld [vmem:[#allocation2 + $0xb7] sm:$0xff]
        %v1983 = vld [vmem:[#allocation2 + $0xbf] sm:$0xff]
        %v1984 = vld [vmem:[#allocation2 + $0xc7] sm:$0xff]
        %v1985 = vld [vmem:[#allocation2 + $0xcf] sm:$0xff]
        %v1986 = vld [vmem:[#allocation2 + $0xd7] sm:$0xff]
        %v1987 = vld [vmem:[#allocation2 + $0xdf] sm:$0xff]
        %v1988 = vld [vmem:[#allocation2 + $0xe7] sm:$0xff]
        %v1989 = vld [vmem:[#allocation2 + $0xef] sm:$0xff]
        %v1990 = vld [vmem:[#allocation2 + $0xf7] sm:$0xff]
        %v1991 = vld [vmem:[#allocation2 + $0xff] sm:$0xff]
        %v1992 = vld [vmem:[#allocation2 + $0x107] sm:$0xff]
        %v1993 = vld [vmem:[#allocation2 + $0x10f] sm:$0xff]
        %v1994 = vsel %vm1221, %v1962, 0.0
        %v1995 = vsel %vm1222, %v1963, 0.0
        %v1996 = vsel %vm1223, %v1964, 0.0
        %v1997 = vsel %vm1224, %v1965, 0.0
        %v1998 = vsel %vm1225, %v1966, 0.0
        %v1999 = vsel %vm1226, %v1967, 0.0
        %v2000 = vsel %vm1227, %v1968, 0.0
        %v2001 = vsel %vm1228, %v1969, 0.0
        %v2002 = vsel %vm1229, %v1970, 0.0
        %v2003 = vsel %vm1230, %v1971, 0.0
        %v2004 = vsel %vm1231, %v1972, 0.0
        %v2005 = vsel %vm1232, %v1973, 0.0
        %v2006 = vsel %vm1233, %v1974, 0.0
        %v2007 = vsel %vm1234, %v1975, 0.0
        %v2008 = vsel %vm1235, %v1976, 0.0
        %v2009 = vsel %vm1236, %v1977, 0.0
        %v2010 = vsel %vm1237, %v1978, 0.0
        %v2011 = vsel %vm1238, %v1979, 0.0
        %v2012 = vsel %vm1239, %v1980, 0.0
        %v2013 = vsel %vm1240, %v1981, 0.0
        %v2014 = vsel %vm1241, %v1982, 0.0
        %v2015 = vsel %vm1242, %v1983, 0.0
        %v2016 = vsel %vm1243, %v1984, 0.0
        %v2017 = vsel %vm1244, %v1985, 0.0
        %v2018 = vsel %vm1245, %v1986, 0.0
        %v2019 = vsel %vm1246, %v1987, 0.0
        %v2020 = vsel %vm1247, %v1988, 0.0
        %v2021 = vsel %vm1248, %v1989, 0.0
        %v2022 = vsel %vm1249, %v1990, 0.0
        %v2023 = vsel %vm1250, %v1991, 0.0
        %v2024 = vsel %vm1251, %v1992, 0.0
        %v2025 = vsel %vm1252, %v1993, 0.0
        %v2026 = vpack.c.bf16 %v1995, %v1994
        %v2027 = vpack.c.bf16 %v1997, %v1996
        %v2028 = vpack.c.bf16 %v1999, %v1998
        %v2029 = vpack.c.bf16 %v2001, %v2000
        %v2030 = vpack.c.bf16 %v2003, %v2002
        %v2031 = vpack.c.bf16 %v2005, %v2004
        %v2032 = vpack.c.bf16 %v2007, %v2006
        %v2033 = vpack.c.bf16 %v2009, %v2008
        %v2034 = vpack.c.bf16 %v2011, %v2010
        %v2035 = vpack.c.bf16 %v2013, %v2012
        %v2036 = vpack.c.bf16 %v2015, %v2014
        %v2037 = vpack.c.bf16 %v2017, %v2016
        %v2038 = vpack.c.bf16 %v2019, %v2018
        %v2039 = vpack.c.bf16 %v2021, %v2020
        %v2040 = vpack.c.bf16 %v2023, %v2022
        %v2041 = vpack.c.bf16 %v2025, %v2024
        %s2042 = scalar_lea.vmem %s3, 24
        %v2043 = vld [vmem:[%s2042] sm:$0xf]
        %v2044 = vld [vmem:[%s2042 + $0x4] sm:$0xf]
        %v2047 = vunpack.c.l.b16 %v2043
        %v2048 = vunpack.c.l.b16 %v2044
        %v2049 = vpack.c.b16 %v2048, %v2047
        %v2052 = vsel %vm224, %v2026, 0
        %v2055 = vsel %vm224, %v2027, 0
        %v2058 = vsel %vm224, %v2028, 0
        %v2061 = vsel %vm224, %v2029, 0
        %v2064 = vsel %vm224, %v2030, 0
        %v2067 = vsel %vm224, %v2031, 0
        %v2070 = vsel %vm224, %v2032, 0
        %v2073 = vsel %vm224, %v2033, 0
        %v2076 = vsel %vm224, %v2034, 0
        %v2079 = vsel %vm224, %v2035, 0
        %v2082 = vsel %vm224, %v2036, 0
        %v2085 = vsel %vm224, %v2037, 0
        %v2088 = vsel %vm224, %v2038, 0
        %v2091 = vsel %vm224, %v2039, 0
        %v2094 = vsel %vm224, %v2040, 0
        %v2097 = vsel %vm224, %v2041, 0
        %2099 = vmatpush.bf16.msra.mxu0 0
        %2100 = vmatpush.bf16.msra.mxu0 0
        %2101 = vmatpush.bf16.msra.mxu0 0
        %2102 = vmatpush.bf16.msra.mxu0 0
        %2103 = vmatpush.bf16.msra.mxu0 0
        %2104 = vmatpush.bf16.msra.mxu0 0
        %2105 = vmatpush.bf16.msra.mxu0 0
        %2106 = vmatpush.bf16.msra.mxu0 %v2049
        %2107 = vmatmul.bf16.gmra.mxu0 %v2052
        %v2108 = vpop.f32.mrf.mxu0
        %v2109 = vadd.f32 0.0, %v2108
        %v2110 = vpop.f32.mrf.mxu0
        %v2111 = vadd.f32 0.0, %v2110
        %2112 = vmatmul.bf16.gmra.mxu0 %v2055
        %v2113 = vpop.f32.mrf.mxu0
        %v2114 = vadd.f32 0.0, %v2113
        %v2115 = vpop.f32.mrf.mxu0
        %v2116 = vadd.f32 0.0, %v2115
        %2117 = vmatmul.bf16.gmra.mxu0 %v2058
        %v2118 = vpop.f32.mrf.mxu0
        %v2119 = vadd.f32 0.0, %v2118
        %v2120 = vpop.f32.mrf.mxu0
        %v2121 = vadd.f32 0.0, %v2120
        %2122 = vmatmul.bf16.gmra.mxu0 %v2061
        %v2123 = vpop.f32.mrf.mxu0
        %v2124 = vadd.f32 0.0, %v2123
        %v2125 = vpop.f32.mrf.mxu0
        %v2126 = vadd.f32 0.0, %v2125
        %2127 = vmatmul.bf16.gmra.mxu0 %v2064
        %v2128 = vpop.f32.mrf.mxu0
        %v2129 = vadd.f32 0.0, %v2128
        %v2130 = vpop.f32.mrf.mxu0
        %v2131 = vadd.f32 0.0, %v2130
        %2132 = vmatmul.bf16.gmra.mxu0 %v2067
        %v2133 = vpop.f32.mrf.mxu0
        %v2134 = vadd.f32 0.0, %v2133
        %v2135 = vpop.f32.mrf.mxu0
        %v2136 = vadd.f32 0.0, %v2135
        %2137 = vmatmul.bf16.gmra.mxu0 %v2070
        %v2138 = vpop.f32.mrf.mxu0
        %v2139 = vadd.f32 0.0, %v2138
        %v2140 = vpop.f32.mrf.mxu0
        %v2141 = vadd.f32 0.0, %v2140
        %2142 = vmatmul.bf16.gmra.mxu0 %v2073
        %v2143 = vpop.f32.mrf.mxu0
        %v2144 = vadd.f32 0.0, %v2143
        %v2145 = vpop.f32.mrf.mxu0
        %v2146 = vadd.f32 0.0, %v2145
        %2147 = vmatmul.bf16.gmra.mxu0 %v2076
        %v2148 = vpop.f32.mrf.mxu0
        %v2149 = vadd.f32 0.0, %v2148
        %v2150 = vpop.f32.mrf.mxu0
        %v2151 = vadd.f32 0.0, %v2150
        %2152 = vmatmul.bf16.gmra.mxu0 %v2079
        %v2153 = vpop.f32.mrf.mxu0
        %v2154 = vadd.f32 0.0, %v2153
        %v2155 = vpop.f32.mrf.mxu0
        %v2156 = vadd.f32 0.0, %v2155
        %2157 = vmatmul.bf16.gmra.mxu0 %v2082
        %v2158 = vpop.f32.mrf.mxu0
        %v2159 = vadd.f32 0.0, %v2158
        %v2160 = vpop.f32.mrf.mxu0
        %v2161 = vadd.f32 0.0, %v2160
        %2162 = vmatmul.bf16.gmra.mxu0 %v2085
        %v2163 = vpop.f32.mrf.mxu0
        %v2164 = vadd.f32 0.0, %v2163
        %v2165 = vpop.f32.mrf.mxu0
        %v2166 = vadd.f32 0.0, %v2165
        %2167 = vmatmul.bf16.gmra.mxu0 %v2088
        %v2168 = vpop.f32.mrf.mxu0
        %v2169 = vadd.f32 0.0, %v2168
        %v2170 = vpop.f32.mrf.mxu0
        %v2171 = vadd.f32 0.0, %v2170
        %2172 = vmatmul.bf16.gmra.mxu0 %v2091
        %v2173 = vpop.f32.mrf.mxu0
        %v2174 = vadd.f32 0.0, %v2173
        %v2175 = vpop.f32.mrf.mxu0
        %v2176 = vadd.f32 0.0, %v2175
        %2177 = vmatmul.bf16.gmra.mxu0 %v2094
        %v2178 = vpop.f32.mrf.mxu0
        %v2179 = vadd.f32 0.0, %v2178
        %v2180 = vpop.f32.mrf.mxu0
        %v2181 = vadd.f32 0.0, %v2180
        %2182 = vmatmul.bf16.gmra.mxu0 %v2097
        %v2183 = vpop.f32.mrf.mxu0
        %v2184 = vadd.f32 0.0, %v2183
        %v2185 = vpop.f32.mrf.mxu0
        %v2186 = vadd.f32 0.0, %v2185
        %2187 = vdwg.mxu0
        %v2188 = vadd.f32 %v1930, %v2109
        %v2189 = vadd.f32 %v1931, %v2111
        %v2190 = vadd.f32 %v1932, %v2114
        %v2191 = vadd.f32 %v1933, %v2116
        %v2192 = vadd.f32 %v1934, %v2119
        %v2193 = vadd.f32 %v1935, %v2121
        %v2194 = vadd.f32 %v1936, %v2124
        %v2195 = vadd.f32 %v1937, %v2126
        %v2196 = vadd.f32 %v1938, %v2129
        %v2197 = vadd.f32 %v1939, %v2131
        %v2198 = vadd.f32 %v1940, %v2134
        %v2199 = vadd.f32 %v1941, %v2136
        %v2200 = vadd.f32 %v1942, %v2139
        %v2201 = vadd.f32 %v1943, %v2141
        %v2202 = vadd.f32 %v1944, %v2144
        %v2203 = vadd.f32 %v1945, %v2146
        %v2204 = vadd.f32 %v1946, %v2149
        %v2205 = vadd.f32 %v1947, %v2151
        %v2206 = vadd.f32 %v1948, %v2154
        %v2207 = vadd.f32 %v1949, %v2156
        %v2208 = vadd.f32 %v1950, %v2159
        %v2209 = vadd.f32 %v1951, %v2161
        %v2210 = vadd.f32 %v1952, %v2164
        %v2211 = vadd.f32 %v1953, %v2166
        %v2212 = vadd.f32 %v1954, %v2169
        %v2213 = vadd.f32 %v1955, %v2171
        %v2214 = vadd.f32 %v1956, %v2174
        %v2215 = vadd.f32 %v1957, %v2176
        %v2216 = vadd.f32 %v1958, %v2179
        %v2217 = vadd.f32 %v1959, %v2181
        %v2218 = vadd.f32 %v1960, %v2184
        %v2219 = vadd.f32 %v1961, %v2186
        %s2220 = scalar_lea.vmem %s3, 32
        %v2221 = vld [vmem:[%s2220] sm:$0xf]
        %v2222 = vld [vmem:[%s2220 + $0x4] sm:$0xf]
        %v2225 = vunpack.c.l.b16 %v2221
        %v2226 = vunpack.c.l.b16 %v2222
        %v2227 = vpack.c.b16 %v2226, %v2225
        %v2230 = vsel %vm224, %v660, 0
        %v2233 = vsel %vm224, %v661, 0
        %v2236 = vsel %vm224, %v662, 0
        %v2239 = vsel %vm224, %v663, 0
        %v2242 = vsel %vm224, %v664, 0
        %v2245 = vsel %vm224, %v665, 0
        %v2248 = vsel %vm224, %v666, 0
        %v2251 = vsel %vm224, %v667, 0
        %v2254 = vsel %vm224, %v668, 0
        %v2257 = vsel %vm224, %v669, 0
        %v2260 = vsel %vm224, %v670, 0
        %v2263 = vsel %vm224, %v671, 0
        %v2266 = vsel %vm224, %v672, 0
        %v2269 = vsel %vm224, %v673, 0
        %v2272 = vsel %vm224, %v674, 0
        %v2275 = vsel %vm224, %v675, 0
        %2277 = vmatpush.bf16.msra.mxu0 0
        %2278 = vmatpush.bf16.msra.mxu0 0
        %2279 = vmatpush.bf16.msra.mxu0 0
        %2280 = vmatpush.bf16.msra.mxu0 0
        %2281 = vmatpush.bf16.msra.mxu0 0
        %2282 = vmatpush.bf16.msra.mxu0 0
        %2283 = vmatpush.bf16.msra.mxu0 0
        %2284 = vmatpush.bf16.msra.mxu0 %v2227
        %2285 = vmatmul.bf16.gmra.mxu0 %v2230
        %v2286 = vpop.f32.mrf.mxu0
        %v2287 = vadd.f32 0.0, %v2286
        %v2288 = vpop.f32.mrf.mxu0
        %v2289 = vadd.f32 0.0, %v2288
        %2290 = vmatmul.bf16.gmra.mxu0 %v2233
        %v2291 = vpop.f32.mrf.mxu0
        %v2292 = vadd.f32 0.0, %v2291
        %v2293 = vpop.f32.mrf.mxu0
        %v2294 = vadd.f32 0.0, %v2293
        %2295 = vmatmul.bf16.gmra.mxu0 %v2236
        %v2296 = vpop.f32.mrf.mxu0
        %v2297 = vadd.f32 0.0, %v2296
        %v2298 = vpop.f32.mrf.mxu0
        %v2299 = vadd.f32 0.0, %v2298
        %2300 = vmatmul.bf16.gmra.mxu0 %v2239
        %v2301 = vpop.f32.mrf.mxu0
        %v2302 = vadd.f32 0.0, %v2301
        %v2303 = vpop.f32.mrf.mxu0
        %v2304 = vadd.f32 0.0, %v2303
        %2305 = vmatmul.bf16.gmra.mxu0 %v2242
        %v2306 = vpop.f32.mrf.mxu0
        %v2307 = vadd.f32 0.0, %v2306
        %v2308 = vpop.f32.mrf.mxu0
        %v2309 = vadd.f32 0.0, %v2308
        %2310 = vmatmul.bf16.gmra.mxu0 %v2245
        %v2311 = vpop.f32.mrf.mxu0
        %v2312 = vadd.f32 0.0, %v2311
        %v2313 = vpop.f32.mrf.mxu0
        %v2314 = vadd.f32 0.0, %v2313
        %2315 = vmatmul.bf16.gmra.mxu0 %v2248
        %v2316 = vpop.f32.mrf.mxu0
        %v2317 = vadd.f32 0.0, %v2316
        %v2318 = vpop.f32.mrf.mxu0
        %v2319 = vadd.f32 0.0, %v2318
        %2320 = vmatmul.bf16.gmra.mxu0 %v2251
        %v2321 = vpop.f32.mrf.mxu0
        %v2322 = vadd.f32 0.0, %v2321
        %v2323 = vpop.f32.mrf.mxu0
        %v2324 = vadd.f32 0.0, %v2323
        %2325 = vmatmul.bf16.gmra.mxu0 %v2254
        %v2326 = vpop.f32.mrf.mxu0
        %v2327 = vadd.f32 0.0, %v2326
        %v2328 = vpop.f32.mrf.mxu0
        %v2329 = vadd.f32 0.0, %v2328
        %2330 = vmatmul.bf16.gmra.mxu0 %v2257
        %v2331 = vpop.f32.mrf.mxu0
        %v2332 = vadd.f32 0.0, %v2331
        %v2333 = vpop.f32.mrf.mxu0
        %v2334 = vadd.f32 0.0, %v2333
        %2335 = vmatmul.bf16.gmra.mxu0 %v2260
        %v2336 = vpop.f32.mrf.mxu0
        %v2337 = vadd.f32 0.0, %v2336
        %v2338 = vpop.f32.mrf.mxu0
        %v2339 = vadd.f32 0.0, %v2338
        %2340 = vmatmul.bf16.gmra.mxu0 %v2263
        %v2341 = vpop.f32.mrf.mxu0
        %v2342 = vadd.f32 0.0, %v2341
        %v2343 = vpop.f32.mrf.mxu0
        %v2344 = vadd.f32 0.0, %v2343
        %2345 = vmatmul.bf16.gmra.mxu0 %v2266
        %v2346 = vpop.f32.mrf.mxu0
        %v2347 = vadd.f32 0.0, %v2346
        %v2348 = vpop.f32.mrf.mxu0
        %v2349 = vadd.f32 0.0, %v2348
        %2350 = vmatmul.bf16.gmra.mxu0 %v2269
        %v2351 = vpop.f32.mrf.mxu0
        %v2352 = vadd.f32 0.0, %v2351
        %v2353 = vpop.f32.mrf.mxu0
        %v2354 = vadd.f32 0.0, %v2353
        %2355 = vmatmul.bf16.gmra.mxu0 %v2272
        %v2356 = vpop.f32.mrf.mxu0
        %v2357 = vadd.f32 0.0, %v2356
        %v2358 = vpop.f32.mrf.mxu0
        %v2359 = vadd.f32 0.0, %v2358
        %2360 = vmatmul.bf16.gmra.mxu0 %v2275
        %v2361 = vpop.f32.mrf.mxu0
        %v2362 = vadd.f32 0.0, %v2361
        %v2363 = vpop.f32.mrf.mxu0
        %v2364 = vadd.f32 0.0, %v2363
        %2365 = vdwg.mxu0
        %v2366 = vadd.f32 %v2188, %v2287
        %v2367 = vadd.f32 %v2189, %v2289
        %v2368 = vadd.f32 %v2190, %v2292
        %v2369 = vadd.f32 %v2191, %v2294
        %v2370 = vadd.f32 %v2192, %v2297
        %v2371 = vadd.f32 %v2193, %v2299
        %v2372 = vadd.f32 %v2194, %v2302
        %v2373 = vadd.f32 %v2195, %v2304
        %v2374 = vadd.f32 %v2196, %v2307
        %v2375 = vadd.f32 %v2197, %v2309
        %v2376 = vadd.f32 %v2198, %v2312
        %v2377 = vadd.f32 %v2199, %v2314
        %v2378 = vadd.f32 %v2200, %v2317
        %v2379 = vadd.f32 %v2201, %v2319
        %v2380 = vadd.f32 %v2202, %v2322
        %v2381 = vadd.f32 %v2203, %v2324
        %v2382 = vadd.f32 %v2204, %v2327
        %v2383 = vadd.f32 %v2205, %v2329
        %v2384 = vadd.f32 %v2206, %v2332
        %v2385 = vadd.f32 %v2207, %v2334
        %v2386 = vadd.f32 %v2208, %v2337
        %v2387 = vadd.f32 %v2209, %v2339
        %v2388 = vadd.f32 %v2210, %v2342
        %v2389 = vadd.f32 %v2211, %v2344
        %v2390 = vadd.f32 %v2212, %v2347
        %v2391 = vadd.f32 %v2213, %v2349
        %v2392 = vadd.f32 %v2214, %v2352
        %v2393 = vadd.f32 %v2215, %v2354
        %v2394 = vadd.f32 %v2216, %v2357
        %v2395 = vadd.f32 %v2217, %v2359
        %v2396 = vadd.f32 %v2218, %v2362
        %v2397 = vadd.f32 %v2219, %v2364
        %v2398 = vld [vmem:[#allocation2 + $0x19] sm:$0xff]
        %v2399 = vld [vmem:[#allocation2 + $0x21] sm:$0xff]
        %v2400 = vld [vmem:[#allocation2 + $0x29] sm:$0xff]
        %v2401 = vld [vmem:[#allocation2 + $0x31] sm:$0xff]
        %v2402 = vld [vmem:[#allocation2 + $0x39] sm:$0xff]
        %v2403 = vld [vmem:[#allocation2 + $0x41] sm:$0xff]
        %v2404 = vld [vmem:[#allocation2 + $0x49] sm:$0xff]
        %v2405 = vld [vmem:[#allocation2 + $0x51] sm:$0xff]
        %v2406 = vld [vmem:[#allocation2 + $0x59] sm:$0xff]
        %v2407 = vld [vmem:[#allocation2 + $0x61] sm:$0xff]
        %v2408 = vld [vmem:[#allocation2 + $0x69] sm:$0xff]
        %v2409 = vld [vmem:[#allocation2 + $0x71] sm:$0xff]
        %v2410 = vld [vmem:[#allocation2 + $0x79] sm:$0xff]
        %v2411 = vld [vmem:[#allocation2 + $0x81] sm:$0xff]
        %v2412 = vld [vmem:[#allocation2 + $0x89] sm:$0xff]
        %v2413 = vld [vmem:[#allocation2 + $0x91] sm:$0xff]
        %v2414 = vld [vmem:[#allocation2 + $0x99] sm:$0xff]
        %v2415 = vld [vmem:[#allocation2 + $0xa1] sm:$0xff]
        %v2416 = vld [vmem:[#allocation2 + $0xa9] sm:$0xff]
        %v2417 = vld [vmem:[#allocation2 + $0xb1] sm:$0xff]
        %v2418 = vld [vmem:[#allocation2 + $0xb9] sm:$0xff]
        %v2419 = vld [vmem:[#allocation2 + $0xc1] sm:$0xff]
        %v2420 = vld [vmem:[#allocation2 + $0xc9] sm:$0xff]
        %v2421 = vld [vmem:[#allocation2 + $0xd1] sm:$0xff]
        %v2422 = vld [vmem:[#allocation2 + $0xd9] sm:$0xff]
        %v2423 = vld [vmem:[#allocation2 + $0xe1] sm:$0xff]
        %v2424 = vld [vmem:[#allocation2 + $0xe9] sm:$0xff]
        %v2425 = vld [vmem:[#allocation2 + $0xf1] sm:$0xff]
        %v2426 = vld [vmem:[#allocation2 + $0xf9] sm:$0xff]
        %v2427 = vld [vmem:[#allocation2 + $0x101] sm:$0xff]
        %v2428 = vld [vmem:[#allocation2 + $0x109] sm:$0xff]
        %v2429 = vld [vmem:[#allocation2 + $0x111] sm:$0xff]
        %v2430 = vsel %vm1704, %v2398, 0.0
        %v2431 = vsel %vm1705, %v2399, 0.0
        %v2432 = vsel %vm1706, %v2400, 0.0
        %v2433 = vsel %vm1707, %v2401, 0.0
        %v2434 = vsel %vm1708, %v2402, 0.0
        %v2435 = vsel %vm1709, %v2403, 0.0
        %v2436 = vsel %vm1710, %v2404, 0.0
        %v2437 = vsel %vm1711, %v2405, 0.0
        %v2438 = vsel %vm1712, %v2406, 0.0
        %v2439 = vsel %vm1713, %v2407, 0.0
        %v2440 = vsel %vm1714, %v2408, 0.0
        %v2441 = vsel %vm1715, %v2409, 0.0
        %v2442 = vsel %vm1716, %v2410, 0.0
        %v2443 = vsel %vm1717, %v2411, 0.0
        %v2444 = vsel %vm1718, %v2412, 0.0
        %v2445 = vsel %vm1719, %v2413, 0.0
        %v2446 = vsel %vm1720, %v2414, 0.0
        %v2447 = vsel %vm1721, %v2415, 0.0
        %v2448 = vsel %vm1722, %v2416, 0.0
        %v2449 = vsel %vm1723, %v2417, 0.0
        %v2450 = vsel %vm1724, %v2418, 0.0
        %v2451 = vsel %vm1725, %v2419, 0.0
        %v2452 = vsel %vm1726, %v2420, 0.0
        %v2453 = vsel %vm1727, %v2421, 0.0
        %v2454 = vsel %vm1728, %v2422, 0.0
        %v2455 = vsel %vm1729, %v2423, 0.0
        %v2456 = vsel %vm1730, %v2424, 0.0
        %v2457 = vsel %vm1731, %v2425, 0.0
        %v2458 = vsel %vm1732, %v2426, 0.0
        %v2459 = vsel %vm1733, %v2427, 0.0
        %v2460 = vsel %vm1734, %v2428, 0.0
        %v2461 = vsel %vm1735, %v2429, 0.0
        %v2462 = vpack.c.bf16 %v2431, %v2430
        %v2463 = vpack.c.bf16 %v2433, %v2432
        %v2464 = vpack.c.bf16 %v2435, %v2434
        %v2465 = vpack.c.bf16 %v2437, %v2436
        %v2466 = vpack.c.bf16 %v2439, %v2438
        %v2467 = vpack.c.bf16 %v2441, %v2440
        %v2468 = vpack.c.bf16 %v2443, %v2442
        %v2469 = vpack.c.bf16 %v2445, %v2444
        %v2470 = vpack.c.bf16 %v2447, %v2446
        %v2471 = vpack.c.bf16 %v2449, %v2448
        %v2472 = vpack.c.bf16 %v2451, %v2450
        %v2473 = vpack.c.bf16 %v2453, %v2452
        %v2474 = vpack.c.bf16 %v2455, %v2454
        %v2475 = vpack.c.bf16 %v2457, %v2456
        %v2476 = vpack.c.bf16 %v2459, %v2458
        %v2477 = vpack.c.bf16 %v2461, %v2460
        %s2478 = scalar_lea.vmem %s3, 40
        %v2479 = vld [vmem:[%s2478] sm:$0xf]
        %v2480 = vld [vmem:[%s2478 + $0x4] sm:$0xf]
        %v2483 = vunpack.c.l.b16 %v2479
        %v2484 = vunpack.c.l.b16 %v2480
        %v2485 = vpack.c.b16 %v2484, %v2483
        %v2488 = vsel %vm224, %v2462, 0
        %v2491 = vsel %vm224, %v2463, 0
        %v2494 = vsel %vm224, %v2464, 0
        %v2497 = vsel %vm224, %v2465, 0
        %v2500 = vsel %vm224, %v2466, 0
        %v2503 = vsel %vm224, %v2467, 0
        %v2506 = vsel %vm224, %v2468, 0
        %v2509 = vsel %vm224, %v2469, 0
        %v2512 = vsel %vm224, %v2470, 0
        %v2515 = vsel %vm224, %v2471, 0
        %v2518 = vsel %vm224, %v2472, 0
        %v2521 = vsel %vm224, %v2473, 0
        %v2524 = vsel %vm224, %v2474, 0
        %v2527 = vsel %vm224, %v2475, 0
        %v2530 = vsel %vm224, %v2476, 0
        %v2533 = vsel %vm224, %v2477, 0
        %2535 = vmatpush.bf16.msra.mxu0 0
        %2536 = vmatpush.bf16.msra.mxu0 0
        %2537 = vmatpush.bf16.msra.mxu0 0
        %2538 = vmatpush.bf16.msra.mxu0 0
        %2539 = vmatpush.bf16.msra.mxu0 0
        %2540 = vmatpush.bf16.msra.mxu0 0
        %2541 = vmatpush.bf16.msra.mxu0 0
        %2542 = vmatpush.bf16.msra.mxu0 %v2485
        %2543 = vmatmul.bf16.gmra.mxu0 %v2488
        %v2544 = vpop.f32.mrf.mxu0
        %v2545 = vadd.f32 0.0, %v2544
        %v2546 = vpop.f32.mrf.mxu0
        %v2547 = vadd.f32 0.0, %v2546
        %2548 = vmatmul.bf16.gmra.mxu0 %v2491
        %v2549 = vpop.f32.mrf.mxu0
        %v2550 = vadd.f32 0.0, %v2549
        %v2551 = vpop.f32.mrf.mxu0
        %v2552 = vadd.f32 0.0, %v2551
        %2553 = vmatmul.bf16.gmra.mxu0 %v2494
        %v2554 = vpop.f32.mrf.mxu0
        %v2555 = vadd.f32 0.0, %v2554
        %v2556 = vpop.f32.mrf.mxu0
        %v2557 = vadd.f32 0.0, %v2556
        %2558 = vmatmul.bf16.gmra.mxu0 %v2497
        %v2559 = vpop.f32.mrf.mxu0
        %v2560 = vadd.f32 0.0, %v2559
        %v2561 = vpop.f32.mrf.mxu0
        %v2562 = vadd.f32 0.0, %v2561
        %2563 = vmatmul.bf16.gmra.mxu0 %v2500
        %v2564 = vpop.f32.mrf.mxu0
        %v2565 = vadd.f32 0.0, %v2564
        %v2566 = vpop.f32.mrf.mxu0
        %v2567 = vadd.f32 0.0, %v2566
        %2568 = vmatmul.bf16.gmra.mxu0 %v2503
        %v2569 = vpop.f32.mrf.mxu0
        %v2570 = vadd.f32 0.0, %v2569
        %v2571 = vpop.f32.mrf.mxu0
        %v2572 = vadd.f32 0.0, %v2571
        %2573 = vmatmul.bf16.gmra.mxu0 %v2506
        %v2574 = vpop.f32.mrf.mxu0
        %v2575 = vadd.f32 0.0, %v2574
        %v2576 = vpop.f32.mrf.mxu0
        %v2577 = vadd.f32 0.0, %v2576
        %2578 = vmatmul.bf16.gmra.mxu0 %v2509
        %v2579 = vpop.f32.mrf.mxu0
        %v2580 = vadd.f32 0.0, %v2579
        %v2581 = vpop.f32.mrf.mxu0
        %v2582 = vadd.f32 0.0, %v2581
        %2583 = vmatmul.bf16.gmra.mxu0 %v2512
        %v2584 = vpop.f32.mrf.mxu0
        %v2585 = vadd.f32 0.0, %v2584
        %v2586 = vpop.f32.mrf.mxu0
        %v2587 = vadd.f32 0.0, %v2586
        %2588 = vmatmul.bf16.gmra.mxu0 %v2515
        %v2589 = vpop.f32.mrf.mxu0
        %v2590 = vadd.f32 0.0, %v2589
        %v2591 = vpop.f32.mrf.mxu0
        %v2592 = vadd.f32 0.0, %v2591
        %2593 = vmatmul.bf16.gmra.mxu0 %v2518
        %v2594 = vpop.f32.mrf.mxu0
        %v2595 = vadd.f32 0.0, %v2594
        %v2596 = vpop.f32.mrf.mxu0
        %v2597 = vadd.f32 0.0, %v2596
        %2598 = vmatmul.bf16.gmra.mxu0 %v2521
        %v2599 = vpop.f32.mrf.mxu0
        %v2600 = vadd.f32 0.0, %v2599
        %v2601 = vpop.f32.mrf.mxu0
        %v2602 = vadd.f32 0.0, %v2601
        %2603 = vmatmul.bf16.gmra.mxu0 %v2524
        %v2604 = vpop.f32.mrf.mxu0
        %v2605 = vadd.f32 0.0, %v2604
        %v2606 = vpop.f32.mrf.mxu0
        %v2607 = vadd.f32 0.0, %v2606
        %2608 = vmatmul.bf16.gmra.mxu0 %v2527
        %v2609 = vpop.f32.mrf.mxu0
        %v2610 = vadd.f32 0.0, %v2609
        %v2611 = vpop.f32.mrf.mxu0
        %v2612 = vadd.f32 0.0, %v2611
        %2613 = vmatmul.bf16.gmra.mxu0 %v2530
        %v2614 = vpop.f32.mrf.mxu0
        %v2615 = vadd.f32 0.0, %v2614
        %v2616 = vpop.f32.mrf.mxu0
        %v2617 = vadd.f32 0.0, %v2616
        %2618 = vmatmul.bf16.gmra.mxu0 %v2533
        %v2619 = vpop.f32.mrf.mxu0
        %v2620 = vadd.f32 0.0, %v2619
        %v2621 = vpop.f32.mrf.mxu0
        %v2622 = vadd.f32 0.0, %v2621
        %2623 = vdwg.mxu0
        %v2624 = vadd.f32 %v2366, %v2545
        %v2625 = vadd.f32 %v2367, %v2547
        %v2626 = vadd.f32 %v2368, %v2550
        %v2627 = vadd.f32 %v2369, %v2552
        %v2628 = vadd.f32 %v2370, %v2555
        %v2629 = vadd.f32 %v2371, %v2557
        %v2630 = vadd.f32 %v2372, %v2560
        %v2631 = vadd.f32 %v2373, %v2562
        %v2632 = vadd.f32 %v2374, %v2565
        %v2633 = vadd.f32 %v2375, %v2567
        %v2634 = vadd.f32 %v2376, %v2570
        %v2635 = vadd.f32 %v2377, %v2572
        %v2636 = vadd.f32 %v2378, %v2575
        %v2637 = vadd.f32 %v2379, %v2577
        %v2638 = vadd.f32 %v2380, %v2580
        %v2639 = vadd.f32 %v2381, %v2582
        %v2640 = vadd.f32 %v2382, %v2585
        %v2641 = vadd.f32 %v2383, %v2587
        %v2642 = vadd.f32 %v2384, %v2590
        %v2643 = vadd.f32 %v2385, %v2592
        %v2644 = vadd.f32 %v2386, %v2595
        %v2645 = vadd.f32 %v2387, %v2597
        %v2646 = vadd.f32 %v2388, %v2600
        %v2647 = vadd.f32 %v2389, %v2602
        %v2648 = vadd.f32 %v2390, %v2605
        %v2649 = vadd.f32 %v2391, %v2607
        %v2650 = vadd.f32 %v2392, %v2610
        %v2651 = vadd.f32 %v2393, %v2612
        %v2652 = vadd.f32 %v2394, %v2615
        %v2653 = vadd.f32 %v2395, %v2617
        %v2654 = vadd.f32 %v2396, %v2620
        %v2655 = vadd.f32 %v2397, %v2622
        %v2656 = vld [vmem:[#allocation2 + $0x27] sm:$0xff]
        %v2657 = vld [vmem:[#allocation2 + $0x2f] sm:$0xff]
        %v2658 = vld [vmem:[#allocation2 + $0x37] sm:$0xff]
        %v2659 = vld [vmem:[#allocation2 + $0x3f] sm:$0xff]
        %v2660 = vld [vmem:[#allocation2 + $0x47] sm:$0xff]
        %v2661 = vld [vmem:[#allocation2 + $0x4f] sm:$0xff]
        %v2662 = vld [vmem:[#allocation2 + $0x57] sm:$0xff]
        %v2663 = vld [vmem:[#allocation2 + $0x5f] sm:$0xff]
        %v2664 = vld [vmem:[#allocation2 + $0x67] sm:$0xff]
        %v2665 = vld [vmem:[#allocation2 + $0x6f] sm:$0xff]
        %v2666 = vld [vmem:[#allocation2 + $0x77] sm:$0xff]
        %v2667 = vld [vmem:[#allocation2 + $0x7f] sm:$0xff]
        %v2668 = vld [vmem:[#allocation2 + $0x87] sm:$0xff]
        %v2669 = vld [vmem:[#allocation2 + $0x8f] sm:$0xff]
        %v2670 = vld [vmem:[#allocation2 + $0x97] sm:$0xff]
        %v2671 = vld [vmem:[#allocation2 + $0x9f] sm:$0xff]
        %v2672 = vld [vmem:[#allocation2 + $0xa7] sm:$0xff]
        %v2673 = vld [vmem:[#allocation2 + $0xaf] sm:$0xff]
        %v2674 = vld [vmem:[#allocation2 + $0xb7] sm:$0xff]
        %v2675 = vld [vmem:[#allocation2 + $0xbf] sm:$0xff]
        %v2676 = vld [vmem:[#allocation2 + $0xc7] sm:$0xff]
        %v2677 = vld [vmem:[#allocation2 + $0xcf] sm:$0xff]
        %v2678 = vld [vmem:[#allocation2 + $0xd7] sm:$0xff]
        %v2679 = vld [vmem:[#allocation2 + $0xdf] sm:$0xff]
        %v2680 = vld [vmem:[#allocation2 + $0xe7] sm:$0xff]
        %v2681 = vld [vmem:[#allocation2 + $0xef] sm:$0xff]
        %v2682 = vld [vmem:[#allocation2 + $0xf7] sm:$0xff]
        %v2683 = vld [vmem:[#allocation2 + $0xff] sm:$0xff]
        %v2684 = vld [vmem:[#allocation2 + $0x107] sm:$0xff]
        %v2685 = vld [vmem:[#allocation2 + $0x10f] sm:$0xff]
        %v2686 = vld [vmem:[#allocation2 + $0x117] sm:$0xff]
        %v2687 = vld [vmem:[#allocation2 + $0x11f] sm:$0xff]
        %v2688 = vsel %vm1221, %v2656, 0.0
        %v2689 = vsel %vm1222, %v2657, 0.0
        %v2690 = vsel %vm1223, %v2658, 0.0
        %v2691 = vsel %vm1224, %v2659, 0.0
        %v2692 = vsel %vm1225, %v2660, 0.0
        %v2693 = vsel %vm1226, %v2661, 0.0
        %v2694 = vsel %vm1227, %v2662, 0.0
        %v2695 = vsel %vm1228, %v2663, 0.0
        %v2696 = vsel %vm1229, %v2664, 0.0
        %v2697 = vsel %vm1230, %v2665, 0.0
        %v2698 = vsel %vm1231, %v2666, 0.0
        %v2699 = vsel %vm1232, %v2667, 0.0
        %v2700 = vsel %vm1233, %v2668, 0.0
        %v2701 = vsel %vm1234, %v2669, 0.0
        %v2702 = vsel %vm1235, %v2670, 0.0
        %v2703 = vsel %vm1236, %v2671, 0.0
        %v2704 = vsel %vm1237, %v2672, 0.0
        %v2705 = vsel %vm1238, %v2673, 0.0
        %v2706 = vsel %vm1239, %v2674, 0.0
        %v2707 = vsel %vm1240, %v2675, 0.0
        %v2708 = vsel %vm1241, %v2676, 0.0
        %v2709 = vsel %vm1242, %v2677, 0.0
        %v2710 = vsel %vm1243, %v2678, 0.0
        %v2711 = vsel %vm1244, %v2679, 0.0
        %v2712 = vsel %vm1245, %v2680, 0.0
        %v2713 = vsel %vm1246, %v2681, 0.0
        %v2714 = vsel %vm1247, %v2682, 0.0
        %v2715 = vsel %vm1248, %v2683, 0.0
        %v2716 = vsel %vm1249, %v2684, 0.0
        %v2717 = vsel %vm1250, %v2685, 0.0
        %v2718 = vsel %vm1251, %v2686, 0.0
        %v2719 = vsel %vm1252, %v2687, 0.0
        %v2720 = vpack.c.bf16 %v2689, %v2688
        %v2721 = vpack.c.bf16 %v2691, %v2690
        %v2722 = vpack.c.bf16 %v2693, %v2692
        %v2723 = vpack.c.bf16 %v2695, %v2694
        %v2724 = vpack.c.bf16 %v2697, %v2696
        %v2725 = vpack.c.bf16 %v2699, %v2698
        %v2726 = vpack.c.bf16 %v2701, %v2700
        %v2727 = vpack.c.bf16 %v2703, %v2702
        %v2728 = vpack.c.bf16 %v2705, %v2704
        %v2729 = vpack.c.bf16 %v2707, %v2706
        %v2730 = vpack.c.bf16 %v2709, %v2708
        %v2731 = vpack.c.bf16 %v2711, %v2710
        %v2732 = vpack.c.bf16 %v2713, %v2712
        %v2733 = vpack.c.bf16 %v2715, %v2714
        %v2734 = vpack.c.bf16 %v2717, %v2716
        %v2735 = vpack.c.bf16 %v2719, %v2718
        %s2736 = scalar_lea.vmem %s3, 48
        %v2737 = vld [vmem:[%s2736] sm:$0xf]
        %v2738 = vld [vmem:[%s2736 + $0x4] sm:$0xf]
        %v2741 = vunpack.c.l.b16 %v2737
        %v2742 = vunpack.c.l.b16 %v2738
        %v2743 = vpack.c.b16 %v2742, %v2741
        %v2746 = vsel %vm224, %v2720, 0
        %v2749 = vsel %vm224, %v2721, 0
        %v2752 = vsel %vm224, %v2722, 0
        %v2755 = vsel %vm224, %v2723, 0
        %v2758 = vsel %vm224, %v2724, 0
        %v2761 = vsel %vm224, %v2725, 0
        %v2764 = vsel %vm224, %v2726, 0
        %v2767 = vsel %vm224, %v2727, 0
        %v2770 = vsel %vm224, %v2728, 0
        %v2773 = vsel %vm224, %v2729, 0
        %v2776 = vsel %vm224, %v2730, 0
        %v2779 = vsel %vm224, %v2731, 0
        %v2782 = vsel %vm224, %v2732, 0
        %v2785 = vsel %vm224, %v2733, 0
        %v2788 = vsel %vm224, %v2734, 0
        %v2791 = vsel %vm224, %v2735, 0
        %2793 = vmatpush.bf16.msra.mxu0 0
        %2794 = vmatpush.bf16.msra.mxu0 0
        %2795 = vmatpush.bf16.msra.mxu0 0
        %2796 = vmatpush.bf16.msra.mxu0 0
        %2797 = vmatpush.bf16.msra.mxu0 0
        %2798 = vmatpush.bf16.msra.mxu0 0
        %2799 = vmatpush.bf16.msra.mxu0 0
        %2800 = vmatpush.bf16.msra.mxu0 %v2743
        %2801 = vmatmul.bf16.gmra.mxu0 %v2746
        %v2802 = vpop.f32.mrf.mxu0
        %v2803 = vadd.f32 0.0, %v2802
        %v2804 = vpop.f32.mrf.mxu0
        %v2805 = vadd.f32 0.0, %v2804
        %2806 = vmatmul.bf16.gmra.mxu0 %v2749
        %v2807 = vpop.f32.mrf.mxu0
        %v2808 = vadd.f32 0.0, %v2807
        %v2809 = vpop.f32.mrf.mxu0
        %v2810 = vadd.f32 0.0, %v2809
        %2811 = vmatmul.bf16.gmra.mxu0 %v2752
        %v2812 = vpop.f32.mrf.mxu0
        %v2813 = vadd.f32 0.0, %v2812
        %v2814 = vpop.f32.mrf.mxu0
        %v2815 = vadd.f32 0.0, %v2814
        %2816 = vmatmul.bf16.gmra.mxu0 %v2755
        %v2817 = vpop.f32.mrf.mxu0
        %v2818 = vadd.f32 0.0, %v2817
        %v2819 = vpop.f32.mrf.mxu0
        %v2820 = vadd.f32 0.0, %v2819
        %2821 = vmatmul.bf16.gmra.mxu0 %v2758
        %v2822 = vpop.f32.mrf.mxu0
        %v2823 = vadd.f32 0.0, %v2822
        %v2824 = vpop.f32.mrf.mxu0
        %v2825 = vadd.f32 0.0, %v2824
        %2826 = vmatmul.bf16.gmra.mxu0 %v2761
        %v2827 = vpop.f32.mrf.mxu0
        %v2828 = vadd.f32 0.0, %v2827
        %v2829 = vpop.f32.mrf.mxu0
        %v2830 = vadd.f32 0.0, %v2829
        %2831 = vmatmul.bf16.gmra.mxu0 %v2764
        %v2832 = vpop.f32.mrf.mxu0
        %v2833 = vadd.f32 0.0, %v2832
        %v2834 = vpop.f32.mrf.mxu0
        %v2835 = vadd.f32 0.0, %v2834
        %2836 = vmatmul.bf16.gmra.mxu0 %v2767
        %v2837 = vpop.f32.mrf.mxu0
        %v2838 = vadd.f32 0.0, %v2837
        %v2839 = vpop.f32.mrf.mxu0
        %v2840 = vadd.f32 0.0, %v2839
        %2841 = vmatmul.bf16.gmra.mxu0 %v2770
        %v2842 = vpop.f32.mrf.mxu0
        %v2843 = vadd.f32 0.0, %v2842
        %v2844 = vpop.f32.mrf.mxu0
        %v2845 = vadd.f32 0.0, %v2844
        %2846 = vmatmul.bf16.gmra.mxu0 %v2773
        %v2847 = vpop.f32.mrf.mxu0
        %v2848 = vadd.f32 0.0, %v2847
        %v2849 = vpop.f32.mrf.mxu0
        %v2850 = vadd.f32 0.0, %v2849
        %2851 = vmatmul.bf16.gmra.mxu0 %v2776
        %v2852 = vpop.f32.mrf.mxu0
        %v2853 = vadd.f32 0.0, %v2852
        %v2854 = vpop.f32.mrf.mxu0
        %v2855 = vadd.f32 0.0, %v2854
        %2856 = vmatmul.bf16.gmra.mxu0 %v2779
        %v2857 = vpop.f32.mrf.mxu0
        %v2858 = vadd.f32 0.0, %v2857
        %v2859 = vpop.f32.mrf.mxu0
        %v2860 = vadd.f32 0.0, %v2859
        %2861 = vmatmul.bf16.gmra.mxu0 %v2782
        %v2862 = vpop.f32.mrf.mxu0
        %v2863 = vadd.f32 0.0, %v2862
        %v2864 = vpop.f32.mrf.mxu0
        %v2865 = vadd.f32 0.0, %v2864
        %2866 = vmatmul.bf16.gmra.mxu0 %v2785
        %v2867 = vpop.f32.mrf.mxu0
        %v2868 = vadd.f32 0.0, %v2867
        %v2869 = vpop.f32.mrf.mxu0
        %v2870 = vadd.f32 0.0, %v2869
        %2871 = vmatmul.bf16.gmra.mxu0 %v2788
        %v2872 = vpop.f32.mrf.mxu0
        %v2873 = vadd.f32 0.0, %v2872
        %v2874 = vpop.f32.mrf.mxu0
        %v2875 = vadd.f32 0.0, %v2874
        %2876 = vmatmul.bf16.gmra.mxu0 %v2791
        %v2877 = vpop.f32.mrf.mxu0
        %v2878 = vadd.f32 0.0, %v2877
        %v2879 = vpop.f32.mrf.mxu0
        %v2880 = vadd.f32 0.0, %v2879
        %2881 = vdwg.mxu0
        %v2882 = vadd.f32 %v2624, %v2803
        %v2883 = vadd.f32 %v2625, %v2805
        %v2884 = vadd.f32 %v2626, %v2808
        %v2885 = vadd.f32 %v2627, %v2810
        %v2886 = vadd.f32 %v2628, %v2813
        %v2887 = vadd.f32 %v2629, %v2815
        %v2888 = vadd.f32 %v2630, %v2818
        %v2889 = vadd.f32 %v2631, %v2820
        %v2890 = vadd.f32 %v2632, %v2823
        %v2891 = vadd.f32 %v2633, %v2825
        %v2892 = vadd.f32 %v2634, %v2828
        %v2893 = vadd.f32 %v2635, %v2830
        %v2894 = vadd.f32 %v2636, %v2833
        %v2895 = vadd.f32 %v2637, %v2835
        %v2896 = vadd.f32 %v2638, %v2838
        %v2897 = vadd.f32 %v2639, %v2840
        %v2898 = vadd.f32 %v2640, %v2843
        %v2899 = vadd.f32 %v2641, %v2845
        %v2900 = vadd.f32 %v2642, %v2848
        %v2901 = vadd.f32 %v2643, %v2850
        %v2902 = vadd.f32 %v2644, %v2853
        %v2903 = vadd.f32 %v2645, %v2855
        %v2904 = vadd.f32 %v2646, %v2858
        %v2905 = vadd.f32 %v2647, %v2860
        %v2906 = vadd.f32 %v2648, %v2863
        %v2907 = vadd.f32 %v2649, %v2865
        %v2908 = vadd.f32 %v2650, %v2868
        %v2909 = vadd.f32 %v2651, %v2870
        %v2910 = vadd.f32 %v2652, %v2873
        %v2911 = vadd.f32 %v2653, %v2875
        %v2912 = vadd.f32 %v2654, %v2878
        %v2913 = vadd.f32 %v2655, %v2880
        %v2914 = vld [vmem:[#allocation2 + $0x28] sm:$0xff]
        %v2915 = vld [vmem:[#allocation2 + $0x30] sm:$0xff]
        %v2916 = vld [vmem:[#allocation2 + $0x38] sm:$0xff]
        %v2917 = vld [vmem:[#allocation2 + $0x40] sm:$0xff]
        %v2918 = vld [vmem:[#allocation2 + $0x48] sm:$0xff]
        %v2919 = vld [vmem:[#allocation2 + $0x50] sm:$0xff]
        %v2920 = vld [vmem:[#allocation2 + $0x58] sm:$0xff]
        %v2921 = vld [vmem:[#allocation2 + $0x60] sm:$0xff]
        %v2922 = vld [vmem:[#allocation2 + $0x68] sm:$0xff]
        %v2923 = vld [vmem:[#allocation2 + $0x70] sm:$0xff]
        %v2924 = vld [vmem:[#allocation2 + $0x78] sm:$0xff]
        %v2925 = vld [vmem:[#allocation2 + $0x80] sm:$0xff]
        %v2926 = vld [vmem:[#allocation2 + $0x88] sm:$0xff]
        %v2927 = vld [vmem:[#allocation2 + $0x90] sm:$0xff]
        %v2928 = vld [vmem:[#allocation2 + $0x98] sm:$0xff]
        %v2929 = vld [vmem:[#allocation2 + $0xa0] sm:$0xff]
        %v2930 = vld [vmem:[#allocation2 + $0xa8] sm:$0xff]
        %v2931 = vld [vmem:[#allocation2 + $0xb0] sm:$0xff]
        %v2932 = vld [vmem:[#allocation2 + $0xb8] sm:$0xff]
        %v2933 = vld [vmem:[#allocation2 + $0xc0] sm:$0xff]
        %v2934 = vld [vmem:[#allocation2 + $0xc8] sm:$0xff]
        %v2935 = vld [vmem:[#allocation2 + $0xd0] sm:$0xff]
        %v2936 = vld [vmem:[#allocation2 + $0xd8] sm:$0xff]
        %v2937 = vld [vmem:[#allocation2 + $0xe0] sm:$0xff]
        %v2938 = vld [vmem:[#allocation2 + $0xe8] sm:$0xff]
        %v2939 = vld [vmem:[#allocation2 + $0xf0] sm:$0xff]
        %v2940 = vld [vmem:[#allocation2 + $0xf8] sm:$0xff]
        %v2941 = vld [vmem:[#allocation2 + $0x100] sm:$0xff]
        %v2942 = vld [vmem:[#allocation2 + $0x108] sm:$0xff]
        %v2943 = vld [vmem:[#allocation2 + $0x110] sm:$0xff]
        %v2944 = vld [vmem:[#allocation2 + $0x118] sm:$0xff]
        %v2945 = vld [vmem:[#allocation2 + $0x120] sm:$0xff]
        %v2946 = vpack.c.bf16 %v2915, %v2914
        %v2947 = vpack.c.bf16 %v2917, %v2916
        %v2948 = vpack.c.bf16 %v2919, %v2918
        %v2949 = vpack.c.bf16 %v2921, %v2920
        %v2950 = vpack.c.bf16 %v2923, %v2922
        %v2951 = vpack.c.bf16 %v2925, %v2924
        %v2952 = vpack.c.bf16 %v2927, %v2926
        %v2953 = vpack.c.bf16 %v2929, %v2928
        %v2954 = vpack.c.bf16 %v2931, %v2930
        %v2955 = vpack.c.bf16 %v2933, %v2932
        %v2956 = vpack.c.bf16 %v2935, %v2934
        %v2957 = vpack.c.bf16 %v2937, %v2936
        %v2958 = vpack.c.bf16 %v2939, %v2938
        %v2959 = vpack.c.bf16 %v2941, %v2940
        %v2960 = vpack.c.bf16 %v2943, %v2942
        %v2961 = vpack.c.bf16 %v2945, %v2944
        %s2962 = scalar_lea.vmem %s3, 56
        %v2963 = vld [vmem:[%s2962] sm:$0xf]
        %v2964 = vld [vmem:[%s2962 + $0x4] sm:$0xf]
        %v2967 = vunpack.c.l.b16 %v2963
        %v2968 = vunpack.c.l.b16 %v2964
        %v2969 = vpack.c.b16 %v2968, %v2967
        %v2972 = vsel %vm224, %v2946, 0
        %v2975 = vsel %vm224, %v2947, 0
        %v2978 = vsel %vm224, %v2948, 0
        %v2981 = vsel %vm224, %v2949, 0
        %v2984 = vsel %vm224, %v2950, 0
        %v2987 = vsel %vm224, %v2951, 0
        %v2990 = vsel %vm224, %v2952, 0
        %v2993 = vsel %vm224, %v2953, 0
        %v2996 = vsel %vm224, %v2954, 0
        %v2999 = vsel %vm224, %v2955, 0
        %v3002 = vsel %vm224, %v2956, 0
        %v3005 = vsel %vm224, %v2957, 0
        %v3008 = vsel %vm224, %v2958, 0
        %v3011 = vsel %vm224, %v2959, 0
        %v3014 = vsel %vm224, %v2960, 0
        %v3017 = vsel %vm224, %v2961, 0
        %3019 = vmatpush.bf16.msra.mxu0 0
        %3020 = vmatpush.bf16.msra.mxu0 0
        %3021 = vmatpush.bf16.msra.mxu0 0
        %3022 = vmatpush.bf16.msra.mxu0 0
        %3023 = vmatpush.bf16.msra.mxu0 0
        %3024 = vmatpush.bf16.msra.mxu0 0
        %3025 = vmatpush.bf16.msra.mxu0 0
        %3026 = vmatpush.bf16.msra.mxu0 %v2969
        %3027 = vmatmul.bf16.gmra.mxu0 %v2972
        %v3028 = vpop.f32.mrf.mxu0
        %v3029 = vadd.f32 0.0, %v3028
        %v3030 = vpop.f32.mrf.mxu0
        %v3031 = vadd.f32 0.0, %v3030
        %3032 = vmatmul.bf16.gmra.mxu0 %v2975
        %v3033 = vpop.f32.mrf.mxu0
        %v3034 = vadd.f32 0.0, %v3033
        %v3035 = vpop.f32.mrf.mxu0
        %v3036 = vadd.f32 0.0, %v3035
        %3037 = vmatmul.bf16.gmra.mxu0 %v2978
        %v3038 = vpop.f32.mrf.mxu0
        %v3039 = vadd.f32 0.0, %v3038
        %v3040 = vpop.f32.mrf.mxu0
        %v3041 = vadd.f32 0.0, %v3040
        %3042 = vmatmul.bf16.gmra.mxu0 %v2981
        %v3043 = vpop.f32.mrf.mxu0
        %v3044 = vadd.f32 0.0, %v3043
        %v3045 = vpop.f32.mrf.mxu0
        %v3046 = vadd.f32 0.0, %v3045
        %3047 = vmatmul.bf16.gmra.mxu0 %v2984
        %v3048 = vpop.f32.mrf.mxu0
        %v3049 = vadd.f32 0.0, %v3048
        %v3050 = vpop.f32.mrf.mxu0
        %v3051 = vadd.f32 0.0, %v3050
        %3052 = vmatmul.bf16.gmra.mxu0 %v2987
        %v3053 = vpop.f32.mrf.mxu0
        %v3054 = vadd.f32 0.0, %v3053
        %v3055 = vpop.f32.mrf.mxu0
        %v3056 = vadd.f32 0.0, %v3055
        %3057 = vmatmul.bf16.gmra.mxu0 %v2990
        %v3058 = vpop.f32.mrf.mxu0
        %v3059 = vadd.f32 0.0, %v3058
        %v3060 = vpop.f32.mrf.mxu0
        %v3061 = vadd.f32 0.0, %v3060
        %3062 = vmatmul.bf16.gmra.mxu0 %v2993
        %v3063 = vpop.f32.mrf.mxu0
        %v3064 = vadd.f32 0.0, %v3063
        %v3065 = vpop.f32.mrf.mxu0
        %v3066 = vadd.f32 0.0, %v3065
        %3067 = vmatmul.bf16.gmra.mxu0 %v2996
        %v3068 = vpop.f32.mrf.mxu0
        %v3069 = vadd.f32 0.0, %v3068
        %v3070 = vpop.f32.mrf.mxu0
        %v3071 = vadd.f32 0.0, %v3070
        %3072 = vmatmul.bf16.gmra.mxu0 %v2999
        %v3073 = vpop.f32.mrf.mxu0
        %v3074 = vadd.f32 0.0, %v3073
        %v3075 = vpop.f32.mrf.mxu0
        %v3076 = vadd.f32 0.0, %v3075
        %3077 = vmatmul.bf16.gmra.mxu0 %v3002
        %v3078 = vpop.f32.mrf.mxu0
        %v3079 = vadd.f32 0.0, %v3078
        %v3080 = vpop.f32.mrf.mxu0
        %v3081 = vadd.f32 0.0, %v3080
        %3082 = vmatmul.bf16.gmra.mxu0 %v3005
        %v3083 = vpop.f32.mrf.mxu0
        %v3084 = vadd.f32 0.0, %v3083
        %v3085 = vpop.f32.mrf.mxu0
        %v3086 = vadd.f32 0.0, %v3085
        %3087 = vmatmul.bf16.gmra.mxu0 %v3008
        %v3088 = vpop.f32.mrf.mxu0
        %v3089 = vadd.f32 0.0, %v3088
        %v3090 = vpop.f32.mrf.mxu0
        %v3091 = vadd.f32 0.0, %v3090
        %3092 = vmatmul.bf16.gmra.mxu0 %v3011
        %v3093 = vpop.f32.mrf.mxu0
        %v3094 = vadd.f32 0.0, %v3093
        %v3095 = vpop.f32.mrf.mxu0
        %v3096 = vadd.f32 0.0, %v3095
        %3097 = vmatmul.bf16.gmra.mxu0 %v3014
        %v3098 = vpop.f32.mrf.mxu0
        %v3099 = vadd.f32 0.0, %v3098
        %v3100 = vpop.f32.mrf.mxu0
        %v3101 = vadd.f32 0.0, %v3100
        %3102 = vmatmul.bf16.gmra.mxu0 %v3017
        %v3103 = vpop.f32.mrf.mxu0
        %v3104 = vadd.f32 0.0, %v3103
        %v3105 = vpop.f32.mrf.mxu0
        %v3106 = vadd.f32 0.0, %v3105
        %3107 = vdwg.mxu0
        %v3108 = vadd.f32 %v2882, %v3029
        %v3109 = vadd.f32 %v2883, %v3031
        %v3110 = vadd.f32 %v2884, %v3034
        %v3111 = vadd.f32 %v2885, %v3036
        %v3112 = vadd.f32 %v2886, %v3039
        %v3113 = vadd.f32 %v2887, %v3041
        %v3114 = vadd.f32 %v2888, %v3044
        %v3115 = vadd.f32 %v2889, %v3046
        %v3116 = vadd.f32 %v2890, %v3049
        %v3117 = vadd.f32 %v2891, %v3051
        %v3118 = vadd.f32 %v2892, %v3054
        %v3119 = vadd.f32 %v2893, %v3056
        %v3120 = vadd.f32 %v2894, %v3059
        %v3121 = vadd.f32 %v2895, %v3061
        %v3122 = vadd.f32 %v2896, %v3064
        %v3123 = vadd.f32 %v2897, %v3066
        %v3124 = vadd.f32 %v2898, %v3069
        %v3125 = vadd.f32 %v2899, %v3071
        %v3126 = vadd.f32 %v2900, %v3074
        %v3127 = vadd.f32 %v2901, %v3076
        %v3128 = vadd.f32 %v2902, %v3079
        %v3129 = vadd.f32 %v2903, %v3081
        %v3130 = vadd.f32 %v2904, %v3084
        %v3131 = vadd.f32 %v2905, %v3086
        %v3132 = vadd.f32 %v2906, %v3089
        %v3133 = vadd.f32 %v2907, %v3091
        %v3134 = vadd.f32 %v2908, %v3094
        %v3135 = vadd.f32 %v2909, %v3096
        %v3136 = vadd.f32 %v2910, %v3099
        %v3137 = vadd.f32 %v2911, %v3101
        %v3138 = vadd.f32 %v2912, %v3104
        %v3139 = vadd.f32 %v2913, %v3106
        %v3140 = vld [vmem:[#allocation2 + $0x29] sm:$0xff]
        %v3141 = vld [vmem:[#allocation2 + $0x31] sm:$0xff]
        %v3142 = vld [vmem:[#allocation2 + $0x39] sm:$0xff]
        %v3143 = vld [vmem:[#allocation2 + $0x41] sm:$0xff]
        %v3144 = vld [vmem:[#allocation2 + $0x49] sm:$0xff]
        %v3145 = vld [vmem:[#allocation2 + $0x51] sm:$0xff]
        %v3146 = vld [vmem:[#allocation2 + $0x59] sm:$0xff]
        %v3147 = vld [vmem:[#allocation2 + $0x61] sm:$0xff]
        %v3148 = vld [vmem:[#allocation2 + $0x69] sm:$0xff]
        %v3149 = vld [vmem:[#allocation2 + $0x71] sm:$0xff]
        %v3150 = vld [vmem:[#allocation2 + $0x79] sm:$0xff]
        %v3151 = vld [vmem:[#allocation2 + $0x81] sm:$0xff]
        %v3152 = vld [vmem:[#allocation2 + $0x89] sm:$0xff]
        %v3153 = vld [vmem:[#allocation2 + $0x91] sm:$0xff]
        %v3154 = vld [vmem:[#allocation2 + $0x99] sm:$0xff]
        %v3155 = vld [vmem:[#allocation2 + $0xa1] sm:$0xff]
        %v3156 = vld [vmem:[#allocation2 + $0xa9] sm:$0xff]
        %v3157 = vld [vmem:[#allocation2 + $0xb1] sm:$0xff]
        %v3158 = vld [vmem:[#allocation2 + $0xb9] sm:$0xff]
        %v3159 = vld [vmem:[#allocation2 + $0xc1] sm:$0xff]
        %v3160 = vld [vmem:[#allocation2 + $0xc9] sm:$0xff]
        %v3161 = vld [vmem:[#allocation2 + $0xd1] sm:$0xff]
        %v3162 = vld [vmem:[#allocation2 + $0xd9] sm:$0xff]
        %v3163 = vld [vmem:[#allocation2 + $0xe1] sm:$0xff]
        %v3164 = vld [vmem:[#allocation2 + $0xe9] sm:$0xff]
        %v3165 = vld [vmem:[#allocation2 + $0xf1] sm:$0xff]
        %v3166 = vld [vmem:[#allocation2 + $0xf9] sm:$0xff]
        %v3167 = vld [vmem:[#allocation2 + $0x101] sm:$0xff]
        %v3168 = vld [vmem:[#allocation2 + $0x109] sm:$0xff]
        %v3169 = vld [vmem:[#allocation2 + $0x111] sm:$0xff]
        %v3170 = vld [vmem:[#allocation2 + $0x119] sm:$0xff]
        %v3171 = vld [vmem:[#allocation2 + $0x121] sm:$0xff]
        %v3172 = vsel %vm1704, %v3140, 0.0
        %v3173 = vsel %vm1705, %v3141, 0.0
        %v3174 = vsel %vm1706, %v3142, 0.0
        %v3175 = vsel %vm1707, %v3143, 0.0
        %v3176 = vsel %vm1708, %v3144, 0.0
        %v3177 = vsel %vm1709, %v3145, 0.0
        %v3178 = vsel %vm1710, %v3146, 0.0
        %v3179 = vsel %vm1711, %v3147, 0.0
        %v3180 = vsel %vm1712, %v3148, 0.0
        %v3181 = vsel %vm1713, %v3149, 0.0
        %v3182 = vsel %vm1714, %v3150, 0.0
        %v3183 = vsel %vm1715, %v3151, 0.0
        %v3184 = vsel %vm1716, %v3152, 0.0
        %v3185 = vsel %vm1717, %v3153, 0.0
        %v3186 = vsel %vm1718, %v3154, 0.0
        %v3187 = vsel %vm1719, %v3155, 0.0
        %v3188 = vsel %vm1720, %v3156, 0.0
        %v3189 = vsel %vm1721, %v3157, 0.0
        %v3190 = vsel %vm1722, %v3158, 0.0
        %v3191 = vsel %vm1723, %v3159, 0.0
        %v3192 = vsel %vm1724, %v3160, 0.0
        %v3193 = vsel %vm1725, %v3161, 0.0
        %v3194 = vsel %vm1726, %v3162, 0.0
        %v3195 = vsel %vm1727, %v3163, 0.0
        %v3196 = vsel %vm1728, %v3164, 0.0
        %v3197 = vsel %vm1729, %v3165, 0.0
        %v3198 = vsel %vm1730, %v3166, 0.0
        %v3199 = vsel %vm1731, %v3167, 0.0
        %v3200 = vsel %vm1732, %v3168, 0.0
        %v3201 = vsel %vm1733, %v3169, 0.0
        %v3202 = vsel %vm1734, %v3170, 0.0
        %v3203 = vsel %vm1735, %v3171, 0.0
        %v3204 = vpack.c.bf16 %v3173, %v3172
        %v3205 = vpack.c.bf16 %v3175, %v3174
        %v3206 = vpack.c.bf16 %v3177, %v3176
        %v3207 = vpack.c.bf16 %v3179, %v3178
        %v3208 = vpack.c.bf16 %v3181, %v3180
        %v3209 = vpack.c.bf16 %v3183, %v3182
        %v3210 = vpack.c.bf16 %v3185, %v3184
        %v3211 = vpack.c.bf16 %v3187, %v3186
        %v3212 = vpack.c.bf16 %v3189, %v3188
        %v3213 = vpack.c.bf16 %v3191, %v3190
        %v3214 = vpack.c.bf16 %v3193, %v3192
        %v3215 = vpack.c.bf16 %v3195, %v3194
        %v3216 = vpack.c.bf16 %v3197, %v3196
        %v3217 = vpack.c.bf16 %v3199, %v3198
        %v3218 = vpack.c.bf16 %v3201, %v3200
        %v3219 = vpack.c.bf16 %v3203, %v3202
        %s3220 = scalar_lea.vmem %s3, 64
        %v3221 = vld [vmem:[%s3220] sm:$0xf]
        %v3222 = vld [vmem:[%s3220 + $0x4] sm:$0xf]
        %v3225 = vunpack.c.l.b16 %v3221
        %v3226 = vunpack.c.l.b16 %v3222
        %v3227 = vpack.c.b16 %v3226, %v3225
        %v3230 = vsel %vm224, %v3204, 0
        %v3233 = vsel %vm224, %v3205, 0
        %v3236 = vsel %vm224, %v3206, 0
        %v3239 = vsel %vm224, %v3207, 0
        %v3242 = vsel %vm224, %v3208, 0
        %v3245 = vsel %vm224, %v3209, 0
        %v3248 = vsel %vm224, %v3210, 0
        %v3251 = vsel %vm224, %v3211, 0
        %v3254 = vsel %vm224, %v3212, 0
        %v3257 = vsel %vm224, %v3213, 0
        %v3260 = vsel %vm224, %v3214, 0
        %v3263 = vsel %vm224, %v3215, 0
        %v3266 = vsel %vm224, %v3216, 0
        %v3269 = vsel %vm224, %v3217, 0
        %v3272 = vsel %vm224, %v3218, 0
        %v3275 = vsel %vm224, %v3219, 0
        %3277 = vmatpush.bf16.msra.mxu0 0
        %3278 = vmatpush.bf16.msra.mxu0 0
        %3279 = vmatpush.bf16.msra.mxu0 0
        %3280 = vmatpush.bf16.msra.mxu0 0
        %3281 = vmatpush.bf16.msra.mxu0 0
        %3282 = vmatpush.bf16.msra.mxu0 0
        %3283 = vmatpush.bf16.msra.mxu0 0
        %3284 = vmatpush.bf16.msra.mxu0 %v3227
        %3285 = vmatmul.bf16.gmra.mxu0 %v3230
        %v3286 = vpop.f32.mrf.mxu0
        %v3287 = vadd.f32 0.0, %v3286
        %v3288 = vpop.f32.mrf.mxu0
        %v3289 = vadd.f32 0.0, %v3288
        %3290 = vmatmul.bf16.gmra.mxu0 %v3233
        %v3291 = vpop.f32.mrf.mxu0
        %v3292 = vadd.f32 0.0, %v3291
        %v3293 = vpop.f32.mrf.mxu0
        %v3294 = vadd.f32 0.0, %v3293
        %3295 = vmatmul.bf16.gmra.mxu0 %v3236
        %v3296 = vpop.f32.mrf.mxu0
        %v3297 = vadd.f32 0.0, %v3296
        %v3298 = vpop.f32.mrf.mxu0
        %v3299 = vadd.f32 0.0, %v3298
        %3300 = vmatmul.bf16.gmra.mxu0 %v3239
        %v3301 = vpop.f32.mrf.mxu0
        %v3302 = vadd.f32 0.0, %v3301
        %v3303 = vpop.f32.mrf.mxu0
        %v3304 = vadd.f32 0.0, %v3303
        %3305 = vmatmul.bf16.gmra.mxu0 %v3242
        %v3306 = vpop.f32.mrf.mxu0
        %v3307 = vadd.f32 0.0, %v3306
        %v3308 = vpop.f32.mrf.mxu0
        %v3309 = vadd.f32 0.0, %v3308
        %3310 = vmatmul.bf16.gmra.mxu0 %v3245
        %v3311 = vpop.f32.mrf.mxu0
        %v3312 = vadd.f32 0.0, %v3311
        %v3313 = vpop.f32.mrf.mxu0
        %v3314 = vadd.f32 0.0, %v3313
        %3315 = vmatmul.bf16.gmra.mxu0 %v3248
        %v3316 = vpop.f32.mrf.mxu0
        %v3317 = vadd.f32 0.0, %v3316
        %v3318 = vpop.f32.mrf.mxu0
        %v3319 = vadd.f32 0.0, %v3318
        %3320 = vmatmul.bf16.gmra.mxu0 %v3251
        %v3321 = vpop.f32.mrf.mxu0
        %v3322 = vadd.f32 0.0, %v3321
        %v3323 = vpop.f32.mrf.mxu0
        %v3324 = vadd.f32 0.0, %v3323
        %3325 = vmatmul.bf16.gmra.mxu0 %v3254
        %v3326 = vpop.f32.mrf.mxu0
        %v3327 = vadd.f32 0.0, %v3326
        %v3328 = vpop.f32.mrf.mxu0
        %v3329 = vadd.f32 0.0, %v3328
        %3330 = vmatmul.bf16.gmra.mxu0 %v3257
        %v3331 = vpop.f32.mrf.mxu0
        %v3332 = vadd.f32 0.0, %v3331
        %v3333 = vpop.f32.mrf.mxu0
        %v3334 = vadd.f32 0.0, %v3333
        %3335 = vmatmul.bf16.gmra.mxu0 %v3260
        %v3336 = vpop.f32.mrf.mxu0
        %v3337 = vadd.f32 0.0, %v3336
        %v3338 = vpop.f32.mrf.mxu0
        %v3339 = vadd.f32 0.0, %v3338
        %3340 = vmatmul.bf16.gmra.mxu0 %v3263
        %v3341 = vpop.f32.mrf.mxu0
        %v3342 = vadd.f32 0.0, %v3341
        %v3343 = vpop.f32.mrf.mxu0
        %v3344 = vadd.f32 0.0, %v3343
        %3345 = vmatmul.bf16.gmra.mxu0 %v3266
        %v3346 = vpop.f32.mrf.mxu0
        %v3347 = vadd.f32 0.0, %v3346
        %v3348 = vpop.f32.mrf.mxu0
        %v3349 = vadd.f32 0.0, %v3348
        %3350 = vmatmul.bf16.gmra.mxu0 %v3269
        %v3351 = vpop.f32.mrf.mxu0
        %v3352 = vadd.f32 0.0, %v3351
        %v3353 = vpop.f32.mrf.mxu0
        %v3354 = vadd.f32 0.0, %v3353
        %3355 = vmatmul.bf16.gmra.mxu0 %v3272
        %v3356 = vpop.f32.mrf.mxu0
        %v3357 = vadd.f32 0.0, %v3356
        %v3358 = vpop.f32.mrf.mxu0
        %v3359 = vadd.f32 0.0, %v3358
        %3360 = vmatmul.bf16.gmra.mxu0 %v3275
        %v3361 = vpop.f32.mrf.mxu0
        %v3362 = vadd.f32 0.0, %v3361
        %v3363 = vpop.f32.mrf.mxu0
        %v3364 = vadd.f32 0.0, %v3363
        %3365 = vdwg.mxu0
        %v3366 = vadd.f32 %v3108, %v3287
        %v3367 = vadd.f32 %v3109, %v3289
        %v3368 = vadd.f32 %v3110, %v3292
        %v3369 = vadd.f32 %v3111, %v3294
        %v3370 = vadd.f32 %v3112, %v3297
        %v3371 = vadd.f32 %v3113, %v3299
        %v3372 = vadd.f32 %v3114, %v3302
        %v3373 = vadd.f32 %v3115, %v3304
        %v3374 = vadd.f32 %v3116, %v3307
        %v3375 = vadd.f32 %v3117, %v3309
        %v3376 = vadd.f32 %v3118, %v3312
        %v3377 = vadd.f32 %v3119, %v3314
        %v3378 = vadd.f32 %v3120, %v3317
        %v3379 = vadd.f32 %v3121, %v3319
        %v3380 = vadd.f32 %v3122, %v3322
        %v3381 = vadd.f32 %v3123, %v3324
        %v3382 = vadd.f32 %v3124, %v3327
        %v3383 = vadd.f32 %v3125, %v3329
        %v3384 = vadd.f32 %v3126, %v3332
        %v3385 = vadd.f32 %v3127, %v3334
        %v3386 = vadd.f32 %v3128, %v3337
        %v3387 = vadd.f32 %v3129, %v3339
        %v3388 = vadd.f32 %v3130, %v3342
        %v3389 = vadd.f32 %v3131, %v3344
        %v3390 = vadd.f32 %v3132, %v3347
        %v3391 = vadd.f32 %v3133, %v3349
        %v3392 = vadd.f32 %v3134, %v3352
        %v3393 = vadd.f32 %v3135, %v3354
        %v3394 = vadd.f32 %v3136, %v3357
        %v3395 = vadd.f32 %v3137, %v3359
        %v3396 = vadd.f32 %v3138, %v3362
        %v3397 = vadd.f32 %v3139, %v3364
        %v3398 = vld [vmem:[%s4] sm:$0x1]
        %v3400 = vperm.slane %v3398, 0
        %v3402 = vadd.f32 %v3366, %v3400
        %v3403 = vadd.f32 %v3367, %v3400
        %v3404 = vadd.f32 %v3368, %v3400
        %v3405 = vadd.f32 %v3369, %v3400
        %v3406 = vadd.f32 %v3370, %v3400
        %v3407 = vadd.f32 %v3371, %v3400
        %v3408 = vadd.f32 %v3372, %v3400
        %v3409 = vadd.f32 %v3373, %v3400
        %v3410 = vadd.f32 %v3374, %v3400
        %v3411 = vadd.f32 %v3375, %v3400
        %v3412 = vadd.f32 %v3376, %v3400
        %v3413 = vadd.f32 %v3377, %v3400
        %v3414 = vadd.f32 %v3378, %v3400
        %v3415 = vadd.f32 %v3379, %v3400
        %v3416 = vadd.f32 %v3380, %v3400
        %v3417 = vadd.f32 %v3381, %v3400
        %v3418 = vadd.f32 %v3382, %v3400
        %v3419 = vadd.f32 %v3383, %v3400
        %v3420 = vadd.f32 %v3384, %v3400
        %v3421 = vadd.f32 %v3385, %v3400
        %v3422 = vadd.f32 %v3386, %v3400
        %v3423 = vadd.f32 %v3387, %v3400
        %v3424 = vadd.f32 %v3388, %v3400
        %v3425 = vadd.f32 %v3389, %v3400
        %v3426 = vadd.f32 %v3390, %v3400
        %v3427 = vadd.f32 %v3391, %v3400
        %v3428 = vadd.f32 %v3392, %v3400
        %v3429 = vadd.f32 %v3393, %v3400
        %v3430 = vadd.f32 %v3394, %v3400
        %v3431 = vadd.f32 %v3395, %v3400
        %v3432 = vadd.f32 %v3396, %v3400
        %v3433 = vadd.f32 %v3397, %v3400
        %v3434 = vsub.f32 0.0, %v3402
        %v3435 = vsub.f32 0.0, %v3403
        %v3436 = vsub.f32 0.0, %v3404
        %v3437 = vsub.f32 0.0, %v3405
        %v3438 = vsub.f32 0.0, %v3406
        %v3439 = vsub.f32 0.0, %v3407
        %v3440 = vsub.f32 0.0, %v3408
        %v3441 = vsub.f32 0.0, %v3409
        %v3442 = vsub.f32 0.0, %v3410
        %v3443 = vsub.f32 0.0, %v3411
        %v3444 = vsub.f32 0.0, %v3412
        %v3445 = vsub.f32 0.0, %v3413
        %v3446 = vsub.f32 0.0, %v3414
        %v3447 = vsub.f32 0.0, %v3415
        %v3448 = vsub.f32 0.0, %v3416
        %v3449 = vsub.f32 0.0, %v3417
        %v3450 = vsub.f32 0.0, %v3418
        %v3451 = vsub.f32 0.0, %v3419
        %v3452 = vsub.f32 0.0, %v3420
        %v3453 = vsub.f32 0.0, %v3421
        %v3454 = vsub.f32 0.0, %v3422
        %v3455 = vsub.f32 0.0, %v3423
        %v3456 = vsub.f32 0.0, %v3424
        %v3457 = vsub.f32 0.0, %v3425
        %v3458 = vsub.f32 0.0, %v3426
        %v3459 = vsub.f32 0.0, %v3427
        %v3460 = vsub.f32 0.0, %v3428
        %v3461 = vsub.f32 0.0, %v3429
        %v3462 = vsub.f32 0.0, %v3430
        %v3463 = vsub.f32 0.0, %v3431
        %v3464 = vsub.f32 0.0, %v3432
        %v3465 = vsub.f32 0.0, %v3433
        %v3466 = vmul.f32 %v3434, 1.442695
        %v3467 = vpow.pop %v3466
        %v3468 = vmul.f32 %v3435, 1.442695
        %v3469 = vpow.pop %v3468
        %v3470 = vmul.f32 %v3436, 1.442695
        %v3471 = vpow.pop %v3470
        %v3472 = vmul.f32 %v3437, 1.442695
        %v3473 = vpow.pop %v3472
        %v3474 = vmul.f32 %v3438, 1.442695
        %v3475 = vpow.pop %v3474
        %v3476 = vmul.f32 %v3439, 1.442695
        %v3477 = vpow.pop %v3476
        %v3478 = vmul.f32 %v3440, 1.442695
        %v3479 = vpow.pop %v3478
        %v3480 = vmul.f32 %v3441, 1.442695
        %v3481 = vpow.pop %v3480
        %v3482 = vmul.f32 %v3442, 1.442695
        %v3483 = vpow.pop %v3482
        %v3484 = vmul.f32 %v3443, 1.442695
        %v3485 = vpow.pop %v3484
        %v3486 = vmul.f32 %v3444, 1.442695
        %v3487 = vpow.pop %v3486
        %v3488 = vmul.f32 %v3445, 1.442695
        %v3489 = vpow.pop %v3488
        %v3490 = vmul.f32 %v3446, 1.442695
        %v3491 = vpow.pop %v3490
        %v3492 = vmul.f32 %v3447, 1.442695
        %v3493 = vpow.pop %v3492
        %v3494 = vmul.f32 %v3448, 1.442695
        %v3495 = vpow.pop %v3494
        %v3496 = vmul.f32 %v3449, 1.442695
        %v3497 = vpow.pop %v3496
        %v3498 = vmul.f32 %v3450, 1.442695
        %v3499 = vpow.pop %v3498
        %v3500 = vmul.f32 %v3451, 1.442695
        %v3501 = vpow.pop %v3500
        %v3502 = vmul.f32 %v3452, 1.442695
        %v3503 = vpow.pop %v3502
        %v3504 = vmul.f32 %v3453, 1.442695
        %v3505 = vpow.pop %v3504
        %v3506 = vmul.f32 %v3454, 1.442695
        %v3507 = vpow.pop %v3506
        %v3508 = vmul.f32 %v3455, 1.442695
        %v3509 = vpow.pop %v3508
        %v3510 = vmul.f32 %v3456, 1.442695
        %v3511 = vpow.pop %v3510
        %v3512 = vmul.f32 %v3457, 1.442695
        %v3513 = vpow.pop %v3512
        %v3514 = vmul.f32 %v3458, 1.442695
        %v3515 = vpow.pop %v3514
        %v3516 = vmul.f32 %v3459, 1.442695
        %v3517 = vpow.pop %v3516
        %v3518 = vmul.f32 %v3460, 1.442695
        %v3519 = vpow.pop %v3518
        %v3520 = vmul.f32 %v3461, 1.442695
        %v3521 = vpow.pop %v3520
        %v3522 = vmul.f32 %v3462, 1.442695
        %v3523 = vpow.pop %v3522
        %v3524 = vmul.f32 %v3463, 1.442695
        %v3525 = vpow.pop %v3524
        %v3526 = vmul.f32 %v3464, 1.442695
        %v3527 = vpow.pop %v3526
        %v3528 = vmul.f32 %v3465, 1.442695
        %v3529 = vpow.pop %v3528
        %v3530 = vadd.f32 %v3467, 1.0
        %v3531 = vadd.f32 %v3469, 1.0
        %v3532 = vadd.f32 %v3471, 1.0
        %v3533 = vadd.f32 %v3473, 1.0
        %v3534 = vadd.f32 %v3475, 1.0
        %v3535 = vadd.f32 %v3477, 1.0
        %v3536 = vadd.f32 %v3479, 1.0
        %v3537 = vadd.f32 %v3481, 1.0
        %v3538 = vadd.f32 %v3483, 1.0
        %v3539 = vadd.f32 %v3485, 1.0
        %v3540 = vadd.f32 %v3487, 1.0
        %v3541 = vadd.f32 %v3489, 1.0
        %v3542 = vadd.f32 %v3491, 1.0
        %v3543 = vadd.f32 %v3493, 1.0
        %v3544 = vadd.f32 %v3495, 1.0
        %v3545 = vadd.f32 %v3497, 1.0
        %v3546 = vadd.f32 %v3499, 1.0
        %v3547 = vadd.f32 %v3501, 1.0
        %v3548 = vadd.f32 %v3503, 1.0
        %v3549 = vadd.f32 %v3505, 1.0
        %v3550 = vadd.f32 %v3507, 1.0
        %v3551 = vadd.f32 %v3509, 1.0
        %v3552 = vadd.f32 %v3511, 1.0
        %v3553 = vadd.f32 %v3513, 1.0
        %v3554 = vadd.f32 %v3515, 1.0
        %v3555 = vadd.f32 %v3517, 1.0
        %v3556 = vadd.f32 %v3519, 1.0
        %v3557 = vadd.f32 %v3521, 1.0
        %v3558 = vadd.f32 %v3523, 1.0
        %v3559 = vadd.f32 %v3525, 1.0
        %v3560 = vadd.f32 %v3527, 1.0
        %v3561 = vadd.f32 %v3529, 1.0
        %v3562 = vrcp.pop %v3530
        %v3563 = vrcp.pop %v3531
        %v3564 = vrcp.pop %v3532
        %v3565 = vrcp.pop %v3533
        %v3566 = vrcp.pop %v3534
        %v3567 = vrcp.pop %v3535
        %v3568 = vrcp.pop %v3536
        %v3569 = vrcp.pop %v3537
        %v3570 = vrcp.pop %v3538
        %v3571 = vrcp.pop %v3539
        %v3572 = vrcp.pop %v3540
        %v3573 = vrcp.pop %v3541
        %v3574 = vrcp.pop %v3542
        %v3575 = vrcp.pop %v3543
        %v3576 = vrcp.pop %v3544
        %v3577 = vrcp.pop %v3545
        %v3578 = vrcp.pop %v3546
        %v3579 = vrcp.pop %v3547
        %v3580 = vrcp.pop %v3548
        %v3581 = vrcp.pop %v3549
        %v3582 = vrcp.pop %v3550
        %v3583 = vrcp.pop %v3551
        %v3584 = vrcp.pop %v3552
        %v3585 = vrcp.pop %v3553
        %v3586 = vrcp.pop %v3554
        %v3587 = vrcp.pop %v3555
        %v3588 = vrcp.pop %v3556
        %v3589 = vrcp.pop %v3557
        %v3590 = vrcp.pop %v3558
        %v3591 = vrcp.pop %v3559
        %v3592 = vrcp.pop %v3560
        %v3593 = vrcp.pop %v3561
        %v3594 = vmul.f32 %v3402, %v3562
        %v3595 = vmul.f32 %v3403, %v3563
        %v3596 = vmul.f32 %v3404, %v3564
        %v3597 = vmul.f32 %v3405, %v3565
        %v3598 = vmul.f32 %v3406, %v3566
        %v3599 = vmul.f32 %v3407, %v3567
        %v3600 = vmul.f32 %v3408, %v3568
        %v3601 = vmul.f32 %v3409, %v3569
        %v3602 = vmul.f32 %v3410, %v3570
        %v3603 = vmul.f32 %v3411, %v3571
        %v3604 = vmul.f32 %v3412, %v3572
        %v3605 = vmul.f32 %v3413, %v3573
        %v3606 = vmul.f32 %v3414, %v3574
        %v3607 = vmul.f32 %v3415, %v3575
        %v3608 = vmul.f32 %v3416, %v3576
        %v3609 = vmul.f32 %v3417, %v3577
        %v3610 = vmul.f32 %v3418, %v3578
        %v3611 = vmul.f32 %v3419, %v3579
        %v3612 = vmul.f32 %v3420, %v3580
        %v3613 = vmul.f32 %v3421, %v3581
        %v3614 = vmul.f32 %v3422, %v3582
        %v3615 = vmul.f32 %v3423, %v3583
        %v3616 = vmul.f32 %v3424, %v3584
        %v3617 = vmul.f32 %v3425, %v3585
        %v3618 = vmul.f32 %v3426, %v3586
        %v3619 = vmul.f32 %v3427, %v3587
        %v3620 = vmul.f32 %v3428, %v3588
        %v3621 = vmul.f32 %v3429, %v3589
        %v3622 = vmul.f32 %v3430, %v3590
        %v3623 = vmul.f32 %v3431, %v3591
        %v3624 = vmul.f32 %v3432, %v3592
        %v3625 = vmul.f32 %v3433, %v3593
        %v3626 = vadd.f32 %v3594, %v231
        %v3627 = vadd.f32 %v3595, %v232
        %v3628 = vadd.f32 %v3596, %v233
        %v3629 = vadd.f32 %v3597, %v234
        %v3630 = vadd.f32 %v3598, %v235
        %v3631 = vadd.f32 %v3599, %v236
        %v3632 = vadd.f32 %v3600, %v237
        %v3633 = vadd.f32 %v3601, %v238
        %v3634 = vadd.f32 %v3602, %v239
        %v3635 = vadd.f32 %v3603, %v240
        %v3636 = vadd.f32 %v3604, %v241
        %v3637 = vadd.f32 %v3605, %v242
        %v3638 = vadd.f32 %v3606, %v243
        %v3639 = vadd.f32 %v3607, %v244
        %v3640 = vadd.f32 %v3608, %v245
        %v3641 = vadd.f32 %v3609, %v246
        %v3642 = vadd.f32 %v3610, %v247
        %v3643 = vadd.f32 %v3611, %v248
        %v3644 = vadd.f32 %v3612, %v249
        %v3645 = vadd.f32 %v3613, %v250
        %v3646 = vadd.f32 %v3614, %v251
        %v3647 = vadd.f32 %v3615, %v252
        %v3648 = vadd.f32 %v3616, %v253
        %v3649 = vadd.f32 %v3617, %v254
        %v3650 = vadd.f32 %v3618, %v255
        %v3651 = vadd.f32 %v3619, %v256
        %v3652 = vadd.f32 %v3620, %v257
        %v3653 = vadd.f32 %v3621, %v258
        %v3654 = vadd.f32 %v3622, %v259
        %v3655 = vadd.f32 %v3623, %v260
        %v3656 = vadd.f32 %v3624, %v261
        %v3657 = vadd.f32 %v3625, %v262
        %3658 = vst [vmem:[%s217] sm:$0xff] %v3626
        %3659 = vst [vmem:[%s217 + $0x8] sm:$0xff] %v3627
        %3660 = vst [vmem:[%s217 + $0x10] sm:$0xff] %v3628
        %3661 = vst [vmem:[%s217 + $0x18] sm:$0xff] %v3629
        %3662 = vst [vmem:[%s217 + $0x20] sm:$0xff] %v3630
        %3663 = vst [vmem:[%s217 + $0x28] sm:$0xff] %v3631
        %3664 = vst [vmem:[%s217 + $0x30] sm:$0xff] %v3632
        %3665 = vst [vmem:[%s217 + $0x38] sm:$0xff] %v3633
        %3666 = vst [vmem:[%s217 + $0x40] sm:$0xff] %v3634
        %3667 = vst [vmem:[%s217 + $0x48] sm:$0xff] %v3635
        %3668 = vst [vmem:[%s217 + $0x50] sm:$0xff] %v3636
        %3669 = vst [vmem:[%s217 + $0x58] sm:$0xff] %v3637
        %3670 = vst [vmem:[%s217 + $0x60] sm:$0xff] %v3638
        %3671 = vst [vmem:[%s217 + $0x68] sm:$0xff] %v3639
        %3672 = vst [vmem:[%s217 + $0x70] sm:$0xff] %v3640
        %3673 = vst [vmem:[%s217 + $0x78] sm:$0xff] %v3641
        %3674 = vst [vmem:[%s217 + $0x80] sm:$0xff] %v3642
        %3675 = vst [vmem:[%s217 + $0x88] sm:$0xff] %v3643
        %3676 = vst [vmem:[%s217 + $0x90] sm:$0xff] %v3644
        %3677 = vst [vmem:[%s217 + $0x98] sm:$0xff] %v3645
        %3678 = vst [vmem:[%s217 + $0xa0] sm:$0xff] %v3646
        %3679 = vst [vmem:[%s217 + $0xa8] sm:$0xff] %v3647
        %3680 = vst [vmem:[%s217 + $0xb0] sm:$0xff] %v3648
        %3681 = vst [vmem:[%s217 + $0xb8] sm:$0xff] %v3649
        %3682 = vst [vmem:[%s217 + $0xc0] sm:$0xff] %v3650
        %3683 = vst [vmem:[%s217 + $0xc8] sm:$0xff] %v3651
        %3684 = vst [vmem:[%s217 + $0xd0] sm:$0xff] %v3652
        %3685 = vst [vmem:[%s217 + $0xd8] sm:$0xff] %v3653
        %3686 = vst [vmem:[%s217 + $0xe0] sm:$0xff] %v3654
        %3687 = vst [vmem:[%s217 + $0xe8] sm:$0xff] %v3655
        %3688 = vst [vmem:[%s217 + $0xf0] sm:$0xff] %v3656
        %3689 = vst [vmem:[%s217 + $0xf8] sm:$0xff] %v3657
        %s3690 = sand.u32 %s137, 1
        %s3691 = scalar_lea.sflag [#allocation4], %s3690
        %s3692 = sand.u32 %s137, 1
        %s3693 = smul.addr %s3692, 256
        %s3694 = scalar_lea.vmem [#allocation3], %s3693
        // Predicated region
        $region41: #{bottleneck_forward.1} parent=39 // pred_check
          %p3695 = pneg %p147
        $region42: #{bottleneck_forward.1} parent=39 // pred_check_branch
          %3697 = sbr.rel (%p3695) target = $region44
        $region43: #{bottleneck_forward.1} parent=39 // pred_region
          %3699 = vsyncadd %s3691, 0
          %s3700 = smul.addr %s19, 32
          %s3701 = smul.addr %s3700, 8
          %s3702 = scalar_lea.hbm %s5, %s3701
          %s3703 = sshll.u32 %s3694, 4
          %s3704 = int_to_ptr.vmem [resolvable:$true] %s3703
          %s3705 = sshll.u32 %s3702, 4
          %s3706 = int_to_ptr.hbm [resolvable:$true] %s3705
          %3711 = dma.vmem_to_hbm [thread:$0]  %s3704, 4096, %s3706, %s3691, 128, 128, 8
        $region44: #{bottleneck_forward.1} parent=39 // pred_fallthru
          _
      $region40: #{bottleneck_forward.1} parent=5 // pred_fallthru
        _
      %p3712 = scmp.le.s32.totalorder 2, %s14
      // Predicated region
      $region45: #{bottleneck_forward.1} parent=5 // pred_check
        %p3713 = pneg %p3712
      $region46: #{bottleneck_forward.1} parent=5 // pred_check_branch
        %3715 = sbr.rel (%p3713) target = $region48
      $region47: #{bottleneck_forward.1} parent=5 // pred_region
        %s3716 = ssub.s32 %s14, 2
        // Predicated region
        $region49: #{bottleneck_forward.1} parent=47 // pred_check
          %p3717 = pneg %p153
        $region50: #{bottleneck_forward.1} parent=47 // pred_check_branch
          %3719 = sbr.rel (%p3717) target = $region52
        $region51: #{bottleneck_forward.1} parent=47 // pred_region
          %s3720 = sand.u32 %s138, 1
          %s3721 = scalar_lea.sflag [#allocation4], %s3720
          %s3722 = sand.u32 %s138, 1
          %s3723 = smul.addr %s3722, 256
          %s3724 = scalar_lea.vmem [#allocation3], %s3723
          %3726 = dma.done %s3721, 4096
        $region52: #{bottleneck_forward.1} parent=47 // pred_fallthru
          _
      $region48: #{bottleneck_forward.1} parent=5 // pred_fallthru
        _
    $region6: #{bottleneck_forward.1} parent=1 // loop_footer
      %s18 = sadd.s32 1, %s14
    $region7: #{bottleneck_forward.1} parent=1 // loop_footer_branch
      %13 = sbr.rel target = $region3
    $region8: #{bottleneck_forward.1} parent=1 // loop_exit
      _
    %3727 = vsyncpa [#allocation4], 1
    %s3728 = scalar_lea.sflag [#allocation4], 1
    %3729 = vsyncpa %s3728, 1

</llo_original>
